<compile_context>
chip_gen: v5e
topology: v5e:2x2
jax: 0.10.0
libtpu: 0.0.40
codegen_flags: <defaults>
</compile_context>

<pallas_src>
import functools

import jax
import jax.numpy as jnp
from jax import lax
from jax.experimental import pallas as pl
from jax.experimental.pallas import tpu as pltpu


# ---------------------------------------------------------------------------
# Fused kernel: wFM1 -> wFM2 -> wFM3 -> Last (pooled features),
# one batch element per grid step.
# ---------------------------------------------------------------------------
def fused_manifoldnet_kernel(nbr_ref, x_ref, w1_ref, w2_ref, w3_ref, o_ref,
                             *, n_points, d_dim, num_neighbor):
    # nbr_ref: (1, N, K) int32  neighbour indices
    # x_ref  : (1, D, N, C0) f32 input sphere points, per-coordinate slabs
    # wX_ref : (K*C_in, C_out) bf16 softmaxed (convex) wFM weights
    # o_ref  : (1, 1, C_last) f32  pooled Frechet-distance features
    N = n_points
    D = d_dim
    K = num_neighbor

    # Build the K (N, N) one-hot gather masks once, in-kernel, from the int32
    # neighbour table (shared by all D coordinate slabs and all 3 layers).
    col_iota = lax.broadcasted_iota(jnp.int32, (N, N), 1)
    nbr = nbr_ref[0]                                        # (N, K) int32
    sels = [(nbr[:, k:k + 1] == col_iota).astype(jnp.float32)   # (N, N) 0/1
            for k in range(K)]

    def wfm(slabs, w_ref):
        # slabs: list of D arrays (N, c_in) f32 ; w_ref: (K*c_in, c_out) bf16
        c_in = slabs[0].shape[1]
        w_bf = w_ref[...]                                   # (K*c_in, c_out)

        # One gather matmul per neighbour over the D-concatenated slab
        # (exact f32 selection; contraction depth N).
        x_cat = jnp.concatenate(slabs, axis=1) if D > 1 else slabs[0]
        gk = [jnp.dot(sels[k], x_cat, preferred_element_type=jnp.float32)
              for k in range(K)]                            # K x (N, D*c_in)

        outs = []
        for d in range(D):
            # Stack the K gathered copies of this coordinate slab along lanes
            # and do ONE fused matmul against the (K*c_in, c_out) weight.
            Gd = jnp.concatenate(
                [g[:, d * c_in:(d + 1) * c_in] for g in gk], axis=1)
            outs.append(jnp.dot(Gd.astype(jnp.bfloat16), w_bf,
                                preferred_element_type=jnp.float32))

        # Re-project onto the unit sphere (norm over the D coordinates):
        # pure VPU/EUP elementwise on the slabs, no concatenate, no copies.
        sq = outs[0] * outs[0]
        for d in range(1, D):
            sq = sq + outs[d] * outs[d]
        inv = lax.rsqrt(sq + 1e-8)                          # (N, c_out)
        return [o * inv for o in outs]

    slabs = [x_ref[0, d].astype(jnp.float32) for d in range(D)]  # D x (N, C0)
    slabs = wfm(slabs, w1_ref)                              # 1  -> 10
    slabs = wfm(slabs, w2_ref)                              # 10 -> 20
    slabs = wfm(slabs, w3_ref)                              # 20 -> 30

    # ---- Last layer (in-kernel part): Frechet mean per channel, chordal
    # distance of every point to it, mean-pool over points.  The final
    # Linear is hoisted to the wrapper.
    sq = None
    for d in range(D):
        diff = slabs[d] - jnp.mean(slabs[d], axis=0, keepdims=True)
        sq = diff * diff if sq is None else sq + diff * diff
    dist = jnp.sqrt(sq + 1e-12)                             # (N, C) distances
    o_ref[0] = jnp.mean(dist, axis=0, keepdims=True)        # (1, C)


# ---------------------------------------------------------------------------
# Wrapper: softmax + bf16-cast weights once, launch fused kernel, FC in XLA.
# ---------------------------------------------------------------------------
def _prep_wfm_weights(w):
    # (K*C_in, C_out) raw weights -> softmax over the feature axis (convex
    # combination weights), pre-cast to bf16 for the MXU.  Done once.
    return jax.nn.softmax(w.astype(jnp.float32), axis=0).astype(jnp.bfloat16)


def manifold_net_forward(dataset, neighborhood_matrix, params):
    # dataset: (B, N, D, C0) points on S^{D-1}; neighborhood_matrix: (B, N, K)
    B, N, D, C0 = dataset.shape
    K = neighborhood_matrix.shape[-1]
    C_last = params["w3"].shape[1]

    # (B, N, D, C0) -> (B, D, N, C0): per-coordinate slabs, channels on lanes.
    x0 = jnp.transpose(dataset, (0, 2, 1, 3)).astype(jnp.float32)
    nbr = neighborhood_matrix.astype(jnp.int32)

    w1 = _prep_wfm_weights(params["w1"])          # (K*1, 10)  bf16
    w2 = _prep_wfm_weights(params["w2"])          # (K*10, 20) bf16
    w3 = _prep_wfm_weights(params["w3"])          # (K*20, 30) bf16

    kernel = functools.partial(fused_manifoldnet_kernel,
                               n_points=N, d_dim=D, num_neighbor=K)
    pooled = pl.pallas_call(
        kernel,
        out_shape=jax.ShapeDtypeStruct((B, 1, C_last), jnp.float32),
        grid_spec=pltpu.PrefetchScalarGridSpec(
            num_scalar_prefetch=0,
            grid=(B,),
            in_specs=[
                pl.BlockSpec((1, N, K), lambda b: (b, 0, 0)),       # nbr idx
                pl.BlockSpec((1, D, N, C0), lambda b: (b, 0, 0, 0)),  # points
                pl.BlockSpec(w1.shape, lambda b: (0, 0)),
                pl.BlockSpec(w2.shape, lambda b: (0, 0)),
                pl.BlockSpec(w3.shape, lambda b: (0, 0)),
            ],
            out_specs=pl.BlockSpec((1, 1, C_last), lambda b: (b, 0, 0)),
        ),
        compiler_params=pltpu.CompilerParams(
            dimension_semantics=("parallel",),    # one batch element per step
        ),
    )(nbr, x0, w1, w2, w3)

    # Final classifier hoisted out of the kernel (tiny (B,30)x(30,classes)).
    pooled = pooled[:, 0, :]                                     # (B, C_last)
    logits = pooled @ params["W_fc"].astype(jnp.float32) + params["b_fc"]
    return logits                                                # (B, classes)


def init_params(key, num_neighbor, num_classes):
    k1, k2, k3, k4 = jax.random.split(key, 4)
    return {
        "w1": jax.random.uniform(k1, (num_neighbor * 1, 10), jnp.float32),
        "w2": jax.random.uniform(k2, (num_neighbor * 10, 20), jnp.float32),
        "w3": jax.random.uniform(k3, (num_neighbor * 20, 30), jnp.float32),
        "W_fc": jax.random.normal(k4, (30, num_classes), jnp.float32)
                / jnp.sqrt(30.0),
        "b_fc": jnp.zeros((1, num_classes), jnp.float32),
    }


if __name__ == "__main__":
    B, N, D = 2, 32, 3
    num_neighbor, num_classes = 8, 5

    key = jax.random.PRNGKey(0)
    kp, kx, kn = jax.random.split(key, 3)

    params = init_params(kp, num_neighbor, num_classes)

    # dataset: points on the unit sphere S^2, a single manifold channel
    pts = jax.random.normal(kx, (B, N, D, 1), jnp.float32)
    dataset = pts / jnp.linalg.norm(pts, axis=2, keepdims=True)
    # neighborhood matrix: K neighbour indices per point
    neighborhood_matrix = jax.random.randint(
        kn, (B, N, num_neighbor), 0, N, dtype=jnp.int32)

    fwd = jax.jit(functools.partial(manifold_net_forward, params=params))
    logits = fwd(dataset, neighborhood_matrix)
    jax.block_until_ready(logits)

    assert logits.shape == (B, num_classes)
    assert bool(jnp.all(jnp.isfinite(logits)))
    print("KERNEL_OK")
</pallas_src>

<mosaic_0001>
module attributes {stable_mosaic.version = 11 : i64} {
  func.func @fused_manifoldnet_kernel(%arg0: i32, %arg1: memref<1x32x8xi32, #tpu.memory_space<vmem>>, %arg2: memref<1x3x32x1xf32, #tpu.memory_space<vmem>>, %arg3: memref<8x10xbf16, #tpu.memory_space<vmem>>, %arg4: memref<80x20xbf16, #tpu.memory_space<vmem>>, %arg5: memref<160x30xbf16, #tpu.memory_space<vmem>>, %arg6: memref<1x1x30xf32, #tpu.memory_space<vmem>>) attributes {dimension_semantics = [#tpu.dimension_semantics<parallel>], iteration_bounds = array<i64: 2>, scalar_prefetch = 0 : i64, scratch_operands = 0 : i64, tpu.core_type = #tpu.core_type<tc>, window_params = [{transform_indices = @transform_0, window_bounds = array<i64: 1, 32, 8>}, {transform_indices = @transform_1, window_bounds = array<i64: 1, 3, 32, 1>}, {pipeline_mode = #tpu.pipeline_mode<synchronous>, transform_indices = @transform_2, window_bounds = array<i64: 8, 10>}, {pipeline_mode = #tpu.pipeline_mode<synchronous>, transform_indices = @transform_3, window_bounds = array<i64: 80, 20>}, {pipeline_mode = #tpu.pipeline_mode<synchronous>, transform_indices = @transform_4, window_bounds = array<i64: 160, 30>}, {transform_indices = @transform_5, window_bounds = array<i64: 1, 1, 30>}]} {
    %0 = tpu.iota {dimensions = array<i32: 1>} : vector<32x32xi32>
    %c0 = arith.constant 0 : index
    %c0_0 = arith.constant 0 : index
    %c0_1 = arith.constant 0 : index
    %1 = vector.load %arg1[%c0, %c0_0, %c0_1] : memref<1x32x8xi32, #tpu.memory_space<vmem>>, vector<1x32x8xi32>
    %2 = vector.shape_cast %1 : vector<1x32x8xi32> to vector<32x8xi32>
    %3 = vector.extract_strided_slice %2 {offsets = [0, 0], sizes = [32, 1], strides = [1, 1]} : vector<32x8xi32> to vector<32x1xi32>
    %4 = vector.broadcast %3 : vector<32x1xi32> to vector<32x32xi32>
    %5 = arith.cmpi eq, %4, %0 : vector<32x32xi32>
    %6 = arith.extui %5 : vector<32x32xi1> to vector<32x32xi32>
    %7 = arith.sitofp %6 : vector<32x32xi32> to vector<32x32xf32>
    %8 = vector.extract_strided_slice %2 {offsets = [0, 1], sizes = [32, 1], strides = [1, 1]} : vector<32x8xi32> to vector<32x1xi32>
    %9 = vector.broadcast %8 : vector<32x1xi32> to vector<32x32xi32>
    %10 = arith.cmpi eq, %9, %0 : vector<32x32xi32>
    %11 = arith.extui %10 : vector<32x32xi1> to vector<32x32xi32>
    %12 = arith.sitofp %11 : vector<32x32xi32> to vector<32x32xf32>
    %13 = vector.extract_strided_slice %2 {offsets = [0, 2], sizes = [32, 1], strides = [1, 1]} : vector<32x8xi32> to vector<32x1xi32>
    %14 = vector.broadcast %13 : vector<32x1xi32> to vector<32x32xi32>
    %15 = arith.cmpi eq, %14, %0 : vector<32x32xi32>
    %16 = arith.extui %15 : vector<32x32xi1> to vector<32x32xi32>
    %17 = arith.sitofp %16 : vector<32x32xi32> to vector<32x32xf32>
    %18 = vector.extract_strided_slice %2 {offsets = [0, 3], sizes = [32, 1], strides = [1, 1]} : vector<32x8xi32> to vector<32x1xi32>
    %19 = vector.broadcast %18 : vector<32x1xi32> to vector<32x32xi32>
    %20 = arith.cmpi eq, %19, %0 : vector<32x32xi32>
    %21 = arith.extui %20 : vector<32x32xi1> to vector<32x32xi32>
    %22 = arith.sitofp %21 : vector<32x32xi32> to vector<32x32xf32>
    %23 = vector.extract_strided_slice %2 {offsets = [0, 4], sizes = [32, 1], strides = [1, 1]} : vector<32x8xi32> to vector<32x1xi32>
    %24 = vector.broadcast %23 : vector<32x1xi32> to vector<32x32xi32>
    %25 = arith.cmpi eq, %24, %0 : vector<32x32xi32>
    %26 = arith.extui %25 : vector<32x32xi1> to vector<32x32xi32>
    %27 = arith.sitofp %26 : vector<32x32xi32> to vector<32x32xf32>
    %28 = vector.extract_strided_slice %2 {offsets = [0, 5], sizes = [32, 1], strides = [1, 1]} : vector<32x8xi32> to vector<32x1xi32>
    %29 = vector.broadcast %28 : vector<32x1xi32> to vector<32x32xi32>
    %30 = arith.cmpi eq, %29, %0 : vector<32x32xi32>
    %31 = arith.extui %30 : vector<32x32xi1> to vector<32x32xi32>
    %32 = arith.sitofp %31 : vector<32x32xi32> to vector<32x32xf32>
    %33 = vector.extract_strided_slice %2 {offsets = [0, 6], sizes = [32, 1], strides = [1, 1]} : vector<32x8xi32> to vector<32x1xi32>
    %34 = vector.broadcast %33 : vector<32x1xi32> to vector<32x32xi32>
    %35 = arith.cmpi eq, %34, %0 : vector<32x32xi32>
    %36 = arith.extui %35 : vector<32x32xi1> to vector<32x32xi32>
    %37 = arith.sitofp %36 : vector<32x32xi32> to vector<32x32xf32>
    %38 = vector.extract_strided_slice %2 {offsets = [0, 7], sizes = [32, 1], strides = [1, 1]} : vector<32x8xi32> to vector<32x1xi32>
    %39 = vector.broadcast %38 : vector<32x1xi32> to vector<32x32xi32>
    %40 = arith.cmpi eq, %39, %0 : vector<32x32xi32>
    %41 = arith.extui %40 : vector<32x32xi1> to vector<32x32xi32>
    %42 = arith.sitofp %41 : vector<32x32xi32> to vector<32x32xf32>
    %c0_2 = arith.constant 0 : index
    %c0_3 = arith.constant 0 : index
    %c0_4 = arith.constant 0 : index
    %c0_5 = arith.constant 0 : index
    %43 = vector.load %arg2[%c0_2, %c0_3, %c0_4, %c0_5] : memref<1x3x32x1xf32, #tpu.memory_space<vmem>>, vector<1x1x32x1xf32>
    %44 = vector.shape_cast %43 : vector<1x1x32x1xf32> to vector<32x1xf32>
    %c0_6 = arith.constant 0 : index
    %c1 = arith.constant 1 : index
    %c0_7 = arith.constant 0 : index
    %c0_8 = arith.constant 0 : index
    %45 = vector.load %arg2[%c0_6, %c1, %c0_7, %c0_8] : memref<1x3x32x1xf32, #tpu.memory_space<vmem>>, vector<1x1x32x1xf32>
    %46 = vector.shape_cast %45 : vector<1x1x32x1xf32> to vector<32x1xf32>
    %c0_9 = arith.constant 0 : index
    %c2 = arith.constant 2 : index
    %c0_10 = arith.constant 0 : index
    %c0_11 = arith.constant 0 : index
    %47 = vector.load %arg2[%c0_9, %c2, %c0_10, %c0_11] : memref<1x3x32x1xf32, #tpu.memory_space<vmem>>, vector<1x1x32x1xf32>
    %48 = vector.shape_cast %47 : vector<1x1x32x1xf32> to vector<32x1xf32>
    %c0_12 = arith.constant 0 : index
    %c0_13 = arith.constant 0 : index
    %49 = vector.load %arg3[%c0_12, %c0_13] : memref<8x10xbf16, #tpu.memory_space<vmem>>, vector<8x10xbf16>
    %50 = tpu.concatenate %44, %46, %48 in 1 : vector<32x1xf32>, vector<32x1xf32>, vector<32x1xf32> -> vector<32x3xf32>
    %cst = arith.constant dense<0.000000e+00> : vector<32x3xf32>
    %51 = tpu.matmul %7, %50, %cst {dimension_numbers = #tpu.dot_dimension_numbers<[1], [0], [0], [1], [0, 0, 1, 1], [], []>} : vector<32x32xf32>, vector<32x3xf32>, vector<32x3xf32> -> vector<32x3xf32>
    %cst_14 = arith.constant dense<0.000000e+00> : vector<32x3xf32>
    %52 = tpu.matmul %12, %50, %cst_14 {dimension_numbers = #tpu.dot_dimension_numbers<[1], [0], [0], [1], [0, 0, 1, 1], [], []>} : vector<32x32xf32>, vector<32x3xf32>, vector<32x3xf32> -> vector<32x3xf32>
    %cst_15 = arith.constant dense<0.000000e+00> : vector<32x3xf32>
    %53 = tpu.matmul %17, %50, %cst_15 {dimension_numbers = #tpu.dot_dimension_numbers<[1], [0], [0], [1], [0, 0, 1, 1], [], []>} : vector<32x32xf32>, vector<32x3xf32>, vector<32x3xf32> -> vector<32x3xf32>
    %cst_16 = arith.constant dense<0.000000e+00> : vector<32x3xf32>
    %54 = tpu.matmul %22, %50, %cst_16 {dimension_numbers = #tpu.dot_dimension_numbers<[1], [0], [0], [1], [0, 0, 1, 1], [], []>} : vector<32x32xf32>, vector<32x3xf32>, vector<32x3xf32> -> vector<32x3xf32>
    %cst_17 = arith.constant dense<0.000000e+00> : vector<32x3xf32>
    %55 = tpu.matmul %27, %50, %cst_17 {dimension_numbers = #tpu.dot_dimension_numbers<[1], [0], [0], [1], [0, 0, 1, 1], [], []>} : vector<32x32xf32>, vector<32x3xf32>, vector<32x3xf32> -> vector<32x3xf32>
    %cst_18 = arith.constant dense<0.000000e+00> : vector<32x3xf32>
    %56 = tpu.matmul %32, %50, %cst_18 {dimension_numbers = #tpu.dot_dimension_numbers<[1], [0], [0], [1], [0, 0, 1, 1], [], []>} : vector<32x32xf32>, vector<32x3xf32>, vector<32x3xf32> -> vector<32x3xf32>
    %cst_19 = arith.constant dense<0.000000e+00> : vector<32x3xf32>
    %57 = tpu.matmul %37, %50, %cst_19 {dimension_numbers = #tpu.dot_dimension_numbers<[1], [0], [0], [1], [0, 0, 1, 1], [], []>} : vector<32x32xf32>, vector<32x3xf32>, vector<32x3xf32> -> vector<32x3xf32>
    %cst_20 = arith.constant dense<0.000000e+00> : vector<32x3xf32>
    %58 = tpu.matmul %42, %50, %cst_20 {dimension_numbers = #tpu.dot_dimension_numbers<[1], [0], [0], [1], [0, 0, 1, 1], [], []>} : vector<32x32xf32>, vector<32x3xf32>, vector<32x3xf32> -> vector<32x3xf32>
    %59 = vector.extract_strided_slice %51 {offsets = [0, 0], sizes = [32, 1], strides = [1, 1]} : vector<32x3xf32> to vector<32x1xf32>
    %60 = vector.extract_strided_slice %52 {offsets = [0, 0], sizes = [32, 1], strides = [1, 1]} : vector<32x3xf32> to vector<32x1xf32>
    %61 = vector.extract_strided_slice %53 {offsets = [0, 0], sizes = [32, 1], strides = [1, 1]} : vector<32x3xf32> to vector<32x1xf32>
    %62 = vector.extract_strided_slice %54 {offsets = [0, 0], sizes = [32, 1], strides = [1, 1]} : vector<32x3xf32> to vector<32x1xf32>
    %63 = vector.extract_strided_slice %55 {offsets = [0, 0], sizes = [32, 1], strides = [1, 1]} : vector<32x3xf32> to vector<32x1xf32>
    %64 = vector.extract_strided_slice %56 {offsets = [0, 0], sizes = [32, 1], strides = [1, 1]} : vector<32x3xf32> to vector<32x1xf32>
    %65 = vector.extract_strided_slice %57 {offsets = [0, 0], sizes = [32, 1], strides = [1, 1]} : vector<32x3xf32> to vector<32x1xf32>
    %66 = vector.extract_strided_slice %58 {offsets = [0, 0], sizes = [32, 1], strides = [1, 1]} : vector<32x3xf32> to vector<32x1xf32>
    %67 = tpu.concatenate %59, %60, %61, %62, %63, %64, %65, %66 in 1 : vector<32x1xf32>, vector<32x1xf32>, vector<32x1xf32>, vector<32x1xf32>, vector<32x1xf32>, vector<32x1xf32>, vector<32x1xf32>, vector<32x1xf32> -> vector<32x8xf32>
    %68 = arith.truncf %67 : vector<32x8xf32> to vector<32x8xbf16>
    %cst_21 = arith.constant dense<0.000000e+00> : vector<32x10xf32>
    %69 = tpu.matmul %68, %49, %cst_21 {dimension_numbers = #tpu.dot_dimension_numbers<[1], [0], [0], [1], [0, 0, 1, 1], [], []>} : vector<32x8xbf16>, vector<8x10xbf16>, vector<32x10xf32> -> vector<32x10xf32>
    %70 = vector.extract_strided_slice %51 {offsets = [0, 1], sizes = [32, 1], strides = [1, 1]} : vector<32x3xf32> to vector<32x1xf32>
    %71 = vector.extract_strided_slice %52 {offsets = [0, 1], sizes = [32, 1], strides = [1, 1]} : vector<32x3xf32> to vector<32x1xf32>
    %72 = vector.extract_strided_slice %53 {offsets = [0, 1], sizes = [32, 1], strides = [1, 1]} : vector<32x3xf32> to vector<32x1xf32>
    %73 = vector.extract_strided_slice %54 {offsets = [0, 1], sizes = [32, 1], strides = [1, 1]} : vector<32x3xf32> to vector<32x1xf32>
    %74 = vector.extract_strided_slice %55 {offsets = [0, 1], sizes = [32, 1], strides = [1, 1]} : vector<32x3xf32> to vector<32x1xf32>
    %75 = vector.extract_strided_slice %56 {offsets = [0, 1], sizes = [32, 1], strides = [1, 1]} : vector<32x3xf32> to vector<32x1xf32>
    %76 = vector.extract_strided_slice %57 {offsets = [0, 1], sizes = [32, 1], strides = [1, 1]} : vector<32x3xf32> to vector<32x1xf32>
    %77 = vector.extract_strided_slice %58 {offsets = [0, 1], sizes = [32, 1], strides = [1, 1]} : vector<32x3xf32> to vector<32x1xf32>
    %78 = tpu.concatenate %70, %71, %72, %73, %74, %75, %76, %77 in 1 : vector<32x1xf32>, vector<32x1xf32>, vector<32x1xf32>, vector<32x1xf32>, vector<32x1xf32>, vector<32x1xf32>, vector<32x1xf32>, vector<32x1xf32> -> vector<32x8xf32>
    %79 = arith.truncf %78 : vector<32x8xf32> to vector<32x8xbf16>
    %cst_22 = arith.constant dense<0.000000e+00> : vector<32x10xf32>
    %80 = tpu.matmul %79, %49, %cst_22 {dimension_numbers = #tpu.dot_dimension_numbers<[1], [0], [0], [1], [0, 0, 1, 1], [], []>} : vector<32x8xbf16>, vector<8x10xbf16>, vector<32x10xf32> -> vector<32x10xf32>
    %81 = vector.extract_strided_slice %51 {offsets = [0, 2], sizes = [32, 1], strides = [1, 1]} : vector<32x3xf32> to vector<32x1xf32>
    %82 = vector.extract_strided_slice %52 {offsets = [0, 2], sizes = [32, 1], strides = [1, 1]} : vector<32x3xf32> to vector<32x1xf32>
    %83 = vector.extract_strided_slice %53 {offsets = [0, 2], sizes = [32, 1], strides = [1, 1]} : vector<32x3xf32> to vector<32x1xf32>
    %84 = vector.extract_strided_slice %54 {offsets = [0, 2], sizes = [32, 1], strides = [1, 1]} : vector<32x3xf32> to vector<32x1xf32>
    %85 = vector.extract_strided_slice %55 {offsets = [0, 2], sizes = [32, 1], strides = [1, 1]} : vector<32x3xf32> to vector<32x1xf32>
    %86 = vector.extract_strided_slice %56 {offsets = [0, 2], sizes = [32, 1], strides = [1, 1]} : vector<32x3xf32> to vector<32x1xf32>
    %87 = vector.extract_strided_slice %57 {offsets = [0, 2], sizes = [32, 1], strides = [1, 1]} : vector<32x3xf32> to vector<32x1xf32>
    %88 = vector.extract_strided_slice %58 {offsets = [0, 2], sizes = [32, 1], strides = [1, 1]} : vector<32x3xf32> to vector<32x1xf32>
    %89 = tpu.concatenate %81, %82, %83, %84, %85, %86, %87, %88 in 1 : vector<32x1xf32>, vector<32x1xf32>, vector<32x1xf32>, vector<32x1xf32>, vector<32x1xf32>, vector<32x1xf32>, vector<32x1xf32>, vector<32x1xf32> -> vector<32x8xf32>
    %90 = arith.truncf %89 : vector<32x8xf32> to vector<32x8xbf16>
    %cst_23 = arith.constant dense<0.000000e+00> : vector<32x10xf32>
    %91 = tpu.matmul %90, %49, %cst_23 {dimension_numbers = #tpu.dot_dimension_numbers<[1], [0], [0], [1], [0, 0, 1, 1], [], []>} : vector<32x8xbf16>, vector<8x10xbf16>, vector<32x10xf32> -> vector<32x10xf32>
    %92 = arith.mulf %69, %69 : vector<32x10xf32>
    %93 = arith.mulf %80, %80 : vector<32x10xf32>
    %94 = arith.addf %92, %93 : vector<32x10xf32>
    %95 = arith.mulf %91, %91 : vector<32x10xf32>
    %96 = arith.addf %94, %95 : vector<32x10xf32>
    %cst_24 = arith.constant 9.99999993E-9 : f32
    %97 = vector.broadcast %cst_24 : f32 to vector<32x10xf32>
    %98 = arith.addf %96, %97 : vector<32x10xf32>
    %99 = math.rsqrt %98 : vector<32x10xf32>
    %100 = arith.mulf %69, %99 : vector<32x10xf32>
    %101 = arith.mulf %80, %99 : vector<32x10xf32>
    %102 = arith.mulf %91, %99 : vector<32x10xf32>
    %c0_25 = arith.constant 0 : index
    %c0_26 = arith.constant 0 : index
    %103 = vector.load %arg4[%c0_25, %c0_26] : memref<80x20xbf16, #tpu.memory_space<vmem>>, vector<80x20xbf16>
    %104 = tpu.concatenate %100, %101, %102 in 1 : vector<32x10xf32>, vector<32x10xf32>, vector<32x10xf32> -> vector<32x30xf32>
    %cst_27 = arith.constant dense<0.000000e+00> : vector<32x30xf32>
    %105 = tpu.matmul %7, %104, %cst_27 {dimension_numbers = #tpu.dot_dimension_numbers<[1], [0], [0], [1], [0, 0, 1, 1], [], []>} : vector<32x32xf32>, vector<32x30xf32>, vector<32x30xf32> -> vector<32x30xf32>
    %cst_28 = arith.constant dense<0.000000e+00> : vector<32x30xf32>
    %106 = tpu.matmul %12, %104, %cst_28 {dimension_numbers = #tpu.dot_dimension_numbers<[1], [0], [0], [1], [0, 0, 1, 1], [], []>} : vector<32x32xf32>, vector<32x30xf32>, vector<32x30xf32> -> vector<32x30xf32>
    %cst_29 = arith.constant dense<0.000000e+00> : vector<32x30xf32>
    %107 = tpu.matmul %17, %104, %cst_29 {dimension_numbers = #tpu.dot_dimension_numbers<[1], [0], [0], [1], [0, 0, 1, 1], [], []>} : vector<32x32xf32>, vector<32x30xf32>, vector<32x30xf32> -> vector<32x30xf32>
    %cst_30 = arith.constant dense<0.000000e+00> : vector<32x30xf32>
    %108 = tpu.matmul %22, %104, %cst_30 {dimension_numbers = #tpu.dot_dimension_numbers<[1], [0], [0], [1], [0, 0, 1, 1], [], []>} : vector<32x32xf32>, vector<32x30xf32>, vector<32x30xf32> -> vector<32x30xf32>
    %cst_31 = arith.constant dense<0.000000e+00> : vector<32x30xf32>
    %109 = tpu.matmul %27, %104, %cst_31 {dimension_numbers = #tpu.dot_dimension_numbers<[1], [0], [0], [1], [0, 0, 1, 1], [], []>} : vector<32x32xf32>, vector<32x30xf32>, vector<32x30xf32> -> vector<32x30xf32>
    %cst_32 = arith.constant dense<0.000000e+00> : vector<32x30xf32>
    %110 = tpu.matmul %32, %104, %cst_32 {dimension_numbers = #tpu.dot_dimension_numbers<[1], [0], [0], [1], [0, 0, 1, 1], [], []>} : vector<32x32xf32>, vector<32x30xf32>, vector<32x30xf32> -> vector<32x30xf32>
    %cst_33 = arith.constant dense<0.000000e+00> : vector<32x30xf32>
    %111 = tpu.matmul %37, %104, %cst_33 {dimension_numbers = #tpu.dot_dimension_numbers<[1], [0], [0], [1], [0, 0, 1, 1], [], []>} : vector<32x32xf32>, vector<32x30xf32>, vector<32x30xf32> -> vector<32x30xf32>
    %cst_34 = arith.constant dense<0.000000e+00> : vector<32x30xf32>
    %112 = tpu.matmul %42, %104, %cst_34 {dimension_numbers = #tpu.dot_dimension_numbers<[1], [0], [0], [1], [0, 0, 1, 1], [], []>} : vector<32x32xf32>, vector<32x30xf32>, vector<32x30xf32> -> vector<32x30xf32>
    %113 = vector.extract_strided_slice %105 {offsets = [0, 0], sizes = [32, 10], strides = [1, 1]} : vector<32x30xf32> to vector<32x10xf32>
    %114 = vector.extract_strided_slice %106 {offsets = [0, 0], sizes = [32, 10], strides = [1, 1]} : vector<32x30xf32> to vector<32x10xf32>
    %115 = vector.extract_strided_slice %107 {offsets = [0, 0], sizes = [32, 10], strides = [1, 1]} : vector<32x30xf32> to vector<32x10xf32>
    %116 = vector.extract_strided_slice %108 {offsets = [0, 0], sizes = [32, 10], strides = [1, 1]} : vector<32x30xf32> to vector<32x10xf32>
    %117 = vector.extract_strided_slice %109 {offsets = [0, 0], sizes = [32, 10], strides = [1, 1]} : vector<32x30xf32> to vector<32x10xf32>
    %118 = vector.extract_strided_slice %110 {offsets = [0, 0], sizes = [32, 10], strides = [1, 1]} : vector<32x30xf32> to vector<32x10xf32>
    %119 = vector.extract_strided_slice %111 {offsets = [0, 0], sizes = [32, 10], strides = [1, 1]} : vector<32x30xf32> to vector<32x10xf32>
    %120 = vector.extract_strided_slice %112 {offsets = [0, 0], sizes = [32, 10], strides = [1, 1]} : vector<32x30xf32> to vector<32x10xf32>
    %121 = tpu.concatenate %113, %114, %115, %116, %117, %118, %119, %120 in 1 : vector<32x10xf32>, vector<32x10xf32>, vector<32x10xf32>, vector<32x10xf32>, vector<32x10xf32>, vector<32x10xf32>, vector<32x10xf32>, vector<32x10xf32> -> vector<32x80xf32>
    %122 = arith.truncf %121 : vector<32x80xf32> to vector<32x80xbf16>
    %cst_35 = arith.constant dense<0.000000e+00> : vector<32x20xf32>
    %123 = tpu.matmul %122, %103, %cst_35 {dimension_numbers = #tpu.dot_dimension_numbers<[1], [0], [0], [1], [0, 0, 1, 1], [], []>} : vector<32x80xbf16>, vector<80x20xbf16>, vector<32x20xf32> -> vector<32x20xf32>
    %124 = vector.extract_strided_slice %105 {offsets = [0, 10], sizes = [32, 10], strides = [1, 1]} : vector<32x30xf32> to vector<32x10xf32>
    %125 = vector.extract_strided_slice %106 {offsets = [0, 10], sizes = [32, 10], strides = [1, 1]} : vector<32x30xf32> to vector<32x10xf32>
    %126 = vector.extract_strided_slice %107 {offsets = [0, 10], sizes = [32, 10], strides = [1, 1]} : vector<32x30xf32> to vector<32x10xf32>
    %127 = vector.extract_strided_slice %108 {offsets = [0, 10], sizes = [32, 10], strides = [1, 1]} : vector<32x30xf32> to vector<32x10xf32>
    %128 = vector.extract_strided_slice %109 {offsets = [0, 10], sizes = [32, 10], strides = [1, 1]} : vector<32x30xf32> to vector<32x10xf32>
    %129 = vector.extract_strided_slice %110 {offsets = [0, 10], sizes = [32, 10], strides = [1, 1]} : vector<32x30xf32> to vector<32x10xf32>
    %130 = vector.extract_strided_slice %111 {offsets = [0, 10], sizes = [32, 10], strides = [1, 1]} : vector<32x30xf32> to vector<32x10xf32>
    %131 = vector.extract_strided_slice %112 {offsets = [0, 10], sizes = [32, 10], strides = [1, 1]} : vector<32x30xf32> to vector<32x10xf32>
    %132 = tpu.concatenate %124, %125, %126, %127, %128, %129, %130, %131 in 1 : vector<32x10xf32>, vector<32x10xf32>, vector<32x10xf32>, vector<32x10xf32>, vector<32x10xf32>, vector<32x10xf32>, vector<32x10xf32>, vector<32x10xf32> -> vector<32x80xf32>
    %133 = arith.truncf %132 : vector<32x80xf32> to vector<32x80xbf16>
    %cst_36 = arith.constant dense<0.000000e+00> : vector<32x20xf32>
    %134 = tpu.matmul %133, %103, %cst_36 {dimension_numbers = #tpu.dot_dimension_numbers<[1], [0], [0], [1], [0, 0, 1, 1], [], []>} : vector<32x80xbf16>, vector<80x20xbf16>, vector<32x20xf32> -> vector<32x20xf32>
    %135 = vector.extract_strided_slice %105 {offsets = [0, 20], sizes = [32, 10], strides = [1, 1]} : vector<32x30xf32> to vector<32x10xf32>
    %136 = vector.extract_strided_slice %106 {offsets = [0, 20], sizes = [32, 10], strides = [1, 1]} : vector<32x30xf32> to vector<32x10xf32>
    %137 = vector.extract_strided_slice %107 {offsets = [0, 20], sizes = [32, 10], strides = [1, 1]} : vector<32x30xf32> to vector<32x10xf32>
    %138 = vector.extract_strided_slice %108 {offsets = [0, 20], sizes = [32, 10], strides = [1, 1]} : vector<32x30xf32> to vector<32x10xf32>
    %139 = vector.extract_strided_slice %109 {offsets = [0, 20], sizes = [32, 10], strides = [1, 1]} : vector<32x30xf32> to vector<32x10xf32>
    %140 = vector.extract_strided_slice %110 {offsets = [0, 20], sizes = [32, 10], strides = [1, 1]} : vector<32x30xf32> to vector<32x10xf32>
    %141 = vector.extract_strided_slice %111 {offsets = [0, 20], sizes = [32, 10], strides = [1, 1]} : vector<32x30xf32> to vector<32x10xf32>
    %142 = vector.extract_strided_slice %112 {offsets = [0, 20], sizes = [32, 10], strides = [1, 1]} : vector<32x30xf32> to vector<32x10xf32>
    %143 = tpu.concatenate %135, %136, %137, %138, %139, %140, %141, %142 in 1 : vector<32x10xf32>, vector<32x10xf32>, vector<32x10xf32>, vector<32x10xf32>, vector<32x10xf32>, vector<32x10xf32>, vector<32x10xf32>, vector<32x10xf32> -> vector<32x80xf32>
    %144 = arith.truncf %143 : vector<32x80xf32> to vector<32x80xbf16>
    %cst_37 = arith.constant dense<0.000000e+00> : vector<32x20xf32>
    %145 = tpu.matmul %144, %103, %cst_37 {dimension_numbers = #tpu.dot_dimension_numbers<[1], [0], [0], [1], [0, 0, 1, 1], [], []>} : vector<32x80xbf16>, vector<80x20xbf16>, vector<32x20xf32> -> vector<32x20xf32>
    %146 = arith.mulf %123, %123 : vector<32x20xf32>
    %147 = arith.mulf %134, %134 : vector<32x20xf32>
    %148 = arith.addf %146, %147 : vector<32x20xf32>
    %149 = arith.mulf %145, %145 : vector<32x20xf32>
    %150 = arith.addf %148, %149 : vector<32x20xf32>
    %cst_38 = arith.constant 9.99999993E-9 : f32
    %151 = vector.broadcast %cst_38 : f32 to vector<32x20xf32>
    %152 = arith.addf %150, %151 : vector<32x20xf32>
    %153 = math.rsqrt %152 : vector<32x20xf32>
    %154 = arith.mulf %123, %153 : vector<32x20xf32>
    %155 = arith.mulf %134, %153 : vector<32x20xf32>
    %156 = arith.mulf %145, %153 : vector<32x20xf32>
    %c0_39 = arith.constant 0 : index
    %c0_40 = arith.constant 0 : index
    %157 = vector.load %arg5[%c0_39, %c0_40] : memref<160x30xbf16, #tpu.memory_space<vmem>>, vector<160x30xbf16>
    %158 = tpu.concatenate %154, %155, %156 in 1 : vector<32x20xf32>, vector<32x20xf32>, vector<32x20xf32> -> vector<32x60xf32>
    %cst_41 = arith.constant dense<0.000000e+00> : vector<32x60xf32>
    %159 = tpu.matmul %7, %158, %cst_41 {dimension_numbers = #tpu.dot_dimension_numbers<[1], [0], [0], [1], [0, 0, 1, 1], [], []>} : vector<32x32xf32>, vector<32x60xf32>, vector<32x60xf32> -> vector<32x60xf32>
    %cst_42 = arith.constant dense<0.000000e+00> : vector<32x60xf32>
    %160 = tpu.matmul %12, %158, %cst_42 {dimension_numbers = #tpu.dot_dimension_numbers<[1], [0], [0], [1], [0, 0, 1, 1], [], []>} : vector<32x32xf32>, vector<32x60xf32>, vector<32x60xf32> -> vector<32x60xf32>
    %cst_43 = arith.constant dense<0.000000e+00> : vector<32x60xf32>
    %161 = tpu.matmul %17, %158, %cst_43 {dimension_numbers = #tpu.dot_dimension_numbers<[1], [0], [0], [1], [0, 0, 1, 1], [], []>} : vector<32x32xf32>, vector<32x60xf32>, vector<32x60xf32> -> vector<32x60xf32>
    %cst_44 = arith.constant dense<0.000000e+00> : vector<32x60xf32>
    %162 = tpu.matmul %22, %158, %cst_44 {dimension_numbers = #tpu.dot_dimension_numbers<[1], [0], [0], [1], [0, 0, 1, 1], [], []>} : vector<32x32xf32>, vector<32x60xf32>, vector<32x60xf32> -> vector<32x60xf32>
    %cst_45 = arith.constant dense<0.000000e+00> : vector<32x60xf32>
    %163 = tpu.matmul %27, %158, %cst_45 {dimension_numbers = #tpu.dot_dimension_numbers<[1], [0], [0], [1], [0, 0, 1, 1], [], []>} : vector<32x32xf32>, vector<32x60xf32>, vector<32x60xf32> -> vector<32x60xf32>
    %cst_46 = arith.constant dense<0.000000e+00> : vector<32x60xf32>
    %164 = tpu.matmul %32, %158, %cst_46 {dimension_numbers = #tpu.dot_dimension_numbers<[1], [0], [0], [1], [0, 0, 1, 1], [], []>} : vector<32x32xf32>, vector<32x60xf32>, vector<32x60xf32> -> vector<32x60xf32>
    %cst_47 = arith.constant dense<0.000000e+00> : vector<32x60xf32>
    %165 = tpu.matmul %37, %158, %cst_47 {dimension_numbers = #tpu.dot_dimension_numbers<[1], [0], [0], [1], [0, 0, 1, 1], [], []>} : vector<32x32xf32>, vector<32x60xf32>, vector<32x60xf32> -> vector<32x60xf32>
    %cst_48 = arith.constant dense<0.000000e+00> : vector<32x60xf32>
    %166 = tpu.matmul %42, %158, %cst_48 {dimension_numbers = #tpu.dot_dimension_numbers<[1], [0], [0], [1], [0, 0, 1, 1], [], []>} : vector<32x32xf32>, vector<32x60xf32>, vector<32x60xf32> -> vector<32x60xf32>
    %167 = vector.extract_strided_slice %159 {offsets = [0, 0], sizes = [32, 20], strides = [1, 1]} : vector<32x60xf32> to vector<32x20xf32>
    %168 = vector.extract_strided_slice %160 {offsets = [0, 0], sizes = [32, 20], strides = [1, 1]} : vector<32x60xf32> to vector<32x20xf32>
    %169 = vector.extract_strided_slice %161 {offsets = [0, 0], sizes = [32, 20], strides = [1, 1]} : vector<32x60xf32> to vector<32x20xf32>
    %170 = vector.extract_strided_slice %162 {offsets = [0, 0], sizes = [32, 20], strides = [1, 1]} : vector<32x60xf32> to vector<32x20xf32>
    %171 = vector.extract_strided_slice %163 {offsets = [0, 0], sizes = [32, 20], strides = [1, 1]} : vector<32x60xf32> to vector<32x20xf32>
    %172 = vector.extract_strided_slice %164 {offsets = [0, 0], sizes = [32, 20], strides = [1, 1]} : vector<32x60xf32> to vector<32x20xf32>
    %173 = vector.extract_strided_slice %165 {offsets = [0, 0], sizes = [32, 20], strides = [1, 1]} : vector<32x60xf32> to vector<32x20xf32>
    %174 = vector.extract_strided_slice %166 {offsets = [0, 0], sizes = [32, 20], strides = [1, 1]} : vector<32x60xf32> to vector<32x20xf32>
    %175 = tpu.concatenate %167, %168, %169, %170, %171, %172, %173, %174 in 1 : vector<32x20xf32>, vector<32x20xf32>, vector<32x20xf32>, vector<32x20xf32>, vector<32x20xf32>, vector<32x20xf32>, vector<32x20xf32>, vector<32x20xf32> -> vector<32x160xf32>
    %176 = arith.truncf %175 : vector<32x160xf32> to vector<32x160xbf16>
    %cst_49 = arith.constant dense<0.000000e+00> : vector<32x30xf32>
    %177 = tpu.matmul %176, %157, %cst_49 {dimension_numbers = #tpu.dot_dimension_numbers<[1], [0], [0], [1], [0, 0, 1, 1], [], []>} : vector<32x160xbf16>, vector<160x30xbf16>, vector<32x30xf32> -> vector<32x30xf32>
    %178 = vector.extract_strided_slice %159 {offsets = [0, 20], sizes = [32, 20], strides = [1, 1]} : vector<32x60xf32> to vector<32x20xf32>
    %179 = vector.extract_strided_slice %160 {offsets = [0, 20], sizes = [32, 20], strides = [1, 1]} : vector<32x60xf32> to vector<32x20xf32>
    %180 = vector.extract_strided_slice %161 {offsets = [0, 20], sizes = [32, 20], strides = [1, 1]} : vector<32x60xf32> to vector<32x20xf32>
    %181 = vector.extract_strided_slice %162 {offsets = [0, 20], sizes = [32, 20], strides = [1, 1]} : vector<32x60xf32> to vector<32x20xf32>
    %182 = vector.extract_strided_slice %163 {offsets = [0, 20], sizes = [32, 20], strides = [1, 1]} : vector<32x60xf32> to vector<32x20xf32>
    %183 = vector.extract_strided_slice %164 {offsets = [0, 20], sizes = [32, 20], strides = [1, 1]} : vector<32x60xf32> to vector<32x20xf32>
    %184 = vector.extract_strided_slice %165 {offsets = [0, 20], sizes = [32, 20], strides = [1, 1]} : vector<32x60xf32> to vector<32x20xf32>
    %185 = vector.extract_strided_slice %166 {offsets = [0, 20], sizes = [32, 20], strides = [1, 1]} : vector<32x60xf32> to vector<32x20xf32>
    %186 = tpu.concatenate %178, %179, %180, %181, %182, %183, %184, %185 in 1 : vector<32x20xf32>, vector<32x20xf32>, vector<32x20xf32>, vector<32x20xf32>, vector<32x20xf32>, vector<32x20xf32>, vector<32x20xf32>, vector<32x20xf32> -> vector<32x160xf32>
    %187 = arith.truncf %186 : vector<32x160xf32> to vector<32x160xbf16>
    %cst_50 = arith.constant dense<0.000000e+00> : vector<32x30xf32>
    %188 = tpu.matmul %187, %157, %cst_50 {dimension_numbers = #tpu.dot_dimension_numbers<[1], [0], [0], [1], [0, 0, 1, 1], [], []>} : vector<32x160xbf16>, vector<160x30xbf16>, vector<32x30xf32> -> vector<32x30xf32>
    %189 = vector.extract_strided_slice %159 {offsets = [0, 40], sizes = [32, 20], strides = [1, 1]} : vector<32x60xf32> to vector<32x20xf32>
    %190 = vector.extract_strided_slice %160 {offsets = [0, 40], sizes = [32, 20], strides = [1, 1]} : vector<32x60xf32> to vector<32x20xf32>
    %191 = vector.extract_strided_slice %161 {offsets = [0, 40], sizes = [32, 20], strides = [1, 1]} : vector<32x60xf32> to vector<32x20xf32>
    %192 = vector.extract_strided_slice %162 {offsets = [0, 40], sizes = [32, 20], strides = [1, 1]} : vector<32x60xf32> to vector<32x20xf32>
    %193 = vector.extract_strided_slice %163 {offsets = [0, 40], sizes = [32, 20], strides = [1, 1]} : vector<32x60xf32> to vector<32x20xf32>
    %194 = vector.extract_strided_slice %164 {offsets = [0, 40], sizes = [32, 20], strides = [1, 1]} : vector<32x60xf32> to vector<32x20xf32>
    %195 = vector.extract_strided_slice %165 {offsets = [0, 40], sizes = [32, 20], strides = [1, 1]} : vector<32x60xf32> to vector<32x20xf32>
    %196 = vector.extract_strided_slice %166 {offsets = [0, 40], sizes = [32, 20], strides = [1, 1]} : vector<32x60xf32> to vector<32x20xf32>
    %197 = tpu.concatenate %189, %190, %191, %192, %193, %194, %195, %196 in 1 : vector<32x20xf32>, vector<32x20xf32>, vector<32x20xf32>, vector<32x20xf32>, vector<32x20xf32>, vector<32x20xf32>, vector<32x20xf32>, vector<32x20xf32> -> vector<32x160xf32>
    %198 = arith.truncf %197 : vector<32x160xf32> to vector<32x160xbf16>
    %cst_51 = arith.constant dense<0.000000e+00> : vector<32x30xf32>
    %199 = tpu.matmul %198, %157, %cst_51 {dimension_numbers = #tpu.dot_dimension_numbers<[1], [0], [0], [1], [0, 0, 1, 1], [], []>} : vector<32x160xbf16>, vector<160x30xbf16>, vector<32x30xf32> -> vector<32x30xf32>
    %200 = arith.mulf %177, %177 : vector<32x30xf32>
    %201 = arith.mulf %188, %188 : vector<32x30xf32>
    %202 = arith.addf %200, %201 : vector<32x30xf32>
    %203 = arith.mulf %199, %199 : vector<32x30xf32>
    %204 = arith.addf %202, %203 : vector<32x30xf32>
    %cst_52 = arith.constant 9.99999993E-9 : f32
    %205 = vector.broadcast %cst_52 : f32 to vector<32x30xf32>
    %206 = arith.addf %204, %205 : vector<32x30xf32>
    %207 = math.rsqrt %206 : vector<32x30xf32>
    %208 = arith.mulf %177, %207 : vector<32x30xf32>
    %209 = arith.mulf %188, %207 : vector<32x30xf32>
    %210 = arith.mulf %199, %207 : vector<32x30xf32>
    %cst_53 = arith.constant dense<0.000000e+00> : vector<30xf32>
    %211 = vector.multi_reduction <add>, %208, %cst_53 [0] : vector<32x30xf32> to vector<30xf32>
    %212 = vector.shape_cast %211 : vector<30xf32> to vector<1x30xf32>
    %cst_54 = arith.constant 3.200000e+01 : f32
    %213 = vector.broadcast %cst_54 : f32 to vector<1x30xf32>
    %214 = arith.divf %212, %213 : vector<1x30xf32>
    %215 = vector.broadcast %214 : vector<1x30xf32> to vector<32x30xf32>
    %216 = arith.subf %208, %215 : vector<32x30xf32>
    %217 = arith.mulf %216, %216 : vector<32x30xf32>
    %cst_55 = arith.constant dense<0.000000e+00> : vector<30xf32>
    %218 = vector.multi_reduction <add>, %209, %cst_55 [0] : vector<32x30xf32> to vector<30xf32>
    %219 = vector.shape_cast %218 : vector<30xf32> to vector<1x30xf32>
    %cst_56 = arith.constant 3.200000e+01 : f32
    %220 = vector.broadcast %cst_56 : f32 to vector<1x30xf32>
    %221 = arith.divf %219, %220 : vector<1x30xf32>
    %222 = vector.broadcast %221 : vector<1x30xf32> to vector<32x30xf32>
    %223 = arith.subf %209, %222 : vector<32x30xf32>
    %224 = arith.mulf %223, %223 : vector<32x30xf32>
    %225 = arith.addf %217, %224 : vector<32x30xf32>
    %cst_57 = arith.constant dense<0.000000e+00> : vector<30xf32>
    %226 = vector.multi_reduction <add>, %210, %cst_57 [0] : vector<32x30xf32> to vector<30xf32>
    %227 = vector.shape_cast %226 : vector<30xf32> to vector<1x30xf32>
    %cst_58 = arith.constant 3.200000e+01 : f32
    %228 = vector.broadcast %cst_58 : f32 to vector<1x30xf32>
    %229 = arith.divf %227, %228 : vector<1x30xf32>
    %230 = vector.broadcast %229 : vector<1x30xf32> to vector<32x30xf32>
    %231 = arith.subf %210, %230 : vector<32x30xf32>
    %232 = arith.mulf %231, %231 : vector<32x30xf32>
    %233 = arith.addf %225, %232 : vector<32x30xf32>
    %cst_59 = arith.constant 9.99999996E-13 : f32
    %234 = vector.broadcast %cst_59 : f32 to vector<32x30xf32>
    %235 = arith.addf %233, %234 : vector<32x30xf32>
    %236 = math.sqrt %235 : vector<32x30xf32>
    %cst_60 = arith.constant dense<0.000000e+00> : vector<30xf32>
    %237 = vector.multi_reduction <add>, %236, %cst_60 [0] : vector<32x30xf32> to vector<30xf32>
    %238 = vector.shape_cast %237 : vector<30xf32> to vector<1x30xf32>
    %cst_61 = arith.constant 3.200000e+01 : f32
    %239 = vector.broadcast %cst_61 : f32 to vector<1x30xf32>
    %240 = arith.divf %238, %239 : vector<1x30xf32>
    %c0_62 = arith.constant 0 : index
    %c0_63 = arith.constant 0 : index
    %c0_64 = arith.constant 0 : index
    %241 = vector.load %arg6[%c0_62, %c0_63, %c0_64] : memref<1x1x30xf32, #tpu.memory_space<vmem>>, vector<1x1x30xf32>
    %242 = vector.shape_cast %241 : vector<1x1x30xf32> to vector<1x30xf32>
    %243 = vector.shape_cast %240 : vector<1x30xf32> to vector<1x1x30xf32>
    tpu.vector_store %arg6[%c0_62, %c0_63, %c0_64], %243 {strides = array<i32>} : memref<1x1x30xf32, #tpu.memory_space<vmem>>, vector<1x1x30xf32>,
    return
  }
  func.func @transform_0(%arg0: i32) -> (i32, i32, i32) {
    %c0_i32 = arith.constant 0 : i32
    %c0_i32_0 = arith.constant 0 : i32
    %c0_i32_1 = arith.constant 0 : i32
    return %arg0, %c0_i32, %c0_i32_0 : i32, i32, i32
  }
  func.func @transform_1(%arg0: i32) -> (i32, i32, i32, i32) {
    %c0_i32 = arith.constant 0 : i32
    %c0_i32_0 = arith.constant 0 : i32
    %c0_i32_1 = arith.constant 0 : i32
    %c0_i32_2 = arith.constant 0 : i32
    return %arg0, %c0_i32, %c0_i32_0, %c0_i32_1 : i32, i32, i32, i32
  }
  func.func @transform_2(%arg0: i32) -> (i32, i32) {
    %c0_i32 = arith.constant 0 : i32
    %c0_i32_0 = arith.constant 0 : i32
    %c0_i32_1 = arith.constant 0 : i32
    return %c0_i32, %c0_i32_0 : i32, i32
  }
  func.func @transform_3(%arg0: i32) -> (i32, i32) {
    %c0_i32 = arith.constant 0 : i32
    %c0_i32_0 = arith.constant 0 : i32
    %c0_i32_1 = arith.constant 0 : i32
    return %c0_i32, %c0_i32_0 : i32, i32
  }
  func.func @transform_4(%arg0: i32) -> (i32, i32) {
    %c0_i32 = arith.constant 0 : i32
    %c0_i32_0 = arith.constant 0 : i32
    %c0_i32_1 = arith.constant 0 : i32
    return %c0_i32, %c0_i32_0 : i32, i32
  }
  func.func @transform_5(%arg0: i32) -> (i32, i32, i32) {
    %c0_i32 = arith.constant 0 : i32
    %c0_i32_0 = arith.constant 0 : i32
    %c0_i32_1 = arith.constant 0 : i32
    return %arg0, %c0_i32, %c0_i32_0 : i32, i32, i32
  }
}

</mosaic_0001>

<llo_original>
// kernel: manifold_net_forward.1
$region0: #{manifold_net_forward.1}
  #allocation0 [shape = 'u32[]', space=smem, size = 0x4, offset = 0x4, fixed_abs, tag = 'smem constant byte address 0x4 - core index']
  #allocation1 [shape = 'u32[72,128]{1,0:T(1,128)}', space=vmem, size = 0x9000, scoped, tag = 'internal scratch']
  %s0 = inlined_call_operand.vmem [shape: s32[2,32,8], index: 0, kind: input, shape index: {}]
  %s1 = inlined_call_operand.vmem [shape: f32[2,3,32,1], index: 1, kind: input, shape index: {}]
  %s2 = inlined_call_operand.vmem [shape: bf16[8,10], index: 2, kind: input, shape index: {}]
  %s3 = inlined_call_operand.vmem [shape: bf16[80,20], index: 3, kind: input, shape index: {}]
  %s4 = inlined_call_operand.vmem [shape: bf16[160,30], index: 4, kind: input, shape index: {}]
  %s5 = inlined_call_operand.vmem [shape: f32[2,1,30], index: 5, kind: output, shape index: {}]
  %s6 = sld [smem:[#allocation0]]
  $region53: #{manifold_net_forward.1} parent=0
    _
  %s8 = ssub.s32 1, %s6
  %s9 = scalar_select 0, %s8, %s6
  loop: start=0, step=1, limit=4
  $region2: #{manifold_net_forward.1} parent=0 // loop_pre_header
    _
  $region3: #{manifold_net_forward.1} parent=0 // loop_header
    %s11 = sphi 0, %s15
    %p12 = scmp.ge.s32.totalorder %s11, 4
    %s21 = sphi 0, %s23
    %s24 = sphi 0, %s21
    %s25 = sphi 0, %s24
    %s41 = sphi 0, %s25
    %s47 = sphi 0, %s49
    %s50 = sphi 0, %s47
    %s51 = sphi 0, %s50
    %s67 = sphi 0, %s51
    %s71 = sphi 0, %s71
    %s73 = sphi 0, %s71
    %s74 = sphi 0, %s73
    %s88 = sphi 0, %s74
    %s92 = sphi 0, %s92
    %s94 = sphi 0, %s92
    %s95 = sphi 0, %s94
    %s109 = sphi 0, %s95
    %s113 = sphi 0, %s113
    %s115 = sphi 0, %s113
    %s116 = sphi 0, %s115
    %s130 = sphi 0, %s116
    %s136 = sphi 0, %s138
    %s139 = sphi 0, %s136
    %s140 = sphi 0, %s139
    %s156 = sphi 0, %s140
  $region4: #{manifold_net_forward.1} parent=0 // loop_header_branch
    %14 = sbr.rel (%p12) target = $region8
  $region5: #{manifold_net_forward.1} parent=0 // loop_body
    %s16 = ssub.s32 %s11, 1
    %s17 = ssub.s32 %s11, 2
    %s18 = sadd.s32 %s11, 1
    %s19 = ssub.s32 %s11, %s18
    %p20 = scmp.eq.s32.totalorder %s19, 0
    %s22 = sadd.s32 %s21, 1
    %s23 = scalar_select %p20, %s21, %s22
    %p26 = pneg %p20
    %p27 = scmp.eq.s32.totalorder %s11, 1
    %p28 = por %p26, %p27
    %p29 = scmp.ne.s32.totalorder %s21, %s24
    %p30 = scmp.eq.s32.totalorder %s11, 0
    %p31 = por %p29, %p30
    %p32 = scmp.ne.s32.totalorder %s21, %s24
    %p33 = scmp.eq.s32.totalorder %s16, 1
    %p34 = por %p32, %p33
    %p35 = scmp.ne.s32.totalorder %s24, %s25
    %p36 = scmp.eq.s32.totalorder %s16, 0
    %p37 = por %p35, %p36
    %p38 = scmp.ne.s32.totalorder %s24, %s25
    %p39 = scmp.eq.s32.totalorder %s17, 1
    %p40 = por %p38, %p39
    %p42 = scmp.ne.s32.totalorder %s25, %s41
    %p43 = scmp.eq.s32.totalorder %s17, 0
    %p44 = por %p42, %p43
    %s45 = ssub.s32 %s11, %s18
    %p46 = scmp.eq.s32.totalorder %s45, 0
    %s48 = sadd.s32 %s47, 1
    %s49 = scalar_select %p46, %s47, %s48
    %p52 = pneg %p46
    %p53 = scmp.eq.s32.totalorder %s11, 1
    %p54 = por %p52, %p53
    %p55 = scmp.ne.s32.totalorder %s47, %s50
    %p56 = scmp.eq.s32.totalorder %s11, 0
    %p57 = por %p55, %p56
    %p58 = scmp.ne.s32.totalorder %s47, %s50
    %p59 = scmp.eq.s32.totalorder %s16, 1
    %p60 = por %p58, %p59
    %p61 = scmp.ne.s32.totalorder %s50, %s51
    %p62 = scmp.eq.s32.totalorder %s16, 0
    %p63 = por %p61, %p62
    %p64 = scmp.ne.s32.totalorder %s50, %s51
    %p65 = scmp.eq.s32.totalorder %s17, 1
    %p66 = por %p64, %p65
    %p68 = scmp.ne.s32.totalorder %s51, %s67
    %p69 = scmp.eq.s32.totalorder %s17, 0
    %p70 = por %p68, %p69
    %s72 = sadd.s32 %s71, 1
    %p75 = scmp.eq.s32.totalorder %s11, 1
    %p76 = scmp.ne.s32.totalorder %s71, %s73
    %p77 = scmp.eq.s32.totalorder %s11, 0
    %p78 = por %p76, %p77
    %p79 = scmp.ne.s32.totalorder %s71, %s73
    %p80 = scmp.eq.s32.totalorder %s16, 1
    %p81 = por %p79, %p80
    %p82 = scmp.ne.s32.totalorder %s73, %s74
    %p83 = scmp.eq.s32.totalorder %s16, 0
    %p84 = por %p82, %p83
    %p85 = scmp.ne.s32.totalorder %s73, %s74
    %p86 = scmp.eq.s32.totalorder %s17, 1
    %p87 = por %p85, %p86
    %p89 = scmp.ne.s32.totalorder %s74, %s88
    %p90 = scmp.eq.s32.totalorder %s17, 0
    %p91 = por %p89, %p90
    %s93 = sadd.s32 %s92, 1
    %p96 = scmp.eq.s32.totalorder %s11, 1
    %p97 = scmp.ne.s32.totalorder %s92, %s94
    %p98 = scmp.eq.s32.totalorder %s11, 0
    %p99 = por %p97, %p98
    %p100 = scmp.ne.s32.totalorder %s92, %s94
    %p101 = scmp.eq.s32.totalorder %s16, 1
    %p102 = por %p100, %p101
    %p103 = scmp.ne.s32.totalorder %s94, %s95
    %p104 = scmp.eq.s32.totalorder %s16, 0
    %p105 = por %p103, %p104
    %p106 = scmp.ne.s32.totalorder %s94, %s95
    %p107 = scmp.eq.s32.totalorder %s17, 1
    %p108 = por %p106, %p107
    %p110 = scmp.ne.s32.totalorder %s95, %s109
    %p111 = scmp.eq.s32.totalorder %s17, 0
    %p112 = por %p110, %p111
    %s114 = sadd.s32 %s113, 1
    %p117 = scmp.eq.s32.totalorder %s11, 1
    %p118 = scmp.ne.s32.totalorder %s113, %s115
    %p119 = scmp.eq.s32.totalorder %s11, 0
    %p120 = por %p118, %p119
    %p121 = scmp.ne.s32.totalorder %s113, %s115
    %p122 = scmp.eq.s32.totalorder %s16, 1
    %p123 = por %p121, %p122
    %p124 = scmp.ne.s32.totalorder %s115, %s116
    %p125 = scmp.eq.s32.totalorder %s16, 0
    %p126 = por %p124, %p125
    %p127 = scmp.ne.s32.totalorder %s115, %s116
    %p128 = scmp.eq.s32.totalorder %s17, 1
    %p129 = por %p127, %p128
    %p131 = scmp.ne.s32.totalorder %s116, %s130
    %p132 = scmp.eq.s32.totalorder %s17, 0
    %p133 = por %p131, %p132
    %s134 = ssub.s32 %s11, %s18
    %p135 = scmp.eq.s32.totalorder %s134, 0
    %s137 = sadd.s32 %s136, 1
    %s138 = scalar_select %p135, %s136, %s137
    %p141 = pneg %p135
    %p142 = scmp.eq.s32.totalorder %s11, 1
    %p143 = por %p141, %p142
    %p144 = scmp.ne.s32.totalorder %s136, %s139
    %p145 = scmp.eq.s32.totalorder %s11, 0
    %p146 = por %p144, %p145
    %p147 = scmp.ne.s32.totalorder %s136, %s139
    %p148 = scmp.eq.s32.totalorder %s16, 1
    %p149 = por %p147, %p148
    %p150 = scmp.ne.s32.totalorder %s139, %s140
    %p151 = scmp.eq.s32.totalorder %s16, 0
    %p152 = por %p150, %p151
    %p153 = scmp.ne.s32.totalorder %s139, %s140
    %p154 = scmp.eq.s32.totalorder %s17, 1
    %p155 = por %p153, %p154
    %p157 = scmp.ne.s32.totalorder %s140, %s156
    %p158 = scmp.eq.s32.totalorder %s17, 0
    %p159 = por %p157, %p158
    %p160 = scmp.le.s32.totalorder 1, %s11
    %p161 = scmp.lt.s32.totalorder %s11, 3
    %p162 = pnand %p160, %p161
    %p163 = pneg %p162
    // Predicated region
    $region9: #{manifold_net_forward.1} parent=5 // pred_check
      _
    $region10: #{manifold_net_forward.1} parent=5 // pred_check_branch
      %165 = sbr.rel (%p162) target = $region12
    $region11: #{manifold_net_forward.1} parent=5 // pred_region
      %s166 = ssub.s32 %s11, 1
      // Predicated region
      $region13: #{manifold_net_forward.1} parent=11 // pred_check
        %p167 = pneg %p84
      $region14: #{manifold_net_forward.1} parent=11 // pred_check_branch
        %169 = sbr.rel (%p167) target = $region16
      $region15: #{manifold_net_forward.1} parent=11 // pred_region
        _
      $region16: #{manifold_net_forward.1} parent=11 // pred_fallthru
        _
      // Predicated region
      $region17: #{manifold_net_forward.1} parent=11 // pred_check
        %p170 = pneg %p105
      $region18: #{manifold_net_forward.1} parent=11 // pred_check_branch
        %172 = sbr.rel (%p170) target = $region20
      $region19: #{manifold_net_forward.1} parent=11 // pred_region
        _
      $region20: #{manifold_net_forward.1} parent=11 // pred_fallthru
        _
      // Predicated region
      $region21: #{manifold_net_forward.1} parent=11 // pred_check
        %p173 = pneg %p126
      $region22: #{manifold_net_forward.1} parent=11 // pred_check_branch
        %175 = sbr.rel (%p173) target = $region24
      $region23: #{manifold_net_forward.1} parent=11 // pred_region
        _
      $region24: #{manifold_net_forward.1} parent=11 // pred_fallthru
        _
    $region12: #{manifold_net_forward.1} parent=5 // pred_fallthru
      _
    %p176 = scmp.lt.s32.totalorder %s11, 2
    // Predicated region
    $region25: #{manifold_net_forward.1} parent=5 // pred_check
      %p177 = pneg %p176
    $region26: #{manifold_net_forward.1} parent=5 // pred_check_branch
      %179 = sbr.rel (%p177) target = $region28
    $region27: #{manifold_net_forward.1} parent=5 // pred_region
      // Predicated region
      $region29: #{manifold_net_forward.1} parent=27 // pred_check
        %p180 = pneg %p31
      $region30: #{manifold_net_forward.1} parent=27 // pred_check_branch
        %182 = sbr.rel (%p180) target = $region32
      $region31: #{manifold_net_forward.1} parent=27 // pred_region
        %p183 = scmp.lt.s32.totalorder %s11, 1
        %s184 = scalar_select %p183, %s11, 1
        %s185 = smul.addr %s184, 4
        %s186 = smul.addr %s185, 8
        %s187 = scalar_lea.vmem %s0, %s186
      $region32: #{manifold_net_forward.1} parent=27 // pred_fallthru
        _
      // Predicated region
      $region33: #{manifold_net_forward.1} parent=27 // pred_check
        %p188 = pneg %p57
      $region34: #{manifold_net_forward.1} parent=27 // pred_check_branch
        %190 = sbr.rel (%p188) target = $region36
      $region35: #{manifold_net_forward.1} parent=27 // pred_region
        %p191 = scmp.lt.s32.totalorder %s11, 1
        %s192 = scalar_select %p191, %s11, 1
        %s193 = smul.addr %s192, 12
        %s194 = smul.addr %s193, 8
        %s195 = scalar_lea.vmem %s1, %s194
      $region36: #{manifold_net_forward.1} parent=27 // pred_fallthru
        _
    $region28: #{manifold_net_forward.1} parent=5 // pred_fallthru
      _
    %p196 = scmp.le.s32.totalorder 1, %s11
    %p197 = scmp.lt.s32.totalorder %s11, 3
    %p198 = pnand %p196, %p197
    %p199 = pneg %p198
    // Predicated region
    $region37: #{manifold_net_forward.1} parent=5 // pred_check
      _
    $region38: #{manifold_net_forward.1} parent=5 // pred_check_branch
      %201 = sbr.rel (%p198) target = $region40
    $region39: #{manifold_net_forward.1} parent=5 // pred_region
      %s202 = ssub.s32 %s11, 1
      %p203 = scmp.lt.s32.totalorder %s16, 1
      %s204 = scalar_select %p203, %s16, 1
      %s205 = smul.addr %s204, 4
      %s206 = smul.addr %s205, 8
      %s207 = scalar_lea.vmem %s0, %s206
      %p208 = pneg %p37
      %p209 = pneg %p34
      %p210 = scmp.lt.s32.totalorder %s16, 1
      %s211 = scalar_select %p210, %s16, 1
      %s212 = smul.addr %s211, 12
      %s213 = smul.addr %s212, 8
      %s214 = scalar_lea.vmem %s1, %s213
      %p215 = pneg %p63
      %p216 = pneg %p60
      %p217 = pneg %p84
      %p218 = pneg %p81
      %p219 = pneg %p105
      %p220 = pneg %p102
      %p221 = pneg %p126
      %p222 = pneg %p123
      %p223 = pneg %p152
      %p224 = pneg %p149
      %p225 = scmp.lt.s32.totalorder %s16, 1
      %s226 = scalar_select %p225, %s16, 1
      %s227 = scalar_lea.vmem %s5, %s226
      %p228 = scmp.lt.s32.totalorder %s16, 1
      %s229 = scalar_select %p228, %s16, 1
      %s230 = smul.addr %s229, 4
      %s231 = smul.addr %s230, 8
      %s232 = scalar_lea.vmem %s0, %s231
      %p233 = scmp.lt.s32.totalorder %s16, 1
      %s234 = scalar_select %p233, %s16, 1
      %s235 = smul.addr %s234, 12
      %s236 = smul.addr %s235, 8
      %s237 = scalar_lea.vmem %s1, %s236
      %p238 = scmp.lt.s32.totalorder %s16, 1
      %s239 = scalar_select %p238, %s16, 1
      %s240 = scalar_lea.vmem %s5, %s239
      %v242 = vlaneseq
      %v243 = vand.u32 %v242, 127
      %v244 = vld [vmem:[%s232] sm:$0xff]
      %v245 = vld [vmem:[%s232 + $0x8] sm:$0xff]
      %v246 = vld [vmem:[%s232 + $0x10] sm:$0xff]
      %v247 = vld [vmem:[%s232 + $0x18] sm:$0xff]
      %248 = vset.pattern.permute.xlu0 0
      %249 = vperm.xlu0 %248, %v244
      %v250 = vpop.permute.xlu0 %249
      %251 = vset.pattern.permute.xlu0 0
      %252 = vperm.xlu0 %251, %v245
      %v253 = vpop.permute.xlu0 %252
      %254 = vset.pattern.permute.xlu0 0
      %255 = vperm.xlu0 %254, %v246
      %v256 = vpop.permute.xlu0 %255
      %257 = vset.pattern.permute.xlu0 0
      %258 = vperm.xlu0 %257, %v247
      %v259 = vpop.permute.xlu0 %258
      %vm260 = vcmp.eq.s32.totalorder %v250, %v243
      %vm261 = vcmp.eq.s32.totalorder %v253, %v243
      %vm262 = vcmp.eq.s32.totalorder %v256, %v243
      %vm263 = vcmp.eq.s32.totalorder %v259, %v243
      %v264 = vsel %vm260, 1, 0
      %v265 = vsel %vm261, 1, 0
      %v266 = vsel %vm262, 1, 0
      %v267 = vsel %vm263, 1, 0
      %v268 = vcvt.s32.f32 %v264
      %v269 = vcvt.s32.f32 %v265
      %v270 = vcvt.s32.f32 %v266
      %v271 = vcvt.s32.f32 %v267
      %272 = vset.pattern.permute.xlu0 1
      %273 = vperm.xlu0 %272, %v244
      %v274 = vpop.permute.xlu0 %273
      %275 = vset.pattern.permute.xlu0 1
      %276 = vperm.xlu0 %275, %v245
      %v277 = vpop.permute.xlu0 %276
      %278 = vset.pattern.permute.xlu0 1
      %279 = vperm.xlu0 %278, %v246
      %v280 = vpop.permute.xlu0 %279
      %281 = vset.pattern.permute.xlu0 1
      %282 = vperm.xlu0 %281, %v247
      %v283 = vpop.permute.xlu0 %282
      %vm284 = vcmp.eq.s32.totalorder %v274, %v243
      %vm285 = vcmp.eq.s32.totalorder %v277, %v243
      %vm286 = vcmp.eq.s32.totalorder %v280, %v243
      %vm287 = vcmp.eq.s32.totalorder %v283, %v243
      %v288 = vsel %vm284, 1, 0
      %v289 = vsel %vm285, 1, 0
      %v290 = vsel %vm286, 1, 0
      %v291 = vsel %vm287, 1, 0
      %v292 = vcvt.s32.f32 %v288
      %v293 = vcvt.s32.f32 %v289
      %v294 = vcvt.s32.f32 %v290
      %v295 = vcvt.s32.f32 %v291
      %296 = vset.pattern.permute.xlu0 2
      %297 = vperm.xlu0 %296, %v244
      %v298 = vpop.permute.xlu0 %297
      %299 = vset.pattern.permute.xlu0 2
      %300 = vperm.xlu0 %299, %v245
      %v301 = vpop.permute.xlu0 %300
      %302 = vset.pattern.permute.xlu0 2
      %303 = vperm.xlu0 %302, %v246
      %v304 = vpop.permute.xlu0 %303
      %305 = vset.pattern.permute.xlu0 2
      %306 = vperm.xlu0 %305, %v247
      %v307 = vpop.permute.xlu0 %306
      %vm308 = vcmp.eq.s32.totalorder %v298, %v243
      %vm309 = vcmp.eq.s32.totalorder %v301, %v243
      %vm310 = vcmp.eq.s32.totalorder %v304, %v243
      %vm311 = vcmp.eq.s32.totalorder %v307, %v243
      %v312 = vsel %vm308, 1, 0
      %v313 = vsel %vm309, 1, 0
      %v314 = vsel %vm310, 1, 0
      %v315 = vsel %vm311, 1, 0
      %v316 = vcvt.s32.f32 %v312
      %v317 = vcvt.s32.f32 %v313
      %v318 = vcvt.s32.f32 %v314
      %v319 = vcvt.s32.f32 %v315
      %320 = vset.pattern.permute.xlu0 3
      %321 = vperm.xlu0 %320, %v244
      %v322 = vpop.permute.xlu0 %321
      %323 = vset.pattern.permute.xlu0 3
      %324 = vperm.xlu0 %323, %v245
      %v325 = vpop.permute.xlu0 %324
      %326 = vset.pattern.permute.xlu0 3
      %327 = vperm.xlu0 %326, %v246
      %v328 = vpop.permute.xlu0 %327
      %329 = vset.pattern.permute.xlu0 3
      %330 = vperm.xlu0 %329, %v247
      %v331 = vpop.permute.xlu0 %330
      %vm332 = vcmp.eq.s32.totalorder %v322, %v243
      %vm333 = vcmp.eq.s32.totalorder %v325, %v243
      %vm334 = vcmp.eq.s32.totalorder %v328, %v243
      %vm335 = vcmp.eq.s32.totalorder %v331, %v243
      %v336 = vsel %vm332, 1, 0
      %v337 = vsel %vm333, 1, 0
      %v338 = vsel %vm334, 1, 0
      %v339 = vsel %vm335, 1, 0
      %v340 = vcvt.s32.f32 %v336
      %v341 = vcvt.s32.f32 %v337
      %v342 = vcvt.s32.f32 %v338
      %v343 = vcvt.s32.f32 %v339
      %344 = vset.pattern.permute.xlu0 4
      %345 = vperm.xlu0 %344, %v244
      %v346 = vpop.permute.xlu0 %345
      %347 = vset.pattern.permute.xlu0 4
      %348 = vperm.xlu0 %347, %v245
      %v349 = vpop.permute.xlu0 %348
      %350 = vset.pattern.permute.xlu0 4
      %351 = vperm.xlu0 %350, %v246
      %v352 = vpop.permute.xlu0 %351
      %353 = vset.pattern.permute.xlu0 4
      %354 = vperm.xlu0 %353, %v247
      %v355 = vpop.permute.xlu0 %354
      %vm356 = vcmp.eq.s32.totalorder %v346, %v243
      %vm357 = vcmp.eq.s32.totalorder %v349, %v243
      %vm358 = vcmp.eq.s32.totalorder %v352, %v243
      %vm359 = vcmp.eq.s32.totalorder %v355, %v243
      %v360 = vsel %vm356, 1, 0
      %v361 = vsel %vm357, 1, 0
      %v362 = vsel %vm358, 1, 0
      %v363 = vsel %vm359, 1, 0
      %v364 = vcvt.s32.f32 %v360
      %v365 = vcvt.s32.f32 %v361
      %v366 = vcvt.s32.f32 %v362
      %v367 = vcvt.s32.f32 %v363
      %368 = vset.pattern.permute.xlu0 5
      %369 = vperm.xlu0 %368, %v244
      %v370 = vpop.permute.xlu0 %369
      %371 = vset.pattern.permute.xlu0 5
      %372 = vperm.xlu0 %371, %v245
      %v373 = vpop.permute.xlu0 %372
      %374 = vset.pattern.permute.xlu0 5
      %375 = vperm.xlu0 %374, %v246
      %v376 = vpop.permute.xlu0 %375
      %377 = vset.pattern.permute.xlu0 5
      %378 = vperm.xlu0 %377, %v247
      %v379 = vpop.permute.xlu0 %378
      %vm380 = vcmp.eq.s32.totalorder %v370, %v243
      %vm381 = vcmp.eq.s32.totalorder %v373, %v243
      %vm382 = vcmp.eq.s32.totalorder %v376, %v243
      %vm383 = vcmp.eq.s32.totalorder %v379, %v243
      %v384 = vsel %vm380, 1, 0
      %v385 = vsel %vm381, 1, 0
      %v386 = vsel %vm382, 1, 0
      %v387 = vsel %vm383, 1, 0
      %v388 = vcvt.s32.f32 %v384
      %v389 = vcvt.s32.f32 %v385
      %v390 = vcvt.s32.f32 %v386
      %v391 = vcvt.s32.f32 %v387
      %392 = vset.pattern.permute.xlu0 6
      %393 = vperm.xlu0 %392, %v244
      %v394 = vpop.permute.xlu0 %393
      %395 = vset.pattern.permute.xlu0 6
      %396 = vperm.xlu0 %395, %v245
      %v397 = vpop.permute.xlu0 %396
      %398 = vset.pattern.permute.xlu0 6
      %399 = vperm.xlu0 %398, %v246
      %v400 = vpop.permute.xlu0 %399
      %401 = vset.pattern.permute.xlu0 6
      %402 = vperm.xlu0 %401, %v247
      %v403 = vpop.permute.xlu0 %402
      %vm404 = vcmp.eq.s32.totalorder %v394, %v243
      %vm405 = vcmp.eq.s32.totalorder %v397, %v243
      %vm406 = vcmp.eq.s32.totalorder %v400, %v243
      %vm407 = vcmp.eq.s32.totalorder %v403, %v243
      %v408 = vsel %vm404, 1, 0
      %v409 = vsel %vm405, 1, 0
      %v410 = vsel %vm406, 1, 0
      %v411 = vsel %vm407, 1, 0
      %v412 = vcvt.s32.f32 %v408
      %v413 = vcvt.s32.f32 %v409
      %v414 = vcvt.s32.f32 %v410
      %v415 = vcvt.s32.f32 %v411
      %416 = vset.pattern.permute.xlu0 7
      %417 = vperm.xlu0 %416, %v244
      %v418 = vpop.permute.xlu0 %417
      %419 = vset.pattern.permute.xlu0 7
      %420 = vperm.xlu0 %419, %v245
      %v421 = vpop.permute.xlu0 %420
      %422 = vset.pattern.permute.xlu0 7
      %423 = vperm.xlu0 %422, %v246
      %v424 = vpop.permute.xlu0 %423
      %425 = vset.pattern.permute.xlu0 7
      %426 = vperm.xlu0 %425, %v247
      %v427 = vpop.permute.xlu0 %426
      %vm428 = vcmp.eq.s32.totalorder %v418, %v243
      %vm429 = vcmp.eq.s32.totalorder %v421, %v243
      %vm430 = vcmp.eq.s32.totalorder %v424, %v243
      %vm431 = vcmp.eq.s32.totalorder %v427, %v243
      %v432 = vsel %vm428, 1, 0
      %v433 = vsel %vm429, 1, 0
      %v434 = vsel %vm430, 1, 0
      %v435 = vsel %vm431, 1, 0
      %v436 = vcvt.s32.f32 %v432
      %v437 = vcvt.s32.f32 %v433
      %v438 = vcvt.s32.f32 %v434
      %v439 = vcvt.s32.f32 %v435
      %v440 = vld [vmem:[%s237] sm:$0xff]
      %v441 = vld [vmem:[%s237 + $0x8] sm:$0xff]
      %v442 = vld [vmem:[%s237 + $0x10] sm:$0xff]
      %v443 = vld [vmem:[%s237 + $0x18] sm:$0xff]
      %s444 = scalar_lea.vmem %s237, 32
      %v445 = vld [vmem:[%s444] sm:$0xff]
      %v446 = vld [vmem:[%s444 + $0x8] sm:$0xff]
      %v447 = vld [vmem:[%s444 + $0x10] sm:$0xff]
      %v448 = vld [vmem:[%s444 + $0x18] sm:$0xff]
      %s449 = scalar_lea.vmem %s237, 64
      %v450 = vld [vmem:[%s449] sm:$0xff]
      %v451 = vld [vmem:[%s449 + $0x8] sm:$0xff]
      %v452 = vld [vmem:[%s449 + $0x10] sm:$0xff]
      %v453 = vld [vmem:[%s449 + $0x18] sm:$0xff]
      %v454 = vld [vmem:[%s2] sm:$0xf]
      %459 = vrot.lane.b32.xlu0 %v445, 1
      %v460 = vpop.permute.xlu0 %459
      %461 = vrot.lane.b32.xlu0 %v446, 1
      %v462 = vpop.permute.xlu0 %461
      %463 = vrot.lane.b32.xlu0 %v447, 1
      %v464 = vpop.permute.xlu0 %463
      %465 = vrot.lane.b32.xlu0 %v448, 1
      %v466 = vpop.permute.xlu0 %465
      %475 = vrot.lane.b32.xlu0 %v450, 2
      %v476 = vpop.permute.xlu0 %475
      %477 = vrot.lane.b32.xlu0 %v451, 2
      %v478 = vpop.permute.xlu0 %477
      %479 = vrot.lane.b32.xlu0 %v452, 2
      %v480 = vpop.permute.xlu0 %479
      %481 = vrot.lane.b32.xlu0 %v453, 2
      %v482 = vpop.permute.xlu0 %481
      %vm487 = vcmask 7168
      %v488 = vsel %vm487, %v440, %v460
      %v489 = vsel %vm487, %v441, %v462
      %v490 = vsel %vm487, %v442, %v464
      %v491 = vsel %vm487, %v443, %v466
      %vm492 = vcmask 15360
      %v493 = vsel %vm492, %v488, %v476
      %v494 = vsel %vm492, %v489, %v478
      %v495 = vsel %vm492, %v490, %v480
      %v496 = vsel %vm492, %v491, %v482
      %vm497 = vcmask 261120
      %v499 = vsel %vm497, %v268, 0
      %v502 = vsel %vm497, %v269, 0
      %v505 = vsel %vm497, %v270, 0
      %v508 = vsel %vm497, %v271, 0
      %510 = vmatpush.msra.mxu0 0.0
      %511 = vmatpush.msra.mxu0 0.0
      %512 = vmatpush.msra.mxu0 0.0
      %513 = vmatpush.msra.mxu0 0.0
      %514 = vmatpush.msra.mxu0 0.0
      %515 = vmatpush.msra.mxu0 0.0
      %516 = vmatpush.msra.mxu0 0.0
      %517 = vmatpush.msra.mxu0 0.0
      %518 = vmatpush.msra.mxu0 0.0
      %519 = vmatpush.msra.mxu0 0.0
      %520 = vmatpush.msra.mxu0 0.0
      %521 = vmatpush.msra.mxu0 0.0
      %522 = vmatpush.msra.mxu0 %v496
      %523 = vmatpush.msra.mxu0 %v495
      %524 = vmatpush.msra.mxu0 %v494
      %525 = vmatpush.msra.mxu0 %v493
      %526 = vmatmul.f32.gmra.mxu0 %v499
      %v527 = vpop.f32.mrf.mxu0
      %v528 = vadd.f32 0.0, %v527
      %529 = vmatmul.f32.gmra.mxu0 %v502
      %v530 = vpop.f32.mrf.mxu0
      %v531 = vadd.f32 0.0, %v530
      %532 = vmatmul.f32.gmra.mxu0 %v505
      %v533 = vpop.f32.mrf.mxu0
      %v534 = vadd.f32 0.0, %v533
      %535 = vmatmul.f32.gmra.mxu0 %v508
      %v536 = vpop.f32.mrf.mxu0
      %v537 = vadd.f32 0.0, %v536
      %538 = vdwg.mxu0
      %v540 = vsel %vm497, %v292, 0
      %v543 = vsel %vm497, %v293, 0
      %v546 = vsel %vm497, %v294, 0
      %v549 = vsel %vm497, %v295, 0
      %551 = vmatpush.msra.mxu0 0.0
      %552 = vmatpush.msra.mxu0 0.0
      %553 = vmatpush.msra.mxu0 0.0
      %554 = vmatpush.msra.mxu0 0.0
      %555 = vmatpush.msra.mxu0 0.0
      %556 = vmatpush.msra.mxu0 0.0
      %557 = vmatpush.msra.mxu0 0.0
      %558 = vmatpush.msra.mxu0 0.0
      %559 = vmatpush.msra.mxu0 0.0
      %560 = vmatpush.msra.mxu0 0.0
      %561 = vmatpush.msra.mxu0 0.0
      %562 = vmatpush.msra.mxu0 0.0
      %563 = vmatpush.msra.mxu0 %v496
      %564 = vmatpush.msra.mxu0 %v495
      %565 = vmatpush.msra.mxu0 %v494
      %566 = vmatpush.msra.mxu0 %v493
      %567 = vmatmul.f32.gmra.mxu0 %v540
      %v568 = vpop.f32.mrf.mxu0
      %v569 = vadd.f32 0.0, %v568
      %570 = vmatmul.f32.gmra.mxu0 %v543
      %v571 = vpop.f32.mrf.mxu0
      %v572 = vadd.f32 0.0, %v571
      %573 = vmatmul.f32.gmra.mxu0 %v546
      %v574 = vpop.f32.mrf.mxu0
      %v575 = vadd.f32 0.0, %v574
      %576 = vmatmul.f32.gmra.mxu0 %v549
      %v577 = vpop.f32.mrf.mxu0
      %v578 = vadd.f32 0.0, %v577
      %579 = vdwg.mxu0
      %v581 = vsel %vm497, %v316, 0
      %v584 = vsel %vm497, %v317, 0
      %v587 = vsel %vm497, %v318, 0
      %v590 = vsel %vm497, %v319, 0
      %592 = vmatpush.msra.mxu0 0.0
      %593 = vmatpush.msra.mxu0 0.0
      %594 = vmatpush.msra.mxu0 0.0
      %595 = vmatpush.msra.mxu0 0.0
      %596 = vmatpush.msra.mxu0 0.0
      %597 = vmatpush.msra.mxu0 0.0
      %598 = vmatpush.msra.mxu0 0.0
      %599 = vmatpush.msra.mxu0 0.0
      %600 = vmatpush.msra.mxu0 0.0
      %601 = vmatpush.msra.mxu0 0.0
      %602 = vmatpush.msra.mxu0 0.0
      %603 = vmatpush.msra.mxu0 0.0
      %604 = vmatpush.msra.mxu0 %v496
      %605 = vmatpush.msra.mxu0 %v495
      %606 = vmatpush.msra.mxu0 %v494
      %607 = vmatpush.msra.mxu0 %v493
      %608 = vmatmul.f32.gmra.mxu0 %v581
      %v609 = vpop.f32.mrf.mxu0
      %v610 = vadd.f32 0.0, %v609
      %611 = vmatmul.f32.gmra.mxu0 %v584
      %v612 = vpop.f32.mrf.mxu0
      %v613 = vadd.f32 0.0, %v612
      %614 = vmatmul.f32.gmra.mxu0 %v587
      %v615 = vpop.f32.mrf.mxu0
      %v616 = vadd.f32 0.0, %v615
      %617 = vmatmul.f32.gmra.mxu0 %v590
      %v618 = vpop.f32.mrf.mxu0
      %v619 = vadd.f32 0.0, %v618
      %620 = vdwg.mxu0
      %v622 = vsel %vm497, %v340, 0
      %v625 = vsel %vm497, %v341, 0
      %v628 = vsel %vm497, %v342, 0
      %v631 = vsel %vm497, %v343, 0
      %633 = vmatpush.msra.mxu0 0.0
      %634 = vmatpush.msra.mxu0 0.0
      %635 = vmatpush.msra.mxu0 0.0
      %636 = vmatpush.msra.mxu0 0.0
      %637 = vmatpush.msra.mxu0 0.0
      %638 = vmatpush.msra.mxu0 0.0
      %639 = vmatpush.msra.mxu0 0.0
      %640 = vmatpush.msra.mxu0 0.0
      %641 = vmatpush.msra.mxu0 0.0
      %642 = vmatpush.msra.mxu0 0.0
      %643 = vmatpush.msra.mxu0 0.0
      %644 = vmatpush.msra.mxu0 0.0
      %645 = vmatpush.msra.mxu0 %v496
      %646 = vmatpush.msra.mxu0 %v495
      %647 = vmatpush.msra.mxu0 %v494
      %648 = vmatpush.msra.mxu0 %v493
      %649 = vmatmul.f32.gmra.mxu0 %v622
      %v650 = vpop.f32.mrf.mxu0
      %v651 = vadd.f32 0.0, %v650
      %652 = vmatmul.f32.gmra.mxu0 %v625
      %v653 = vpop.f32.mrf.mxu0
      %v654 = vadd.f32 0.0, %v653
      %655 = vmatmul.f32.gmra.mxu0 %v628
      %v656 = vpop.f32.mrf.mxu0
      %v657 = vadd.f32 0.0, %v656
      %658 = vmatmul.f32.gmra.mxu0 %v631
      %v659 = vpop.f32.mrf.mxu0
      %v660 = vadd.f32 0.0, %v659
      %661 = vdwg.mxu0
      %v663 = vsel %vm497, %v364, 0
      %v666 = vsel %vm497, %v365, 0
      %v669 = vsel %vm497, %v366, 0
      %v672 = vsel %vm497, %v367, 0
      %674 = vmatpush.msra.mxu0 0.0
      %675 = vmatpush.msra.mxu0 0.0
      %676 = vmatpush.msra.mxu0 0.0
      %677 = vmatpush.msra.mxu0 0.0
      %678 = vmatpush.msra.mxu0 0.0
      %679 = vmatpush.msra.mxu0 0.0
      %680 = vmatpush.msra.mxu0 0.0
      %681 = vmatpush.msra.mxu0 0.0
      %682 = vmatpush.msra.mxu0 0.0
      %683 = vmatpush.msra.mxu0 0.0
      %684 = vmatpush.msra.mxu0 0.0
      %685 = vmatpush.msra.mxu0 0.0
      %686 = vmatpush.msra.mxu0 %v496
      %687 = vmatpush.msra.mxu0 %v495
      %688 = vmatpush.msra.mxu0 %v494
      %689 = vmatpush.msra.mxu0 %v493
      %690 = vmatmul.f32.gmra.mxu0 %v663
      %v691 = vpop.f32.mrf.mxu0
      %v692 = vadd.f32 0.0, %v691
      %693 = vmatmul.f32.gmra.mxu0 %v666
      %v694 = vpop.f32.mrf.mxu0
      %v695 = vadd.f32 0.0, %v694
      %696 = vmatmul.f32.gmra.mxu0 %v669
      %v697 = vpop.f32.mrf.mxu0
      %v698 = vadd.f32 0.0, %v697
      %699 = vmatmul.f32.gmra.mxu0 %v672
      %v700 = vpop.f32.mrf.mxu0
      %v701 = vadd.f32 0.0, %v700
      %702 = vdwg.mxu0
      %v704 = vsel %vm497, %v388, 0
      %v707 = vsel %vm497, %v389, 0
      %v710 = vsel %vm497, %v390, 0
      %v713 = vsel %vm497, %v391, 0
      %715 = vmatpush.msra.mxu0 0.0
      %716 = vmatpush.msra.mxu0 0.0
      %717 = vmatpush.msra.mxu0 0.0
      %718 = vmatpush.msra.mxu0 0.0
      %719 = vmatpush.msra.mxu0 0.0
      %720 = vmatpush.msra.mxu0 0.0
      %721 = vmatpush.msra.mxu0 0.0
      %722 = vmatpush.msra.mxu0 0.0
      %723 = vmatpush.msra.mxu0 0.0
      %724 = vmatpush.msra.mxu0 0.0
      %725 = vmatpush.msra.mxu0 0.0
      %726 = vmatpush.msra.mxu0 0.0
      %727 = vmatpush.msra.mxu0 %v496
      %728 = vmatpush.msra.mxu0 %v495
      %729 = vmatpush.msra.mxu0 %v494
      %730 = vmatpush.msra.mxu0 %v493
      %731 = vmatmul.f32.gmra.mxu0 %v704
      %v732 = vpop.f32.mrf.mxu0
      %v733 = vadd.f32 0.0, %v732
      %734 = vmatmul.f32.gmra.mxu0 %v707
      %v735 = vpop.f32.mrf.mxu0
      %v736 = vadd.f32 0.0, %v735
      %737 = vmatmul.f32.gmra.mxu0 %v710
      %v738 = vpop.f32.mrf.mxu0
      %v739 = vadd.f32 0.0, %v738
      %740 = vmatmul.f32.gmra.mxu0 %v713
      %v741 = vpop.f32.mrf.mxu0
      %v742 = vadd.f32 0.0, %v741
      %743 = vdwg.mxu0
      %v745 = vsel %vm497, %v412, 0
      %v748 = vsel %vm497, %v413, 0
      %v751 = vsel %vm497, %v414, 0
      %v754 = vsel %vm497, %v415, 0
      %756 = vmatpush.msra.mxu0 0.0
      %757 = vmatpush.msra.mxu0 0.0
      %758 = vmatpush.msra.mxu0 0.0
      %759 = vmatpush.msra.mxu0 0.0
      %760 = vmatpush.msra.mxu0 0.0
      %761 = vmatpush.msra.mxu0 0.0
      %762 = vmatpush.msra.mxu0 0.0
      %763 = vmatpush.msra.mxu0 0.0
      %764 = vmatpush.msra.mxu0 0.0
      %765 = vmatpush.msra.mxu0 0.0
      %766 = vmatpush.msra.mxu0 0.0
      %767 = vmatpush.msra.mxu0 0.0
      %768 = vmatpush.msra.mxu0 %v496
      %769 = vmatpush.msra.mxu0 %v495
      %770 = vmatpush.msra.mxu0 %v494
      %771 = vmatpush.msra.mxu0 %v493
      %772 = vmatmul.f32.gmra.mxu0 %v745
      %v773 = vpop.f32.mrf.mxu0
      %v774 = vadd.f32 0.0, %v773
      %775 = vmatmul.f32.gmra.mxu0 %v748
      %v776 = vpop.f32.mrf.mxu0
      %v777 = vadd.f32 0.0, %v776
      %778 = vmatmul.f32.gmra.mxu0 %v751
      %v779 = vpop.f32.mrf.mxu0
      %v780 = vadd.f32 0.0, %v779
      %781 = vmatmul.f32.gmra.mxu0 %v754
      %v782 = vpop.f32.mrf.mxu0
      %v783 = vadd.f32 0.0, %v782
      %784 = vdwg.mxu0
      %v786 = vsel %vm497, %v436, 0
      %v789 = vsel %vm497, %v437, 0
      %v792 = vsel %vm497, %v438, 0
      %v795 = vsel %vm497, %v439, 0
      %797 = vmatpush.msra.mxu0 0.0
      %798 = vmatpush.msra.mxu0 0.0
      %799 = vmatpush.msra.mxu0 0.0
      %800 = vmatpush.msra.mxu0 0.0
      %801 = vmatpush.msra.mxu0 0.0
      %802 = vmatpush.msra.mxu0 0.0
      %803 = vmatpush.msra.mxu0 0.0
      %804 = vmatpush.msra.mxu0 0.0
      %805 = vmatpush.msra.mxu0 0.0
      %806 = vmatpush.msra.mxu0 0.0
      %807 = vmatpush.msra.mxu0 0.0
      %808 = vmatpush.msra.mxu0 0.0
      %809 = vmatpush.msra.mxu0 %v496
      %810 = vmatpush.msra.mxu0 %v495
      %811 = vmatpush.msra.mxu0 %v494
      %812 = vmatpush.msra.mxu0 %v493
      %813 = vmatmul.f32.gmra.mxu0 %v786
      %v814 = vpop.f32.mrf.mxu0
      %v815 = vadd.f32 0.0, %v814
      %816 = vmatmul.f32.gmra.mxu0 %v789
      %v817 = vpop.f32.mrf.mxu0
      %v818 = vadd.f32 0.0, %v817
      %819 = vmatmul.f32.gmra.mxu0 %v792
      %v820 = vpop.f32.mrf.mxu0
      %v821 = vadd.f32 0.0, %v820
      %822 = vmatmul.f32.gmra.mxu0 %v795
      %v823 = vpop.f32.mrf.mxu0
      %v824 = vadd.f32 0.0, %v823
      %825 = vdwg.mxu0
      %830 = vrot.lane.b32.xlu0 %v569, 1
      %v831 = vpop.permute.xlu0 %830
      %832 = vrot.lane.b32.xlu0 %v572, 1
      %v833 = vpop.permute.xlu0 %832
      %834 = vrot.lane.b32.xlu0 %v575, 1
      %v835 = vpop.permute.xlu0 %834
      %836 = vrot.lane.b32.xlu0 %v578, 1
      %v837 = vpop.permute.xlu0 %836
      %846 = vrot.lane.b32.xlu0 %v610, 2
      %v847 = vpop.permute.xlu0 %846
      %848 = vrot.lane.b32.xlu0 %v613, 2
      %v849 = vpop.permute.xlu0 %848
      %850 = vrot.lane.b32.xlu0 %v616, 2
      %v851 = vpop.permute.xlu0 %850
      %852 = vrot.lane.b32.xlu0 %v619, 2
      %v853 = vpop.permute.xlu0 %852
      %862 = vrot.lane.b32.xlu0 %v651, 3
      %v863 = vpop.permute.xlu0 %862
      %864 = vrot.lane.b32.xlu0 %v654, 3
      %v865 = vpop.permute.xlu0 %864
      %866 = vrot.lane.b32.xlu0 %v657, 3
      %v867 = vpop.permute.xlu0 %866
      %868 = vrot.lane.b32.xlu0 %v660, 3
      %v869 = vpop.permute.xlu0 %868
      %878 = vrot.lane.b32.xlu0 %v692, 4
      %v879 = vpop.permute.xlu0 %878
      %880 = vrot.lane.b32.xlu0 %v695, 4
      %v881 = vpop.permute.xlu0 %880
      %882 = vrot.lane.b32.xlu0 %v698, 4
      %v883 = vpop.permute.xlu0 %882
      %884 = vrot.lane.b32.xlu0 %v701, 4
      %v885 = vpop.permute.xlu0 %884
      %894 = vrot.lane.b32.xlu0 %v733, 5
      %v895 = vpop.permute.xlu0 %894
      %896 = vrot.lane.b32.xlu0 %v736, 5
      %v897 = vpop.permute.xlu0 %896
      %898 = vrot.lane.b32.xlu0 %v739, 5
      %v899 = vpop.permute.xlu0 %898
      %900 = vrot.lane.b32.xlu0 %v742, 5
      %v901 = vpop.permute.xlu0 %900
      %910 = vrot.lane.b32.xlu0 %v774, 6
      %v911 = vpop.permute.xlu0 %910
      %912 = vrot.lane.b32.xlu0 %v777, 6
      %v913 = vpop.permute.xlu0 %912
      %914 = vrot.lane.b32.xlu0 %v780, 6
      %v915 = vpop.permute.xlu0 %914
      %916 = vrot.lane.b32.xlu0 %v783, 6
      %v917 = vpop.permute.xlu0 %916
      %926 = vrot.lane.b32.xlu0 %v815, 7
      %v927 = vpop.permute.xlu0 %926
      %928 = vrot.lane.b32.xlu0 %v818, 7
      %v929 = vpop.permute.xlu0 %928
      %930 = vrot.lane.b32.xlu0 %v821, 7
      %v931 = vpop.permute.xlu0 %930
      %932 = vrot.lane.b32.xlu0 %v824, 7
      %v933 = vpop.permute.xlu0 %932
      %v938 = vsel %vm487, %v528, %v831
      %v939 = vsel %vm487, %v531, %v833
      %v940 = vsel %vm487, %v534, %v835
      %v941 = vsel %vm487, %v537, %v837
      %v942 = vsel %vm492, %v938, %v847
      %v943 = vsel %vm492, %v939, %v849
      %v944 = vsel %vm492, %v940, %v851
      %v945 = vsel %vm492, %v941, %v853
      %vm946 = vcmask 23552
      %v947 = vsel %vm946, %v942, %v863
      %v948 = vsel %vm946, %v943, %v865
      %v949 = vsel %vm946, %v944, %v867
      %v950 = vsel %vm946, %v945, %v869
      %vm951 = vcmask 31744
      %v952 = vsel %vm951, %v947, %v879
      %v953 = vsel %vm951, %v948, %v881
      %v954 = vsel %vm951, %v949, %v883
      %v955 = vsel %vm951, %v950, %v885
      %vm956 = vcmask 39936
      %v957 = vsel %vm956, %v952, %v895
      %v958 = vsel %vm956, %v953, %v897
      %v959 = vsel %vm956, %v954, %v899
      %v960 = vsel %vm956, %v955, %v901
      %vm961 = vcmask 48128
      %v962 = vsel %vm961, %v957, %v911
      %v963 = vsel %vm961, %v958, %v913
      %v964 = vsel %vm961, %v959, %v915
      %v965 = vsel %vm961, %v960, %v917
      %vm966 = vcmask 56320
      %v967 = vsel %vm966, %v962, %v927
      %v968 = vsel %vm966, %v963, %v929
      %v969 = vsel %vm966, %v964, %v931
      %v970 = vsel %vm966, %v965, %v933
      %v971 = vpack.c.bf16 %v968, %v967
      %v972 = vpack.c.bf16 %v970, %v969
      %vm973 = vcmask 64512
      %v975 = vsel %vm973, %v971, 0
      %v978 = vsel %vm973, %v972, 0
      %vm980 = vcmask 1043456
      %v982 = vsel %vm980, %v454, 0
      %984 = vmatpush.bf16.msra.mxu0 0
      %985 = vmatpush.bf16.msra.mxu0 0
      %986 = vmatpush.bf16.msra.mxu0 0
      %987 = vmatpush.bf16.msra.mxu0 0
      %988 = vmatpush.bf16.msra.mxu0 0
      %989 = vmatpush.bf16.msra.mxu0 0
      %990 = vmatpush.bf16.msra.mxu0 0
      %991 = vmatpush.bf16.msra.mxu0 %v982
      %992 = vmatmul.bf16.gmra.mxu0 %v975
      %v993 = vpop.f32.mrf.mxu0
      %v994 = vadd.f32 0.0, %v993
      %v995 = vpop.f32.mrf.mxu0
      %v996 = vadd.f32 0.0, %v995
      %997 = vmatmul.bf16.gmra.mxu0 %v978
      %v998 = vpop.f32.mrf.mxu0
      %v999 = vadd.f32 0.0, %v998
      %v1000 = vpop.f32.mrf.mxu0
      %v1001 = vadd.f32 0.0, %v1000
      %1002 = vdwg.mxu0
      %1007 = vrot.lane.b32.xlu0 %v528, 127
      %v1008 = vpop.permute.xlu0 %1007
      %1009 = vrot.lane.b32.xlu0 %v531, 127
      %v1010 = vpop.permute.xlu0 %1009
      %1011 = vrot.lane.b32.xlu0 %v534, 127
      %v1012 = vpop.permute.xlu0 %1011
      %1013 = vrot.lane.b32.xlu0 %v537, 127
      %v1014 = vpop.permute.xlu0 %1013
      %1019 = vrot.lane.b32.xlu0 %v610, 1
      %v1020 = vpop.permute.xlu0 %1019
      %1021 = vrot.lane.b32.xlu0 %v613, 1
      %v1022 = vpop.permute.xlu0 %1021
      %1023 = vrot.lane.b32.xlu0 %v616, 1
      %v1024 = vpop.permute.xlu0 %1023
      %1025 = vrot.lane.b32.xlu0 %v619, 1
      %v1026 = vpop.permute.xlu0 %1025
      %1031 = vrot.lane.b32.xlu0 %v651, 2
      %v1032 = vpop.permute.xlu0 %1031
      %1033 = vrot.lane.b32.xlu0 %v654, 2
      %v1034 = vpop.permute.xlu0 %1033
      %1035 = vrot.lane.b32.xlu0 %v657, 2
      %v1036 = vpop.permute.xlu0 %1035
      %1037 = vrot.lane.b32.xlu0 %v660, 2
      %v1038 = vpop.permute.xlu0 %1037
      %1043 = vrot.lane.b32.xlu0 %v692, 3
      %v1044 = vpop.permute.xlu0 %1043
      %1045 = vrot.lane.b32.xlu0 %v695, 3
      %v1046 = vpop.permute.xlu0 %1045
      %1047 = vrot.lane.b32.xlu0 %v698, 3
      %v1048 = vpop.permute.xlu0 %1047
      %1049 = vrot.lane.b32.xlu0 %v701, 3
      %v1050 = vpop.permute.xlu0 %1049
      %1055 = vrot.lane.b32.xlu0 %v733, 4
      %v1056 = vpop.permute.xlu0 %1055
      %1057 = vrot.lane.b32.xlu0 %v736, 4
      %v1058 = vpop.permute.xlu0 %1057
      %1059 = vrot.lane.b32.xlu0 %v739, 4
      %v1060 = vpop.permute.xlu0 %1059
      %1061 = vrot.lane.b32.xlu0 %v742, 4
      %v1062 = vpop.permute.xlu0 %1061
      %1067 = vrot.lane.b32.xlu0 %v774, 5
      %v1068 = vpop.permute.xlu0 %1067
      %1069 = vrot.lane.b32.xlu0 %v777, 5
      %v1070 = vpop.permute.xlu0 %1069
      %1071 = vrot.lane.b32.xlu0 %v780, 5
      %v1072 = vpop.permute.xlu0 %1071
      %1073 = vrot.lane.b32.xlu0 %v783, 5
      %v1074 = vpop.permute.xlu0 %1073
      %1079 = vrot.lane.b32.xlu0 %v815, 6
      %v1080 = vpop.permute.xlu0 %1079
      %1081 = vrot.lane.b32.xlu0 %v818, 6
      %v1082 = vpop.permute.xlu0 %1081
      %1083 = vrot.lane.b32.xlu0 %v821, 6
      %v1084 = vpop.permute.xlu0 %1083
      %1085 = vrot.lane.b32.xlu0 %v824, 6
      %v1086 = vpop.permute.xlu0 %1085
      %v1091 = vsel %vm487, %v1008, %v569
      %v1092 = vsel %vm487, %v1010, %v572
      %v1093 = vsel %vm487, %v1012, %v575
      %v1094 = vsel %vm487, %v1014, %v578
      %v1095 = vsel %vm492, %v1091, %v1020
      %v1096 = vsel %vm492, %v1092, %v1022
      %v1097 = vsel %vm492, %v1093, %v1024
      %v1098 = vsel %vm492, %v1094, %v1026
      %v1099 = vsel %vm946, %v1095, %v1032
      %v1100 = vsel %vm946, %v1096, %v1034
      %v1101 = vsel %vm946, %v1097, %v1036
      %v1102 = vsel %vm946, %v1098, %v1038
      %v1103 = vsel %vm951, %v1099, %v1044
      %v1104 = vsel %vm951, %v1100, %v1046
      %v1105 = vsel %vm951, %v1101, %v1048
      %v1106 = vsel %vm951, %v1102, %v1050
      %v1107 = vsel %vm956, %v1103, %v1056
      %v1108 = vsel %vm956, %v1104, %v1058
      %v1109 = vsel %vm956, %v1105, %v1060
      %v1110 = vsel %vm956, %v1106, %v1062
      %v1111 = vsel %vm961, %v1107, %v1068
      %v1112 = vsel %vm961, %v1108, %v1070
      %v1113 = vsel %vm961, %v1109, %v1072
      %v1114 = vsel %vm961, %v1110, %v1074
      %v1115 = vsel %vm966, %v1111, %v1080
      %v1116 = vsel %vm966, %v1112, %v1082
      %v1117 = vsel %vm966, %v1113, %v1084
      %v1118 = vsel %vm966, %v1114, %v1086
      %v1119 = vpack.c.bf16 %v1116, %v1115
      %v1120 = vpack.c.bf16 %v1118, %v1117
      %v1122 = vsel %vm973, %v1119, 0
      %v1125 = vsel %vm973, %v1120, 0
      %1127 = vmatpush.bf16.msra.mxu0 0
      %1128 = vmatpush.bf16.msra.mxu0 0
      %1129 = vmatpush.bf16.msra.mxu0 0
      %1130 = vmatpush.bf16.msra.mxu0 0
      %1131 = vmatpush.bf16.msra.mxu0 0
      %1132 = vmatpush.bf16.msra.mxu0 0
      %1133 = vmatpush.bf16.msra.mxu0 0
      %1134 = vmatpush.bf16.msra.mxu0 %v982
      %1135 = vmatmul.bf16.gmra.mxu0 %v1122
      %v1136 = vpop.f32.mrf.mxu0
      %v1137 = vadd.f32 0.0, %v1136
      %v1138 = vpop.f32.mrf.mxu0
      %v1139 = vadd.f32 0.0, %v1138
      %1140 = vmatmul.bf16.gmra.mxu0 %v1125
      %v1141 = vpop.f32.mrf.mxu0
      %v1142 = vadd.f32 0.0, %v1141
      %v1143 = vpop.f32.mrf.mxu0
      %v1144 = vadd.f32 0.0, %v1143
      %1145 = vdwg.mxu0
      %1146 = vrot.lane.b32.xlu0 %v528, 126
      %v1147 = vpop.permute.xlu0 %1146
      %1148 = vrot.lane.b32.xlu0 %v531, 126
      %v1149 = vpop.permute.xlu0 %1148
      %1150 = vrot.lane.b32.xlu0 %v534, 126
      %v1151 = vpop.permute.xlu0 %1150
      %1152 = vrot.lane.b32.xlu0 %v537, 126
      %v1153 = vpop.permute.xlu0 %1152
      %1158 = vrot.lane.b32.xlu0 %v569, 127
      %v1159 = vpop.permute.xlu0 %1158
      %1160 = vrot.lane.b32.xlu0 %v572, 127
      %v1161 = vpop.permute.xlu0 %1160
      %1162 = vrot.lane.b32.xlu0 %v575, 127
      %v1163 = vpop.permute.xlu0 %1162
      %1164 = vrot.lane.b32.xlu0 %v578, 127
      %v1165 = vpop.permute.xlu0 %1164
      %1170 = vrot.lane.b32.xlu0 %v651, 1
      %v1171 = vpop.permute.xlu0 %1170
      %1172 = vrot.lane.b32.xlu0 %v654, 1
      %v1173 = vpop.permute.xlu0 %1172
      %1174 = vrot.lane.b32.xlu0 %v657, 1
      %v1175 = vpop.permute.xlu0 %1174
      %1176 = vrot.lane.b32.xlu0 %v660, 1
      %v1177 = vpop.permute.xlu0 %1176
      %1182 = vrot.lane.b32.xlu0 %v692, 2
      %v1183 = vpop.permute.xlu0 %1182
      %1184 = vrot.lane.b32.xlu0 %v695, 2
      %v1185 = vpop.permute.xlu0 %1184
      %1186 = vrot.lane.b32.xlu0 %v698, 2
      %v1187 = vpop.permute.xlu0 %1186
      %1188 = vrot.lane.b32.xlu0 %v701, 2
      %v1189 = vpop.permute.xlu0 %1188
      %1194 = vrot.lane.b32.xlu0 %v733, 3
      %v1195 = vpop.permute.xlu0 %1194
      %1196 = vrot.lane.b32.xlu0 %v736, 3
      %v1197 = vpop.permute.xlu0 %1196
      %1198 = vrot.lane.b32.xlu0 %v739, 3
      %v1199 = vpop.permute.xlu0 %1198
      %1200 = vrot.lane.b32.xlu0 %v742, 3
      %v1201 = vpop.permute.xlu0 %1200
      %1206 = vrot.lane.b32.xlu0 %v774, 4
      %v1207 = vpop.permute.xlu0 %1206
      %1208 = vrot.lane.b32.xlu0 %v777, 4
      %v1209 = vpop.permute.xlu0 %1208
      %1210 = vrot.lane.b32.xlu0 %v780, 4
      %v1211 = vpop.permute.xlu0 %1210
      %1212 = vrot.lane.b32.xlu0 %v783, 4
      %v1213 = vpop.permute.xlu0 %1212
      %1218 = vrot.lane.b32.xlu0 %v815, 5
      %v1219 = vpop.permute.xlu0 %1218
      %1220 = vrot.lane.b32.xlu0 %v818, 5
      %v1221 = vpop.permute.xlu0 %1220
      %1222 = vrot.lane.b32.xlu0 %v821, 5
      %v1223 = vpop.permute.xlu0 %1222
      %1224 = vrot.lane.b32.xlu0 %v824, 5
      %v1225 = vpop.permute.xlu0 %1224
      %v1230 = vsel %vm487, %v1147, %v1159
      %v1231 = vsel %vm487, %v1149, %v1161
      %v1232 = vsel %vm487, %v1151, %v1163
      %v1233 = vsel %vm487, %v1153, %v1165
      %v1234 = vsel %vm492, %v1230, %v610
      %v1235 = vsel %vm492, %v1231, %v613
      %v1236 = vsel %vm492, %v1232, %v616
      %v1237 = vsel %vm492, %v1233, %v619
      %v1238 = vsel %vm946, %v1234, %v1171
      %v1239 = vsel %vm946, %v1235, %v1173
      %v1240 = vsel %vm946, %v1236, %v1175
      %v1241 = vsel %vm946, %v1237, %v1177
      %v1242 = vsel %vm951, %v1238, %v1183
      %v1243 = vsel %vm951, %v1239, %v1185
      %v1244 = vsel %vm951, %v1240, %v1187
      %v1245 = vsel %vm951, %v1241, %v1189
      %v1246 = vsel %vm956, %v1242, %v1195
      %v1247 = vsel %vm956, %v1243, %v1197
      %v1248 = vsel %vm956, %v1244, %v1199
      %v1249 = vsel %vm956, %v1245, %v1201
      %v1250 = vsel %vm961, %v1246, %v1207
      %v1251 = vsel %vm961, %v1247, %v1209
      %v1252 = vsel %vm961, %v1248, %v1211
      %v1253 = vsel %vm961, %v1249, %v1213
      %v1254 = vsel %vm966, %v1250, %v1219
      %v1255 = vsel %vm966, %v1251, %v1221
      %v1256 = vsel %vm966, %v1252, %v1223
      %v1257 = vsel %vm966, %v1253, %v1225
      %v1258 = vpack.c.bf16 %v1255, %v1254
      %v1259 = vpack.c.bf16 %v1257, %v1256
      %v1261 = vsel %vm973, %v1258, 0
      %v1264 = vsel %vm973, %v1259, 0
      %1266 = vmatpush.bf16.msra.mxu0 0
      %1267 = vmatpush.bf16.msra.mxu0 0
      %1268 = vmatpush.bf16.msra.mxu0 0
      %1269 = vmatpush.bf16.msra.mxu0 0
      %1270 = vmatpush.bf16.msra.mxu0 0
      %1271 = vmatpush.bf16.msra.mxu0 0
      %1272 = vmatpush.bf16.msra.mxu0 0
      %1273 = vmatpush.bf16.msra.mxu0 %v982
      %1274 = vmatmul.bf16.gmra.mxu0 %v1261
      %v1275 = vpop.f32.mrf.mxu0
      %v1276 = vadd.f32 0.0, %v1275
      %v1277 = vpop.f32.mrf.mxu0
      %v1278 = vadd.f32 0.0, %v1277
      %1279 = vmatmul.bf16.gmra.mxu0 %v1264
      %v1280 = vpop.f32.mrf.mxu0
      %v1281 = vadd.f32 0.0, %v1280
      %v1282 = vpop.f32.mrf.mxu0
      %v1283 = vadd.f32 0.0, %v1282
      %1284 = vdwg.mxu0
      %v1285 = vmul.f32 %v994, %v994
      %v1286 = vmul.f32 %v996, %v996
      %v1287 = vmul.f32 %v999, %v999
      %v1288 = vmul.f32 %v1001, %v1001
      %v1289 = vmul.f32 %v1137, %v1137
      %v1290 = vmul.f32 %v1139, %v1139
      %v1291 = vmul.f32 %v1142, %v1142
      %v1292 = vmul.f32 %v1144, %v1144
      %v1293 = vadd.f32 %v1285, %v1289
      %v1294 = vadd.f32 %v1286, %v1290
      %v1295 = vadd.f32 %v1287, %v1291
      %v1296 = vadd.f32 %v1288, %v1292
      %v1297 = vmul.f32 %v1276, %v1276
      %v1298 = vmul.f32 %v1278, %v1278
      %v1299 = vmul.f32 %v1281, %v1281
      %v1300 = vmul.f32 %v1283, %v1283
      %v1301 = vadd.f32 %v1293, %v1297
      %v1302 = vadd.f32 %v1294, %v1298
      %v1303 = vadd.f32 %v1295, %v1299
      %v1304 = vadd.f32 %v1296, %v1300
      %v1305 = vadd.f32 %v1301, 1e-08
      %v1306 = vadd.f32 %v1302, 1e-08
      %v1307 = vadd.f32 %v1303, 1e-08
      %v1308 = vadd.f32 %v1304, 1e-08
      %v1309 = vrsqrt.pop %v1305
      %v1310 = vmul.f32 %v1309, %v1305
      %v1311 = vmul.f32 %v1310, %v1309
      %v1312 = vmul.f32 0.5, %v1311
      %v1313 = vsub.f32 1.5, %v1312
      %v1314 = vmul.f32 %v1309, %v1313
      %vm1315 = vweird.f32 %v1305
      %vm1316 = vweird.f32 %v1309
      %vm1317 = vmor %vm1315, %vm1316
      %v1318 = vsel %vm1317, %v1309, %v1314
      %v1319 = vrsqrt.pop %v1306
      %v1320 = vmul.f32 %v1319, %v1306
      %v1321 = vmul.f32 %v1320, %v1319
      %v1322 = vmul.f32 0.5, %v1321
      %v1323 = vsub.f32 1.5, %v1322
      %v1324 = vmul.f32 %v1319, %v1323
      %vm1325 = vweird.f32 %v1306
      %vm1326 = vweird.f32 %v1319
      %vm1327 = vmor %vm1325, %vm1326
      %v1328 = vsel %vm1327, %v1319, %v1324
      %v1329 = vrsqrt.pop %v1307
      %v1330 = vmul.f32 %v1329, %v1307
      %v1331 = vmul.f32 %v1330, %v1329
      %v1332 = vmul.f32 0.5, %v1331
      %v1333 = vsub.f32 1.5, %v1332
      %v1334 = vmul.f32 %v1329, %v1333
      %vm1335 = vweird.f32 %v1307
      %vm1336 = vweird.f32 %v1329
      %vm1337 = vmor %vm1335, %vm1336
      %v1338 = vsel %vm1337, %v1329, %v1334
      %v1339 = vrsqrt.pop %v1308
      %v1340 = vmul.f32 %v1339, %v1308
      %v1341 = vmul.f32 %v1340, %v1339
      %v1342 = vmul.f32 0.5, %v1341
      %v1343 = vsub.f32 1.5, %v1342
      %v1344 = vmul.f32 %v1339, %v1343
      %vm1345 = vweird.f32 %v1308
      %vm1346 = vweird.f32 %v1339
      %vm1347 = vmor %vm1345, %vm1346
      %v1348 = vsel %vm1347, %v1339, %v1344
      %v1349 = vmul.f32 %v994, %v1318
      %v1350 = vmul.f32 %v996, %v1328
      %v1351 = vmul.f32 %v999, %v1338
      %v1352 = vmul.f32 %v1001, %v1348
      %v1353 = vmul.f32 %v1137, %v1318
      %v1354 = vmul.f32 %v1139, %v1328
      %v1355 = vmul.f32 %v1142, %v1338
      %v1356 = vmul.f32 %v1144, %v1348
      %v1357 = vmul.f32 %v1276, %v1318
      %v1358 = vmul.f32 %v1278, %v1328
      %v1359 = vmul.f32 %v1281, %v1338
      %v1360 = vmul.f32 %v1283, %v1348
      %v1361 = vld [vmem:[%s3] sm:$0xf]
      %v1362 = vld [vmem:[%s3 + $0x4] sm:$0xf]
      %v1363 = vld [vmem:[%s3 + $0x8] sm:$0xf]
      %v1364 = vld [vmem:[%s3 + $0xc] sm:$0xf]
      %v1365 = vld [vmem:[%s3 + $0x10] sm:$0xf]
      %v1366 = vld [vmem:[%s3 + $0x14] sm:$0xf]
      %v1367 = vld [vmem:[%s3 + $0x18] sm:$0xf]
      %v1368 = vld [vmem:[%s3 + $0x1c] sm:$0xf]
      %v1369 = vld [vmem:[%s3 + $0x20] sm:$0xf]
      %v1370 = vld [vmem:[%s3 + $0x24] sm:$0xf]
      %1375 = vrot.lane.b32.xlu0 %v1353, 10
      %v1376 = vpop.permute.xlu0 %1375
      %1377 = vrot.lane.b32.xlu0 %v1354, 10
      %v1378 = vpop.permute.xlu0 %1377
      %1379 = vrot.lane.b32.xlu0 %v1355, 10
      %v1380 = vpop.permute.xlu0 %1379
      %1381 = vrot.lane.b32.xlu0 %v1356, 10
      %v1382 = vpop.permute.xlu0 %1381
      %1391 = vrot.lane.b32.xlu0 %v1357, 20
      %v1392 = vpop.permute.xlu0 %1391
      %1393 = vrot.lane.b32.xlu0 %v1358, 20
      %v1394 = vpop.permute.xlu0 %1393
      %1395 = vrot.lane.b32.xlu0 %v1359, 20
      %v1396 = vpop.permute.xlu0 %1395
      %1397 = vrot.lane.b32.xlu0 %v1360, 20
      %v1398 = vpop.permute.xlu0 %1397
      %vm1403 = vcmask 80896
      %v1404 = vsel %vm1403, %v1349, %v1376
      %v1405 = vsel %vm1403, %v1350, %v1378
      %v1406 = vsel %vm1403, %v1351, %v1380
      %v1407 = vsel %vm1403, %v1352, %v1382
      %vm1408 = vcmask 162816
      %v1409 = vsel %vm1408, %v1404, %v1392
      %v1410 = vsel %vm1408, %v1405, %v1394
      %v1411 = vsel %vm1408, %v1406, %v1396
      %v1412 = vsel %vm1408, %v1407, %v1398
      %1413 = vmatpush.msra.mxu0 0.0
      %1414 = vmatpush.msra.mxu0 0.0
      %1415 = vmatpush.msra.mxu0 0.0
      %1416 = vmatpush.msra.mxu0 0.0
      %1417 = vmatpush.msra.mxu0 0.0
      %1418 = vmatpush.msra.mxu0 0.0
      %1419 = vmatpush.msra.mxu0 0.0
      %1420 = vmatpush.msra.mxu0 0.0
      %1421 = vmatpush.msra.mxu0 0.0
      %1422 = vmatpush.msra.mxu0 0.0
      %1423 = vmatpush.msra.mxu0 0.0
      %1424 = vmatpush.msra.mxu0 0.0
      %1425 = vmatpush.msra.mxu0 %v1412
      %1426 = vmatpush.msra.mxu0 %v1411
      %1427 = vmatpush.msra.mxu0 %v1410
      %1428 = vmatpush.msra.mxu0 %v1409
      %1429 = vmatmul.f32.gmra.mxu0 %v499
      %v1430 = vpop.f32.mrf.mxu0
      %v1431 = vadd.f32 0.0, %v1430
      %1432 = vmatmul.f32.gmra.mxu0 %v502
      %v1433 = vpop.f32.mrf.mxu0
      %v1434 = vadd.f32 0.0, %v1433
      %1435 = vmatmul.f32.gmra.mxu0 %v505
      %v1436 = vpop.f32.mrf.mxu0
      %v1437 = vadd.f32 0.0, %v1436
      %1438 = vmatmul.f32.gmra.mxu0 %v508
      %v1439 = vpop.f32.mrf.mxu0
      %v1440 = vadd.f32 0.0, %v1439
      %1441 = vdwg.mxu0
      %1442 = vmatpush.msra.mxu0 0.0
      %1443 = vmatpush.msra.mxu0 0.0
      %1444 = vmatpush.msra.mxu0 0.0
      %1445 = vmatpush.msra.mxu0 0.0
      %1446 = vmatpush.msra.mxu0 0.0
      %1447 = vmatpush.msra.mxu0 0.0
      %1448 = vmatpush.msra.mxu0 0.0
      %1449 = vmatpush.msra.mxu0 0.0
      %1450 = vmatpush.msra.mxu0 0.0
      %1451 = vmatpush.msra.mxu0 0.0
      %1452 = vmatpush.msra.mxu0 0.0
      %1453 = vmatpush.msra.mxu0 0.0
      %1454 = vmatpush.msra.mxu0 %v1412
      %1455 = vmatpush.msra.mxu0 %v1411
      %1456 = vmatpush.msra.mxu0 %v1410
      %1457 = vmatpush.msra.mxu0 %v1409
      %1458 = vmatmul.f32.gmra.mxu0 %v540
      %v1459 = vpop.f32.mrf.mxu0
      %v1460 = vadd.f32 0.0, %v1459
      %1461 = vmatmul.f32.gmra.mxu0 %v543
      %v1462 = vpop.f32.mrf.mxu0
      %v1463 = vadd.f32 0.0, %v1462
      %1464 = vmatmul.f32.gmra.mxu0 %v546
      %v1465 = vpop.f32.mrf.mxu0
      %v1466 = vadd.f32 0.0, %v1465
      %1467 = vmatmul.f32.gmra.mxu0 %v549
      %v1468 = vpop.f32.mrf.mxu0
      %v1469 = vadd.f32 0.0, %v1468
      %1470 = vdwg.mxu0
      %1471 = vmatpush.msra.mxu0 0.0
      %1472 = vmatpush.msra.mxu0 0.0
      %1473 = vmatpush.msra.mxu0 0.0
      %1474 = vmatpush.msra.mxu0 0.0
      %1475 = vmatpush.msra.mxu0 0.0
      %1476 = vmatpush.msra.mxu0 0.0
      %1477 = vmatpush.msra.mxu0 0.0
      %1478 = vmatpush.msra.mxu0 0.0
      %1479 = vmatpush.msra.mxu0 0.0
      %1480 = vmatpush.msra.mxu0 0.0
      %1481 = vmatpush.msra.mxu0 0.0
      %1482 = vmatpush.msra.mxu0 0.0
      %1483 = vmatpush.msra.mxu0 %v1412
      %1484 = vmatpush.msra.mxu0 %v1411
      %1485 = vmatpush.msra.mxu0 %v1410
      %1486 = vmatpush.msra.mxu0 %v1409
      %1487 = vmatmul.f32.gmra.mxu0 %v581
      %v1488 = vpop.f32.mrf.mxu0
      %v1489 = vadd.f32 0.0, %v1488
      %1490 = vmatmul.f32.gmra.mxu0 %v584
      %v1491 = vpop.f32.mrf.mxu0
      %v1492 = vadd.f32 0.0, %v1491
      %1493 = vmatmul.f32.gmra.mxu0 %v587
      %v1494 = vpop.f32.mrf.mxu0
      %v1495 = vadd.f32 0.0, %v1494
      %1496 = vmatmul.f32.gmra.mxu0 %v590
      %v1497 = vpop.f32.mrf.mxu0
      %v1498 = vadd.f32 0.0, %v1497
      %1499 = vdwg.mxu0
      %1500 = vmatpush.msra.mxu0 0.0
      %1501 = vmatpush.msra.mxu0 0.0
      %1502 = vmatpush.msra.mxu0 0.0
      %1503 = vmatpush.msra.mxu0 0.0
      %1504 = vmatpush.msra.mxu0 0.0
      %1505 = vmatpush.msra.mxu0 0.0
      %1506 = vmatpush.msra.mxu0 0.0
      %1507 = vmatpush.msra.mxu0 0.0
      %1508 = vmatpush.msra.mxu0 0.0
      %1509 = vmatpush.msra.mxu0 0.0
      %1510 = vmatpush.msra.mxu0 0.0
      %1511 = vmatpush.msra.mxu0 0.0
      %1512 = vmatpush.msra.mxu0 %v1412
      %1513 = vmatpush.msra.mxu0 %v1411
      %1514 = vmatpush.msra.mxu0 %v1410
      %1515 = vmatpush.msra.mxu0 %v1409
      %1516 = vmatmul.f32.gmra.mxu0 %v622
      %v1517 = vpop.f32.mrf.mxu0
      %v1518 = vadd.f32 0.0, %v1517
      %1519 = vmatmul.f32.gmra.mxu0 %v625
      %v1520 = vpop.f32.mrf.mxu0
      %v1521 = vadd.f32 0.0, %v1520
      %1522 = vmatmul.f32.gmra.mxu0 %v628
      %v1523 = vpop.f32.mrf.mxu0
      %v1524 = vadd.f32 0.0, %v1523
      %1525 = vmatmul.f32.gmra.mxu0 %v631
      %v1526 = vpop.f32.mrf.mxu0
      %v1527 = vadd.f32 0.0, %v1526
      %1528 = vdwg.mxu0
      %1529 = vmatpush.msra.mxu0 0.0
      %1530 = vmatpush.msra.mxu0 0.0
      %1531 = vmatpush.msra.mxu0 0.0
      %1532 = vmatpush.msra.mxu0 0.0
      %1533 = vmatpush.msra.mxu0 0.0
      %1534 = vmatpush.msra.mxu0 0.0
      %1535 = vmatpush.msra.mxu0 0.0
      %1536 = vmatpush.msra.mxu0 0.0
      %1537 = vmatpush.msra.mxu0 0.0
      %1538 = vmatpush.msra.mxu0 0.0
      %1539 = vmatpush.msra.mxu0 0.0
      %1540 = vmatpush.msra.mxu0 0.0
      %1541 = vmatpush.msra.mxu0 %v1412
      %1542 = vmatpush.msra.mxu0 %v1411
      %1543 = vmatpush.msra.mxu0 %v1410
      %1544 = vmatpush.msra.mxu0 %v1409
      %1545 = vmatmul.f32.gmra.mxu0 %v663
      %v1546 = vpop.f32.mrf.mxu0
      %v1547 = vadd.f32 0.0, %v1546
      %1548 = vmatmul.f32.gmra.mxu0 %v666
      %v1549 = vpop.f32.mrf.mxu0
      %v1550 = vadd.f32 0.0, %v1549
      %1551 = vmatmul.f32.gmra.mxu0 %v669
      %v1552 = vpop.f32.mrf.mxu0
      %v1553 = vadd.f32 0.0, %v1552
      %1554 = vmatmul.f32.gmra.mxu0 %v672
      %v1555 = vpop.f32.mrf.mxu0
      %v1556 = vadd.f32 0.0, %v1555
      %1557 = vdwg.mxu0
      %1558 = vmatpush.msra.mxu0 0.0
      %1559 = vmatpush.msra.mxu0 0.0
      %1560 = vmatpush.msra.mxu0 0.0
      %1561 = vmatpush.msra.mxu0 0.0
      %1562 = vmatpush.msra.mxu0 0.0
      %1563 = vmatpush.msra.mxu0 0.0
      %1564 = vmatpush.msra.mxu0 0.0
      %1565 = vmatpush.msra.mxu0 0.0
      %1566 = vmatpush.msra.mxu0 0.0
      %1567 = vmatpush.msra.mxu0 0.0
      %1568 = vmatpush.msra.mxu0 0.0
      %1569 = vmatpush.msra.mxu0 0.0
      %1570 = vmatpush.msra.mxu0 %v1412
      %1571 = vmatpush.msra.mxu0 %v1411
      %1572 = vmatpush.msra.mxu0 %v1410
      %1573 = vmatpush.msra.mxu0 %v1409
      %1574 = vmatmul.f32.gmra.mxu0 %v704
      %v1575 = vpop.f32.mrf.mxu0
      %v1576 = vadd.f32 0.0, %v1575
      %1577 = vmatmul.f32.gmra.mxu0 %v707
      %v1578 = vpop.f32.mrf.mxu0
      %v1579 = vadd.f32 0.0, %v1578
      %1580 = vmatmul.f32.gmra.mxu0 %v710
      %v1581 = vpop.f32.mrf.mxu0
      %v1582 = vadd.f32 0.0, %v1581
      %1583 = vmatmul.f32.gmra.mxu0 %v713
      %v1584 = vpop.f32.mrf.mxu0
      %v1585 = vadd.f32 0.0, %v1584
      %1586 = vdwg.mxu0
      %1587 = vmatpush.msra.mxu0 0.0
      %1588 = vmatpush.msra.mxu0 0.0
      %1589 = vmatpush.msra.mxu0 0.0
      %1590 = vmatpush.msra.mxu0 0.0
      %1591 = vmatpush.msra.mxu0 0.0
      %1592 = vmatpush.msra.mxu0 0.0
      %1593 = vmatpush.msra.mxu0 0.0
      %1594 = vmatpush.msra.mxu0 0.0
      %1595 = vmatpush.msra.mxu0 0.0
      %1596 = vmatpush.msra.mxu0 0.0
      %1597 = vmatpush.msra.mxu0 0.0
      %1598 = vmatpush.msra.mxu0 0.0
      %1599 = vmatpush.msra.mxu0 %v1412
      %1600 = vmatpush.msra.mxu0 %v1411
      %1601 = vmatpush.msra.mxu0 %v1410
      %1602 = vmatpush.msra.mxu0 %v1409
      %1603 = vmatmul.f32.gmra.mxu0 %v745
      %v1604 = vpop.f32.mrf.mxu0
      %v1605 = vadd.f32 0.0, %v1604
      %1606 = vmatmul.f32.gmra.mxu0 %v748
      %v1607 = vpop.f32.mrf.mxu0
      %v1608 = vadd.f32 0.0, %v1607
      %1609 = vmatmul.f32.gmra.mxu0 %v751
      %v1610 = vpop.f32.mrf.mxu0
      %v1611 = vadd.f32 0.0, %v1610
      %1612 = vmatmul.f32.gmra.mxu0 %v754
      %v1613 = vpop.f32.mrf.mxu0
      %v1614 = vadd.f32 0.0, %v1613
      %1615 = vdwg.mxu0
      %1616 = vmatpush.msra.mxu0 0.0
      %1617 = vmatpush.msra.mxu0 0.0
      %1618 = vmatpush.msra.mxu0 0.0
      %1619 = vmatpush.msra.mxu0 0.0
      %1620 = vmatpush.msra.mxu0 0.0
      %1621 = vmatpush.msra.mxu0 0.0
      %1622 = vmatpush.msra.mxu0 0.0
      %1623 = vmatpush.msra.mxu0 0.0
      %1624 = vmatpush.msra.mxu0 0.0
      %1625 = vmatpush.msra.mxu0 0.0
      %1626 = vmatpush.msra.mxu0 0.0
      %1627 = vmatpush.msra.mxu0 0.0
      %1628 = vmatpush.msra.mxu0 %v1412
      %1629 = vmatpush.msra.mxu0 %v1411
      %1630 = vmatpush.msra.mxu0 %v1410
      %1631 = vmatpush.msra.mxu0 %v1409
      %1632 = vmatmul.f32.gmra.mxu0 %v786
      %v1633 = vpop.f32.mrf.mxu0
      %v1634 = vadd.f32 0.0, %v1633
      %1635 = vmatmul.f32.gmra.mxu0 %v789
      %v1636 = vpop.f32.mrf.mxu0
      %v1637 = vadd.f32 0.0, %v1636
      %1638 = vmatmul.f32.gmra.mxu0 %v792
      %v1639 = vpop.f32.mrf.mxu0
      %v1640 = vadd.f32 0.0, %v1639
      %1641 = vmatmul.f32.gmra.mxu0 %v795
      %v1642 = vpop.f32.mrf.mxu0
      %v1643 = vadd.f32 0.0, %v1642
      %1644 = vdwg.mxu0
      %1649 = vrot.lane.b32.xlu0 %v1460, 10
      %v1650 = vpop.permute.xlu0 %1649
      %1651 = vrot.lane.b32.xlu0 %v1463, 10
      %v1652 = vpop.permute.xlu0 %1651
      %1653 = vrot.lane.b32.xlu0 %v1466, 10
      %v1654 = vpop.permute.xlu0 %1653
      %1655 = vrot.lane.b32.xlu0 %v1469, 10
      %v1656 = vpop.permute.xlu0 %1655
      %1665 = vrot.lane.b32.xlu0 %v1489, 20
      %v1666 = vpop.permute.xlu0 %1665
      %1667 = vrot.lane.b32.xlu0 %v1492, 20
      %v1668 = vpop.permute.xlu0 %1667
      %1669 = vrot.lane.b32.xlu0 %v1495, 20
      %v1670 = vpop.permute.xlu0 %1669
      %1671 = vrot.lane.b32.xlu0 %v1498, 20
      %v1672 = vpop.permute.xlu0 %1671
      %1681 = vrot.lane.b32.xlu0 %v1518, 30
      %v1682 = vpop.permute.xlu0 %1681
      %1683 = vrot.lane.b32.xlu0 %v1521, 30
      %v1684 = vpop.permute.xlu0 %1683
      %1685 = vrot.lane.b32.xlu0 %v1524, 30
      %v1686 = vpop.permute.xlu0 %1685
      %1687 = vrot.lane.b32.xlu0 %v1527, 30
      %v1688 = vpop.permute.xlu0 %1687
      %1697 = vrot.lane.b32.xlu0 %v1547, 40
      %v1698 = vpop.permute.xlu0 %1697
      %1699 = vrot.lane.b32.xlu0 %v1550, 40
      %v1700 = vpop.permute.xlu0 %1699
      %1701 = vrot.lane.b32.xlu0 %v1553, 40
      %v1702 = vpop.permute.xlu0 %1701
      %1703 = vrot.lane.b32.xlu0 %v1556, 40
      %v1704 = vpop.permute.xlu0 %1703
      %1713 = vrot.lane.b32.xlu0 %v1576, 50
      %v1714 = vpop.permute.xlu0 %1713
      %1715 = vrot.lane.b32.xlu0 %v1579, 50
      %v1716 = vpop.permute.xlu0 %1715
      %1717 = vrot.lane.b32.xlu0 %v1582, 50
      %v1718 = vpop.permute.xlu0 %1717
      %1719 = vrot.lane.b32.xlu0 %v1585, 50
      %v1720 = vpop.permute.xlu0 %1719
      %1729 = vrot.lane.b32.xlu0 %v1605, 60
      %v1730 = vpop.permute.xlu0 %1729
      %1731 = vrot.lane.b32.xlu0 %v1608, 60
      %v1732 = vpop.permute.xlu0 %1731
      %1733 = vrot.lane.b32.xlu0 %v1611, 60
      %v1734 = vpop.permute.xlu0 %1733
      %1735 = vrot.lane.b32.xlu0 %v1614, 60
      %v1736 = vpop.permute.xlu0 %1735
      %1745 = vrot.lane.b32.xlu0 %v1634, 70
      %v1746 = vpop.permute.xlu0 %1745
      %1747 = vrot.lane.b32.xlu0 %v1637, 70
      %v1748 = vpop.permute.xlu0 %1747
      %1749 = vrot.lane.b32.xlu0 %v1640, 70
      %v1750 = vpop.permute.xlu0 %1749
      %1751 = vrot.lane.b32.xlu0 %v1643, 70
      %v1752 = vpop.permute.xlu0 %1751
      %v1757 = vsel %vm1403, %v1431, %v1650
      %v1758 = vsel %vm1403, %v1434, %v1652
      %v1759 = vsel %vm1403, %v1437, %v1654
      %v1760 = vsel %vm1403, %v1440, %v1656
      %v1761 = vsel %vm1408, %v1757, %v1666
      %v1762 = vsel %vm1408, %v1758, %v1668
      %v1763 = vsel %vm1408, %v1759, %v1670
      %v1764 = vsel %vm1408, %v1760, %v1672
      %vm1765 = vcmask 244736
      %v1766 = vsel %vm1765, %v1761, %v1682
      %v1767 = vsel %vm1765, %v1762, %v1684
      %v1768 = vsel %vm1765, %v1763, %v1686
      %v1769 = vsel %vm1765, %v1764, %v1688
      %vm1770 = vcmask 326656
      %v1771 = vsel %vm1770, %v1766, %v1698
      %v1772 = vsel %vm1770, %v1767, %v1700
      %v1773 = vsel %vm1770, %v1768, %v1702
      %v1774 = vsel %vm1770, %v1769, %v1704
      %vm1775 = vcmask 408576
      %v1776 = vsel %vm1775, %v1771, %v1714
      %v1777 = vsel %vm1775, %v1772, %v1716
      %v1778 = vsel %vm1775, %v1773, %v1718
      %v1779 = vsel %vm1775, %v1774, %v1720
      %vm1780 = vcmask 490496
      %v1781 = vsel %vm1780, %v1776, %v1730
      %v1782 = vsel %vm1780, %v1777, %v1732
      %v1783 = vsel %vm1780, %v1778, %v1734
      %v1784 = vsel %vm1780, %v1779, %v1736
      %vm1785 = vcmask 572416
      %v1786 = vsel %vm1785, %v1781, %v1746
      %v1787 = vsel %vm1785, %v1782, %v1748
      %v1788 = vsel %vm1785, %v1783, %v1750
      %v1789 = vsel %vm1785, %v1784, %v1752
      %v1790 = vpack.c.bf16 %v1787, %v1786
      %v1791 = vpack.c.bf16 %v1789, %v1788
      %v1802 = vunpack.c.l.b16 %v1361
      %v1803 = vunpack.c.l.b16 %v1362
      %v1804 = vunpack.c.l.b16 %v1363
      %v1805 = vunpack.c.l.b16 %v1364
      %v1806 = vunpack.c.l.b16 %v1365
      %v1807 = vunpack.c.l.b16 %v1366
      %v1808 = vunpack.c.l.b16 %v1367
      %v1809 = vunpack.c.l.b16 %v1368
      %v1810 = vunpack.c.l.b16 %v1369
      %v1811 = vunpack.c.l.b16 %v1370
      %v1812 = vpack.c.b16 %v1803, %v1802
      %v1813 = vpack.c.b16 %v1805, %v1804
      %v1814 = vpack.c.b16 %v1807, %v1806
      %v1815 = vpack.c.b16 %v1809, %v1808
      %v1816 = vpack.c.b16 %v1811, %v1810
      %vm1822 = vcmask 654336
      %v1824 = vsel %vm1822, %v1790, 0
      %v1827 = vsel %vm1822, %v1791, 0
      %1829 = vmatpush.bf16.msra.mxu0 0
      %1830 = vmatpush.bf16.msra.mxu0 0
      %1831 = vmatpush.bf16.msra.mxu0 0
      %1832 = vmatpush.bf16.msra.mxu0 %v1816
      %1833 = vmatpush.bf16.msra.mxu0 %v1815
      %1834 = vmatpush.bf16.msra.mxu0 %v1814
      %1835 = vmatpush.bf16.msra.mxu0 %v1813
      %1836 = vmatpush.bf16.msra.mxu0 %v1812
      %1837 = vmatmul.bf16.gmra.mxu0 %v1824
      %v1838 = vpop.f32.mrf.mxu0
      %v1839 = vadd.f32 0.0, %v1838
      %v1840 = vpop.f32.mrf.mxu0
      %v1841 = vadd.f32 0.0, %v1840
      %1842 = vmatmul.bf16.gmra.mxu0 %v1827
      %v1843 = vpop.f32.mrf.mxu0
      %v1844 = vadd.f32 0.0, %v1843
      %v1845 = vpop.f32.mrf.mxu0
      %v1846 = vadd.f32 0.0, %v1845
      %1847 = vdwg.mxu0
      %1852 = vrot.lane.b32.xlu0 %v1431, 118
      %v1853 = vpop.permute.xlu0 %1852
      %1854 = vrot.lane.b32.xlu0 %v1434, 118
      %v1855 = vpop.permute.xlu0 %1854
      %1856 = vrot.lane.b32.xlu0 %v1437, 118
      %v1857 = vpop.permute.xlu0 %1856
      %1858 = vrot.lane.b32.xlu0 %v1440, 118
      %v1859 = vpop.permute.xlu0 %1858
      %1864 = vrot.lane.b32.xlu0 %v1489, 10
      %v1865 = vpop.permute.xlu0 %1864
      %1866 = vrot.lane.b32.xlu0 %v1492, 10
      %v1867 = vpop.permute.xlu0 %1866
      %1868 = vrot.lane.b32.xlu0 %v1495, 10
      %v1869 = vpop.permute.xlu0 %1868
      %1870 = vrot.lane.b32.xlu0 %v1498, 10
      %v1871 = vpop.permute.xlu0 %1870
      %1876 = vrot.lane.b32.xlu0 %v1518, 20
      %v1877 = vpop.permute.xlu0 %1876
      %1878 = vrot.lane.b32.xlu0 %v1521, 20
      %v1879 = vpop.permute.xlu0 %1878
      %1880 = vrot.lane.b32.xlu0 %v1524, 20
      %v1881 = vpop.permute.xlu0 %1880
      %1882 = vrot.lane.b32.xlu0 %v1527, 20
      %v1883 = vpop.permute.xlu0 %1882
      %1888 = vrot.lane.b32.xlu0 %v1547, 30
      %v1889 = vpop.permute.xlu0 %1888
      %1890 = vrot.lane.b32.xlu0 %v1550, 30
      %v1891 = vpop.permute.xlu0 %1890
      %1892 = vrot.lane.b32.xlu0 %v1553, 30
      %v1893 = vpop.permute.xlu0 %1892
      %1894 = vrot.lane.b32.xlu0 %v1556, 30
      %v1895 = vpop.permute.xlu0 %1894
      %1900 = vrot.lane.b32.xlu0 %v1576, 40
      %v1901 = vpop.permute.xlu0 %1900
      %1902 = vrot.lane.b32.xlu0 %v1579, 40
      %v1903 = vpop.permute.xlu0 %1902
      %1904 = vrot.lane.b32.xlu0 %v1582, 40
      %v1905 = vpop.permute.xlu0 %1904
      %1906 = vrot.lane.b32.xlu0 %v1585, 40
      %v1907 = vpop.permute.xlu0 %1906
      %1912 = vrot.lane.b32.xlu0 %v1605, 50
      %v1913 = vpop.permute.xlu0 %1912
      %1914 = vrot.lane.b32.xlu0 %v1608, 50
      %v1915 = vpop.permute.xlu0 %1914
      %1916 = vrot.lane.b32.xlu0 %v1611, 50
      %v1917 = vpop.permute.xlu0 %1916
      %1918 = vrot.lane.b32.xlu0 %v1614, 50
      %v1919 = vpop.permute.xlu0 %1918
      %1924 = vrot.lane.b32.xlu0 %v1634, 60
      %v1925 = vpop.permute.xlu0 %1924
      %1926 = vrot.lane.b32.xlu0 %v1637, 60
      %v1927 = vpop.permute.xlu0 %1926
      %1928 = vrot.lane.b32.xlu0 %v1640, 60
      %v1929 = vpop.permute.xlu0 %1928
      %1930 = vrot.lane.b32.xlu0 %v1643, 60
      %v1931 = vpop.permute.xlu0 %1930
      %v1936 = vsel %vm1403, %v1853, %v1460
      %v1937 = vsel %vm1403, %v1855, %v1463
      %v1938 = vsel %vm1403, %v1857, %v1466
      %v1939 = vsel %vm1403, %v1859, %v1469
      %v1940 = vsel %vm1408, %v1936, %v1865
      %v1941 = vsel %vm1408, %v1937, %v1867
      %v1942 = vsel %vm1408, %v1938, %v1869
      %v1943 = vsel %vm1408, %v1939, %v1871
      %v1944 = vsel %vm1765, %v1940, %v1877
      %v1945 = vsel %vm1765, %v1941, %v1879
      %v1946 = vsel %vm1765, %v1942, %v1881
      %v1947 = vsel %vm1765, %v1943, %v1883
      %v1948 = vsel %vm1770, %v1944, %v1889
      %v1949 = vsel %vm1770, %v1945, %v1891
      %v1950 = vsel %vm1770, %v1946, %v1893
      %v1951 = vsel %vm1770, %v1947, %v1895
      %v1952 = vsel %vm1775, %v1948, %v1901
      %v1953 = vsel %vm1775, %v1949, %v1903
      %v1954 = vsel %vm1775, %v1950, %v1905
      %v1955 = vsel %vm1775, %v1951, %v1907
      %v1956 = vsel %vm1780, %v1952, %v1913
      %v1957 = vsel %vm1780, %v1953, %v1915
      %v1958 = vsel %vm1780, %v1954, %v1917
      %v1959 = vsel %vm1780, %v1955, %v1919
      %v1960 = vsel %vm1785, %v1956, %v1925
      %v1961 = vsel %vm1785, %v1957, %v1927
      %v1962 = vsel %vm1785, %v1958, %v1929
      %v1963 = vsel %vm1785, %v1959, %v1931
      %v1964 = vpack.c.bf16 %v1961, %v1960
      %v1965 = vpack.c.bf16 %v1963, %v1962
      %v1967 = vsel %vm1822, %v1964, 0
      %v1970 = vsel %vm1822, %v1965, 0
      %1972 = vmatpush.bf16.msra.mxu0 0
      %1973 = vmatpush.bf16.msra.mxu0 0
      %1974 = vmatpush.bf16.msra.mxu0 0
      %1975 = vmatpush.bf16.msra.mxu0 %v1816
      %1976 = vmatpush.bf16.msra.mxu0 %v1815
      %1977 = vmatpush.bf16.msra.mxu0 %v1814
      %1978 = vmatpush.bf16.msra.mxu0 %v1813
      %1979 = vmatpush.bf16.msra.mxu0 %v1812
      %1980 = vmatmul.bf16.gmra.mxu0 %v1967
      %v1981 = vpop.f32.mrf.mxu0
      %v1982 = vadd.f32 0.0, %v1981
      %v1983 = vpop.f32.mrf.mxu0
      %v1984 = vadd.f32 0.0, %v1983
      %1985 = vmatmul.bf16.gmra.mxu0 %v1970
      %v1986 = vpop.f32.mrf.mxu0
      %v1987 = vadd.f32 0.0, %v1986
      %v1988 = vpop.f32.mrf.mxu0
      %v1989 = vadd.f32 0.0, %v1988
      %1990 = vdwg.mxu0
      %1991 = vrot.lane.b32.xlu0 %v1431, 108
      %v1992 = vpop.permute.xlu0 %1991
      %1993 = vrot.lane.b32.xlu0 %v1434, 108
      %v1994 = vpop.permute.xlu0 %1993
      %1995 = vrot.lane.b32.xlu0 %v1437, 108
      %v1996 = vpop.permute.xlu0 %1995
      %1997 = vrot.lane.b32.xlu0 %v1440, 108
      %v1998 = vpop.permute.xlu0 %1997
      %2003 = vrot.lane.b32.xlu0 %v1460, 118
      %v2004 = vpop.permute.xlu0 %2003
      %2005 = vrot.lane.b32.xlu0 %v1463, 118
      %v2006 = vpop.permute.xlu0 %2005
      %2007 = vrot.lane.b32.xlu0 %v1466, 118
      %v2008 = vpop.permute.xlu0 %2007
      %2009 = vrot.lane.b32.xlu0 %v1469, 118
      %v2010 = vpop.permute.xlu0 %2009
      %2015 = vrot.lane.b32.xlu0 %v1518, 10
      %v2016 = vpop.permute.xlu0 %2015
      %2017 = vrot.lane.b32.xlu0 %v1521, 10
      %v2018 = vpop.permute.xlu0 %2017
      %2019 = vrot.lane.b32.xlu0 %v1524, 10
      %v2020 = vpop.permute.xlu0 %2019
      %2021 = vrot.lane.b32.xlu0 %v1527, 10
      %v2022 = vpop.permute.xlu0 %2021
      %2027 = vrot.lane.b32.xlu0 %v1547, 20
      %v2028 = vpop.permute.xlu0 %2027
      %2029 = vrot.lane.b32.xlu0 %v1550, 20
      %v2030 = vpop.permute.xlu0 %2029
      %2031 = vrot.lane.b32.xlu0 %v1553, 20
      %v2032 = vpop.permute.xlu0 %2031
      %2033 = vrot.lane.b32.xlu0 %v1556, 20
      %v2034 = vpop.permute.xlu0 %2033
      %2039 = vrot.lane.b32.xlu0 %v1576, 30
      %v2040 = vpop.permute.xlu0 %2039
      %2041 = vrot.lane.b32.xlu0 %v1579, 30
      %v2042 = vpop.permute.xlu0 %2041
      %2043 = vrot.lane.b32.xlu0 %v1582, 30
      %v2044 = vpop.permute.xlu0 %2043
      %2045 = vrot.lane.b32.xlu0 %v1585, 30
      %v2046 = vpop.permute.xlu0 %2045
      %2051 = vrot.lane.b32.xlu0 %v1605, 40
      %v2052 = vpop.permute.xlu0 %2051
      %2053 = vrot.lane.b32.xlu0 %v1608, 40
      %v2054 = vpop.permute.xlu0 %2053
      %2055 = vrot.lane.b32.xlu0 %v1611, 40
      %v2056 = vpop.permute.xlu0 %2055
      %2057 = vrot.lane.b32.xlu0 %v1614, 40
      %v2058 = vpop.permute.xlu0 %2057
      %2063 = vrot.lane.b32.xlu0 %v1634, 50
      %v2064 = vpop.permute.xlu0 %2063
      %2065 = vrot.lane.b32.xlu0 %v1637, 50
      %v2066 = vpop.permute.xlu0 %2065
      %2067 = vrot.lane.b32.xlu0 %v1640, 50
      %v2068 = vpop.permute.xlu0 %2067
      %2069 = vrot.lane.b32.xlu0 %v1643, 50
      %v2070 = vpop.permute.xlu0 %2069
      %v2075 = vsel %vm1403, %v1992, %v2004
      %v2076 = vsel %vm1403, %v1994, %v2006
      %v2077 = vsel %vm1403, %v1996, %v2008
      %v2078 = vsel %vm1403, %v1998, %v2010
      %v2079 = vsel %vm1408, %v2075, %v1489
      %v2080 = vsel %vm1408, %v2076, %v1492
      %v2081 = vsel %vm1408, %v2077, %v1495
      %v2082 = vsel %vm1408, %v2078, %v1498
      %v2083 = vsel %vm1765, %v2079, %v2016
      %v2084 = vsel %vm1765, %v2080, %v2018
      %v2085 = vsel %vm1765, %v2081, %v2020
      %v2086 = vsel %vm1765, %v2082, %v2022
      %v2087 = vsel %vm1770, %v2083, %v2028
      %v2088 = vsel %vm1770, %v2084, %v2030
      %v2089 = vsel %vm1770, %v2085, %v2032
      %v2090 = vsel %vm1770, %v2086, %v2034
      %v2091 = vsel %vm1775, %v2087, %v2040
      %v2092 = vsel %vm1775, %v2088, %v2042
      %v2093 = vsel %vm1775, %v2089, %v2044
      %v2094 = vsel %vm1775, %v2090, %v2046
      %v2095 = vsel %vm1780, %v2091, %v2052
      %v2096 = vsel %vm1780, %v2092, %v2054
      %v2097 = vsel %vm1780, %v2093, %v2056
      %v2098 = vsel %vm1780, %v2094, %v2058
      %v2099 = vsel %vm1785, %v2095, %v2064
      %v2100 = vsel %vm1785, %v2096, %v2066
      %v2101 = vsel %vm1785, %v2097, %v2068
      %v2102 = vsel %vm1785, %v2098, %v2070
      %v2103 = vpack.c.bf16 %v2100, %v2099
      %v2104 = vpack.c.bf16 %v2102, %v2101
      %v2106 = vsel %vm1822, %v2103, 0
      %v2109 = vsel %vm1822, %v2104, 0
      %2111 = vmatpush.bf16.msra.mxu0 0
      %2112 = vmatpush.bf16.msra.mxu0 0
      %2113 = vmatpush.bf16.msra.mxu0 0
      %2114 = vmatpush.bf16.msra.mxu0 %v1816
      %2115 = vmatpush.bf16.msra.mxu0 %v1815
      %2116 = vmatpush.bf16.msra.mxu0 %v1814
      %2117 = vmatpush.bf16.msra.mxu0 %v1813
      %2118 = vmatpush.bf16.msra.mxu0 %v1812
      %2119 = vmatmul.bf16.gmra.mxu0 %v2106
      %v2120 = vpop.f32.mrf.mxu0
      %v2121 = vadd.f32 0.0, %v2120
      %v2122 = vpop.f32.mrf.mxu0
      %v2123 = vadd.f32 0.0, %v2122
      %2124 = vmatmul.bf16.gmra.mxu0 %v2109
      %v2125 = vpop.f32.mrf.mxu0
      %v2126 = vadd.f32 0.0, %v2125
      %v2127 = vpop.f32.mrf.mxu0
      %v2128 = vadd.f32 0.0, %v2127
      %2129 = vdwg.mxu0
      %v2130 = vmul.f32 %v1839, %v1839
      %v2131 = vmul.f32 %v1841, %v1841
      %v2132 = vmul.f32 %v1844, %v1844
      %v2133 = vmul.f32 %v1846, %v1846
      %v2134 = vmul.f32 %v1982, %v1982
      %v2135 = vmul.f32 %v1984, %v1984
      %v2136 = vmul.f32 %v1987, %v1987
      %v2137 = vmul.f32 %v1989, %v1989
      %v2138 = vadd.f32 %v2130, %v2134
      %v2139 = vadd.f32 %v2131, %v2135
      %v2140 = vadd.f32 %v2132, %v2136
      %v2141 = vadd.f32 %v2133, %v2137
      %v2142 = vmul.f32 %v2121, %v2121
      %v2143 = vmul.f32 %v2123, %v2123
      %v2144 = vmul.f32 %v2126, %v2126
      %v2145 = vmul.f32 %v2128, %v2128
      %v2146 = vadd.f32 %v2138, %v2142
      %v2147 = vadd.f32 %v2139, %v2143
      %v2148 = vadd.f32 %v2140, %v2144
      %v2149 = vadd.f32 %v2141, %v2145
      %v2150 = vadd.f32 %v2146, 1e-08
      %v2151 = vadd.f32 %v2147, 1e-08
      %v2152 = vadd.f32 %v2148, 1e-08
      %v2153 = vadd.f32 %v2149, 1e-08
      %v2154 = vrsqrt.pop %v2150
      %v2155 = vmul.f32 %v2154, %v2150
      %v2156 = vmul.f32 %v2155, %v2154
      %v2157 = vmul.f32 0.5, %v2156
      %v2158 = vsub.f32 1.5, %v2157
      %v2159 = vmul.f32 %v2154, %v2158
      %vm2160 = vweird.f32 %v2150
      %vm2161 = vweird.f32 %v2154
      %vm2162 = vmor %vm2160, %vm2161
      %v2163 = vsel %vm2162, %v2154, %v2159
      %v2164 = vrsqrt.pop %v2151
      %v2165 = vmul.f32 %v2164, %v2151
      %v2166 = vmul.f32 %v2165, %v2164
      %v2167 = vmul.f32 0.5, %v2166
      %v2168 = vsub.f32 1.5, %v2167
      %v2169 = vmul.f32 %v2164, %v2168
      %vm2170 = vweird.f32 %v2151
      %vm2171 = vweird.f32 %v2164
      %vm2172 = vmor %vm2170, %vm2171
      %v2173 = vsel %vm2172, %v2164, %v2169
      %v2174 = vrsqrt.pop %v2152
      %v2175 = vmul.f32 %v2174, %v2152
      %v2176 = vmul.f32 %v2175, %v2174
      %v2177 = vmul.f32 0.5, %v2176
      %v2178 = vsub.f32 1.5, %v2177
      %v2179 = vmul.f32 %v2174, %v2178
      %vm2180 = vweird.f32 %v2152
      %vm2181 = vweird.f32 %v2174
      %vm2182 = vmor %vm2180, %vm2181
      %v2183 = vsel %vm2182, %v2174, %v2179
      %v2184 = vrsqrt.pop %v2153
      %v2185 = vmul.f32 %v2184, %v2153
      %v2186 = vmul.f32 %v2185, %v2184
      %v2187 = vmul.f32 0.5, %v2186
      %v2188 = vsub.f32 1.5, %v2187
      %v2189 = vmul.f32 %v2184, %v2188
      %vm2190 = vweird.f32 %v2153
      %vm2191 = vweird.f32 %v2184
      %vm2192 = vmor %vm2190, %vm2191
      %v2193 = vsel %vm2192, %v2184, %v2189
      %v2194 = vmul.f32 %v1839, %v2163
      %v2195 = vmul.f32 %v1841, %v2173
      %v2196 = vmul.f32 %v1844, %v2183
      %v2197 = vmul.f32 %v1846, %v2193
      %v2198 = vmul.f32 %v1982, %v2163
      %v2199 = vmul.f32 %v1984, %v2173
      %v2200 = vmul.f32 %v1987, %v2183
      %v2201 = vmul.f32 %v1989, %v2193
      %v2202 = vmul.f32 %v2121, %v2163
      %v2203 = vmul.f32 %v2123, %v2173
      %v2204 = vmul.f32 %v2126, %v2183
      %v2205 = vmul.f32 %v2128, %v2193
      %v2206 = vld [vmem:[%s4] sm:$0xf]
      %v2207 = vld [vmem:[%s4 + $0x4] sm:$0xf]
      %v2208 = vld [vmem:[%s4 + $0x8] sm:$0xf]
      %v2209 = vld [vmem:[%s4 + $0xc] sm:$0xf]
      %v2210 = vld [vmem:[%s4 + $0x10] sm:$0xf]
      %v2211 = vld [vmem:[%s4 + $0x14] sm:$0xf]
      %v2212 = vld [vmem:[%s4 + $0x18] sm:$0xf]
      %v2213 = vld [vmem:[%s4 + $0x1c] sm:$0xf]
      %v2214 = vld [vmem:[%s4 + $0x20] sm:$0xf]
      %v2215 = vld [vmem:[%s4 + $0x24] sm:$0xf]
      %v2216 = vld [vmem:[%s4 + $0x28] sm:$0xf]
      %v2217 = vld [vmem:[%s4 + $0x2c] sm:$0xf]
      %v2218 = vld [vmem:[%s4 + $0x30] sm:$0xf]
      %v2219 = vld [vmem:[%s4 + $0x34] sm:$0xf]
      %v2220 = vld [vmem:[%s4 + $0x38] sm:$0xf]
      %v2221 = vld [vmem:[%s4 + $0x3c] sm:$0xf]
      %v2222 = vld [vmem:[%s4 + $0x40] sm:$0xf]
      %v2223 = vld [vmem:[%s4 + $0x44] sm:$0xf]
      %v2224 = vld [vmem:[%s4 + $0x48] sm:$0xf]
      %v2225 = vld [vmem:[%s4 + $0x4c] sm:$0xf]
      %2230 = vrot.lane.b32.xlu0 %v2198, 20
      %v2231 = vpop.permute.xlu0 %2230
      %2232 = vrot.lane.b32.xlu0 %v2199, 20
      %v2233 = vpop.permute.xlu0 %2232
      %2234 = vrot.lane.b32.xlu0 %v2200, 20
      %v2235 = vpop.permute.xlu0 %2234
      %2236 = vrot.lane.b32.xlu0 %v2201, 20
      %v2237 = vpop.permute.xlu0 %2236
      %2246 = vrot.lane.b32.xlu0 %v2202, 40
      %v2247 = vpop.permute.xlu0 %2246
      %2248 = vrot.lane.b32.xlu0 %v2203, 40
      %v2249 = vpop.permute.xlu0 %2248
      %2250 = vrot.lane.b32.xlu0 %v2204, 40
      %v2251 = vpop.permute.xlu0 %2250
      %2252 = vrot.lane.b32.xlu0 %v2205, 40
      %v2253 = vpop.permute.xlu0 %2252
      %v2258 = vsel %vm1408, %v2194, %v2231
      %v2259 = vsel %vm1408, %v2195, %v2233
      %v2260 = vsel %vm1408, %v2196, %v2235
      %v2261 = vsel %vm1408, %v2197, %v2237
      %v2262 = vsel %vm1770, %v2258, %v2247
      %v2263 = vsel %vm1770, %v2259, %v2249
      %v2264 = vsel %vm1770, %v2260, %v2251
      %v2265 = vsel %vm1770, %v2261, %v2253
      %2266 = vmatpush.msra.mxu0 0.0
      %2267 = vmatpush.msra.mxu0 0.0
      %2268 = vmatpush.msra.mxu0 0.0
      %2269 = vmatpush.msra.mxu0 0.0
      %2270 = vmatpush.msra.mxu0 0.0
      %2271 = vmatpush.msra.mxu0 0.0
      %2272 = vmatpush.msra.mxu0 0.0
      %2273 = vmatpush.msra.mxu0 0.0
      %2274 = vmatpush.msra.mxu0 0.0
      %2275 = vmatpush.msra.mxu0 0.0
      %2276 = vmatpush.msra.mxu0 0.0
      %2277 = vmatpush.msra.mxu0 0.0
      %2278 = vmatpush.msra.mxu0 %v2265
      %2279 = vmatpush.msra.mxu0 %v2264
      %2280 = vmatpush.msra.mxu0 %v2263
      %2281 = vmatpush.msra.mxu0 %v2262
      %2282 = vmatmul.f32.gmra.mxu0 %v499
      %v2283 = vpop.f32.mrf.mxu0
      %v2284 = vadd.f32 0.0, %v2283
      %2285 = vmatmul.f32.gmra.mxu0 %v502
      %v2286 = vpop.f32.mrf.mxu0
      %v2287 = vadd.f32 0.0, %v2286
      %2288 = vmatmul.f32.gmra.mxu0 %v505
      %v2289 = vpop.f32.mrf.mxu0
      %v2290 = vadd.f32 0.0, %v2289
      %2291 = vmatmul.f32.gmra.mxu0 %v508
      %v2292 = vpop.f32.mrf.mxu0
      %v2293 = vadd.f32 0.0, %v2292
      %2294 = vdwg.mxu0
      %2295 = vmatpush.msra.mxu0 0.0
      %2296 = vmatpush.msra.mxu0 0.0
      %2297 = vmatpush.msra.mxu0 0.0
      %2298 = vmatpush.msra.mxu0 0.0
      %2299 = vmatpush.msra.mxu0 0.0
      %2300 = vmatpush.msra.mxu0 0.0
      %2301 = vmatpush.msra.mxu0 0.0
      %2302 = vmatpush.msra.mxu0 0.0
      %2303 = vmatpush.msra.mxu0 0.0
      %2304 = vmatpush.msra.mxu0 0.0
      %2305 = vmatpush.msra.mxu0 0.0
      %2306 = vmatpush.msra.mxu0 0.0
      %2307 = vmatpush.msra.mxu0 %v2265
      %2308 = vmatpush.msra.mxu0 %v2264
      %2309 = vmatpush.msra.mxu0 %v2263
      %2310 = vmatpush.msra.mxu0 %v2262
      %2311 = vmatmul.f32.gmra.mxu0 %v540
      %v2312 = vpop.f32.mrf.mxu0
      %v2313 = vadd.f32 0.0, %v2312
      %2314 = vmatmul.f32.gmra.mxu0 %v543
      %v2315 = vpop.f32.mrf.mxu0
      %v2316 = vadd.f32 0.0, %v2315
      %2317 = vmatmul.f32.gmra.mxu0 %v546
      %v2318 = vpop.f32.mrf.mxu0
      %v2319 = vadd.f32 0.0, %v2318
      %2320 = vmatmul.f32.gmra.mxu0 %v549
      %v2321 = vpop.f32.mrf.mxu0
      %v2322 = vadd.f32 0.0, %v2321
      %2323 = vdwg.mxu0
      %2324 = vmatpush.msra.mxu0 0.0
      %2325 = vmatpush.msra.mxu0 0.0
      %2326 = vmatpush.msra.mxu0 0.0
      %2327 = vmatpush.msra.mxu0 0.0
      %2328 = vmatpush.msra.mxu0 0.0
      %2329 = vmatpush.msra.mxu0 0.0
      %2330 = vmatpush.msra.mxu0 0.0
      %2331 = vmatpush.msra.mxu0 0.0
      %2332 = vmatpush.msra.mxu0 0.0
      %2333 = vmatpush.msra.mxu0 0.0
      %2334 = vmatpush.msra.mxu0 0.0
      %2335 = vmatpush.msra.mxu0 0.0
      %2336 = vmatpush.msra.mxu0 %v2265
      %2337 = vmatpush.msra.mxu0 %v2264
      %2338 = vmatpush.msra.mxu0 %v2263
      %2339 = vmatpush.msra.mxu0 %v2262
      %2340 = vmatmul.f32.gmra.mxu0 %v581
      %v2341 = vpop.f32.mrf.mxu0
      %v2342 = vadd.f32 0.0, %v2341
      %2343 = vmatmul.f32.gmra.mxu0 %v584
      %v2344 = vpop.f32.mrf.mxu0
      %v2345 = vadd.f32 0.0, %v2344
      %2346 = vmatmul.f32.gmra.mxu0 %v587
      %v2347 = vpop.f32.mrf.mxu0
      %v2348 = vadd.f32 0.0, %v2347
      %2349 = vmatmul.f32.gmra.mxu0 %v590
      %v2350 = vpop.f32.mrf.mxu0
      %v2351 = vadd.f32 0.0, %v2350
      %2352 = vdwg.mxu0
      %2353 = vmatpush.msra.mxu0 0.0
      %2354 = vmatpush.msra.mxu0 0.0
      %2355 = vmatpush.msra.mxu0 0.0
      %2356 = vmatpush.msra.mxu0 0.0
      %2357 = vmatpush.msra.mxu0 0.0
      %2358 = vmatpush.msra.mxu0 0.0
      %2359 = vmatpush.msra.mxu0 0.0
      %2360 = vmatpush.msra.mxu0 0.0
      %2361 = vmatpush.msra.mxu0 0.0
      %2362 = vmatpush.msra.mxu0 0.0
      %2363 = vmatpush.msra.mxu0 0.0
      %2364 = vmatpush.msra.mxu0 0.0
      %2365 = vmatpush.msra.mxu0 %v2265
      %2366 = vmatpush.msra.mxu0 %v2264
      %2367 = vmatpush.msra.mxu0 %v2263
      %2368 = vmatpush.msra.mxu0 %v2262
      %2369 = vmatmul.f32.gmra.mxu0 %v622
      %v2370 = vpop.f32.mrf.mxu0
      %v2371 = vadd.f32 0.0, %v2370
      %2372 = vmatmul.f32.gmra.mxu0 %v625
      %v2373 = vpop.f32.mrf.mxu0
      %v2374 = vadd.f32 0.0, %v2373
      %2375 = vmatmul.f32.gmra.mxu0 %v628
      %v2376 = vpop.f32.mrf.mxu0
      %v2377 = vadd.f32 0.0, %v2376
      %2378 = vmatmul.f32.gmra.mxu0 %v631
      %v2379 = vpop.f32.mrf.mxu0
      %v2380 = vadd.f32 0.0, %v2379
      %2381 = vdwg.mxu0
      %2382 = vmatpush.msra.mxu0 0.0
      %2383 = vmatpush.msra.mxu0 0.0
      %2384 = vmatpush.msra.mxu0 0.0
      %2385 = vmatpush.msra.mxu0 0.0
      %2386 = vmatpush.msra.mxu0 0.0
      %2387 = vmatpush.msra.mxu0 0.0
      %2388 = vmatpush.msra.mxu0 0.0
      %2389 = vmatpush.msra.mxu0 0.0
      %2390 = vmatpush.msra.mxu0 0.0
      %2391 = vmatpush.msra.mxu0 0.0
      %2392 = vmatpush.msra.mxu0 0.0
      %2393 = vmatpush.msra.mxu0 0.0
      %2394 = vmatpush.msra.mxu0 %v2265
      %2395 = vmatpush.msra.mxu0 %v2264
      %2396 = vmatpush.msra.mxu0 %v2263
      %2397 = vmatpush.msra.mxu0 %v2262
      %2398 = vmatmul.f32.gmra.mxu0 %v663
      %v2399 = vpop.f32.mrf.mxu0
      %v2400 = vadd.f32 0.0, %v2399
      %2401 = vmatmul.f32.gmra.mxu0 %v666
      %v2402 = vpop.f32.mrf.mxu0
      %v2403 = vadd.f32 0.0, %v2402
      %2404 = vmatmul.f32.gmra.mxu0 %v669
      %v2405 = vpop.f32.mrf.mxu0
      %v2406 = vadd.f32 0.0, %v2405
      %2407 = vmatmul.f32.gmra.mxu0 %v672
      %v2408 = vpop.f32.mrf.mxu0
      %v2409 = vadd.f32 0.0, %v2408
      %2410 = vdwg.mxu0
      %2411 = vmatpush.msra.mxu0 0.0
      %2412 = vmatpush.msra.mxu0 0.0
      %2413 = vmatpush.msra.mxu0 0.0
      %2414 = vmatpush.msra.mxu0 0.0
      %2415 = vmatpush.msra.mxu0 0.0
      %2416 = vmatpush.msra.mxu0 0.0
      %2417 = vmatpush.msra.mxu0 0.0
      %2418 = vmatpush.msra.mxu0 0.0
      %2419 = vmatpush.msra.mxu0 0.0
      %2420 = vmatpush.msra.mxu0 0.0
      %2421 = vmatpush.msra.mxu0 0.0
      %2422 = vmatpush.msra.mxu0 0.0
      %2423 = vmatpush.msra.mxu0 %v2265
      %2424 = vmatpush.msra.mxu0 %v2264
      %2425 = vmatpush.msra.mxu0 %v2263
      %2426 = vmatpush.msra.mxu0 %v2262
      %2427 = vmatmul.f32.gmra.mxu0 %v704
      %v2428 = vpop.f32.mrf.mxu0
      %v2429 = vadd.f32 0.0, %v2428
      %2430 = vmatmul.f32.gmra.mxu0 %v707
      %v2431 = vpop.f32.mrf.mxu0
      %v2432 = vadd.f32 0.0, %v2431
      %2433 = vmatmul.f32.gmra.mxu0 %v710
      %v2434 = vpop.f32.mrf.mxu0
      %v2435 = vadd.f32 0.0, %v2434
      %2436 = vmatmul.f32.gmra.mxu0 %v713
      %v2437 = vpop.f32.mrf.mxu0
      %v2438 = vadd.f32 0.0, %v2437
      %2439 = vdwg.mxu0
      %2440 = vmatpush.msra.mxu0 0.0
      %2441 = vmatpush.msra.mxu0 0.0
      %2442 = vmatpush.msra.mxu0 0.0
      %2443 = vmatpush.msra.mxu0 0.0
      %2444 = vmatpush.msra.mxu0 0.0
      %2445 = vmatpush.msra.mxu0 0.0
      %2446 = vmatpush.msra.mxu0 0.0
      %2447 = vmatpush.msra.mxu0 0.0
      %2448 = vmatpush.msra.mxu0 0.0
      %2449 = vmatpush.msra.mxu0 0.0
      %2450 = vmatpush.msra.mxu0 0.0
      %2451 = vmatpush.msra.mxu0 0.0
      %2452 = vmatpush.msra.mxu0 %v2265
      %2453 = vmatpush.msra.mxu0 %v2264
      %2454 = vmatpush.msra.mxu0 %v2263
      %2455 = vmatpush.msra.mxu0 %v2262
      %2456 = vmatmul.f32.gmra.mxu0 %v745
      %v2457 = vpop.f32.mrf.mxu0
      %v2458 = vadd.f32 0.0, %v2457
      %2459 = vmatmul.f32.gmra.mxu0 %v748
      %v2460 = vpop.f32.mrf.mxu0
      %v2461 = vadd.f32 0.0, %v2460
      %2462 = vmatmul.f32.gmra.mxu0 %v751
      %v2463 = vpop.f32.mrf.mxu0
      %v2464 = vadd.f32 0.0, %v2463
      %2465 = vmatmul.f32.gmra.mxu0 %v754
      %v2466 = vpop.f32.mrf.mxu0
      %v2467 = vadd.f32 0.0, %v2466
      %2468 = vdwg.mxu0
      %2469 = vmatpush.msra.mxu0 0.0
      %2470 = vmatpush.msra.mxu0 0.0
      %2471 = vmatpush.msra.mxu0 0.0
      %2472 = vmatpush.msra.mxu0 0.0
      %2473 = vmatpush.msra.mxu0 0.0
      %2474 = vmatpush.msra.mxu0 0.0
      %2475 = vmatpush.msra.mxu0 0.0
      %2476 = vmatpush.msra.mxu0 0.0
      %2477 = vmatpush.msra.mxu0 0.0
      %2478 = vmatpush.msra.mxu0 0.0
      %2479 = vmatpush.msra.mxu0 0.0
      %2480 = vmatpush.msra.mxu0 0.0
      %2481 = vmatpush.msra.mxu0 %v2265
      %2482 = vmatpush.msra.mxu0 %v2264
      %2483 = vmatpush.msra.mxu0 %v2263
      %2484 = vmatpush.msra.mxu0 %v2262
      %2485 = vmatmul.f32.gmra.mxu0 %v786
      %v2486 = vpop.f32.mrf.mxu0
      %v2487 = vadd.f32 0.0, %v2486
      %2488 = vmatmul.f32.gmra.mxu0 %v789
      %v2489 = vpop.f32.mrf.mxu0
      %v2490 = vadd.f32 0.0, %v2489
      %2491 = vmatmul.f32.gmra.mxu0 %v792
      %v2492 = vpop.f32.mrf.mxu0
      %v2493 = vadd.f32 0.0, %v2492
      %2494 = vmatmul.f32.gmra.mxu0 %v795
      %v2495 = vpop.f32.mrf.mxu0
      %v2496 = vadd.f32 0.0, %v2495
      %2497 = vdwg.mxu0
      %2502 = vrot.lane.b32.xlu0 %v2313, 20
      %v2503 = vpop.permute.xlu0 %2502
      %2504 = vrot.lane.b32.xlu0 %v2316, 20
      %v2505 = vpop.permute.xlu0 %2504
      %2506 = vrot.lane.b32.xlu0 %v2319, 20
      %v2507 = vpop.permute.xlu0 %2506
      %2508 = vrot.lane.b32.xlu0 %v2322, 20
      %v2509 = vpop.permute.xlu0 %2508
      %2518 = vrot.lane.b32.xlu0 %v2342, 40
      %v2519 = vpop.permute.xlu0 %2518
      %2520 = vrot.lane.b32.xlu0 %v2345, 40
      %v2521 = vpop.permute.xlu0 %2520
      %2522 = vrot.lane.b32.xlu0 %v2348, 40
      %v2523 = vpop.permute.xlu0 %2522
      %2524 = vrot.lane.b32.xlu0 %v2351, 40
      %v2525 = vpop.permute.xlu0 %2524
      %2534 = vrot.lane.b32.xlu0 %v2371, 60
      %v2535 = vpop.permute.xlu0 %2534
      %2536 = vrot.lane.b32.xlu0 %v2374, 60
      %v2537 = vpop.permute.xlu0 %2536
      %2538 = vrot.lane.b32.xlu0 %v2377, 60
      %v2539 = vpop.permute.xlu0 %2538
      %2540 = vrot.lane.b32.xlu0 %v2380, 60
      %v2541 = vpop.permute.xlu0 %2540
      %2550 = vrot.lane.b32.xlu0 %v2400, 80
      %v2551 = vpop.permute.xlu0 %2550
      %2552 = vrot.lane.b32.xlu0 %v2403, 80
      %v2553 = vpop.permute.xlu0 %2552
      %2554 = vrot.lane.b32.xlu0 %v2406, 80
      %v2555 = vpop.permute.xlu0 %2554
      %2556 = vrot.lane.b32.xlu0 %v2409, 80
      %v2557 = vpop.permute.xlu0 %2556
      %2566 = vrot.lane.b32.xlu0 %v2429, 100
      %v2567 = vpop.permute.xlu0 %2566
      %2568 = vrot.lane.b32.xlu0 %v2432, 100
      %v2569 = vpop.permute.xlu0 %2568
      %2570 = vrot.lane.b32.xlu0 %v2435, 100
      %v2571 = vpop.permute.xlu0 %2570
      %2572 = vrot.lane.b32.xlu0 %v2438, 100
      %v2573 = vpop.permute.xlu0 %2572
      %2582 = vrot.lane.b32.xlu0 %v2458, 120
      %v2583 = vpop.permute.xlu0 %2582
      %2584 = vrot.lane.b32.xlu0 %v2461, 120
      %v2585 = vpop.permute.xlu0 %2584
      %2586 = vrot.lane.b32.xlu0 %v2464, 120
      %v2587 = vpop.permute.xlu0 %2586
      %2588 = vrot.lane.b32.xlu0 %v2467, 120
      %v2589 = vpop.permute.xlu0 %2588
      %2598 = vrot.lane.b32.xlu0 %v2487, 12
      %v2599 = vpop.permute.xlu0 %2598
      %2600 = vrot.lane.b32.xlu0 %v2490, 12
      %v2601 = vpop.permute.xlu0 %2600
      %2602 = vrot.lane.b32.xlu0 %v2493, 12
      %v2603 = vpop.permute.xlu0 %2602
      %2604 = vrot.lane.b32.xlu0 %v2496, 12
      %v2605 = vpop.permute.xlu0 %2604
      %v2610 = vsel %vm1408, %v2284, %v2503
      %v2611 = vsel %vm1408, %v2287, %v2505
      %v2612 = vsel %vm1408, %v2290, %v2507
      %v2613 = vsel %vm1408, %v2293, %v2509
      %v2614 = vsel %vm1770, %v2610, %v2519
      %v2615 = vsel %vm1770, %v2611, %v2521
      %v2616 = vsel %vm1770, %v2612, %v2523
      %v2617 = vsel %vm1770, %v2613, %v2525
      %v2618 = vsel %vm1780, %v2614, %v2535
      %v2619 = vsel %vm1780, %v2615, %v2537
      %v2620 = vsel %vm1780, %v2616, %v2539
      %v2621 = vsel %vm1780, %v2617, %v2541
      %v2622 = vsel %vm1822, %v2618, %v2551
      %v2623 = vsel %vm1822, %v2619, %v2553
      %v2624 = vsel %vm1822, %v2620, %v2555
      %v2625 = vsel %vm1822, %v2621, %v2557
      %vm2626 = vcmask 818176
      %v2627 = vsel %vm2626, %v2622, %v2567
      %v2628 = vsel %vm2626, %v2623, %v2569
      %v2629 = vsel %vm2626, %v2624, %v2571
      %v2630 = vsel %vm2626, %v2625, %v2573
      %vm2631 = vcmask 982016
      %v2632 = vsel %vm2631, %v2627, %v2583
      %v2633 = vsel %vm2631, %v2628, %v2585
      %v2634 = vsel %vm2631, %v2629, %v2587
      %v2635 = vsel %vm2631, %v2630, %v2589
      %vm2636 = vcmask 97280
      %v2637 = vsel %vm2636, %v2583, %v2599
      %v2638 = vsel %vm2636, %v2585, %v2601
      %v2639 = vsel %vm2636, %v2587, %v2603
      %v2640 = vsel %vm2636, %v2589, %v2605
      %v2641 = vpack.c.bf16 %v2633, %v2632
      %v2642 = vpack.c.bf16 %v2638, %v2637
      %v2643 = vpack.c.bf16 %v2635, %v2634
      %v2644 = vpack.c.bf16 %v2640, %v2639
      %v2665 = vunpack.c.l.b16 %v2206
      %v2666 = vunpack.c.l.b16 %v2207
      %v2667 = vunpack.c.l.b16 %v2208
      %v2668 = vunpack.c.l.b16 %v2209
      %v2669 = vunpack.c.l.b16 %v2210
      %v2670 = vunpack.c.l.b16 %v2211
      %v2671 = vunpack.c.l.b16 %v2212
      %v2672 = vunpack.c.l.b16 %v2213
      %v2673 = vunpack.c.l.b16 %v2214
      %v2674 = vunpack.c.l.b16 %v2215
      %v2675 = vunpack.c.l.b16 %v2216
      %v2676 = vunpack.c.l.b16 %v2217
      %v2677 = vunpack.c.l.b16 %v2218
      %v2678 = vunpack.c.l.b16 %v2219
      %v2679 = vunpack.c.l.b16 %v2220
      %v2680 = vunpack.c.l.b16 %v2221
      %v2681 = vunpack.c.l.b16 %v2222
      %v2682 = vunpack.c.l.b16 %v2223
      %v2683 = vunpack.c.l.b16 %v2224
      %v2684 = vunpack.c.l.b16 %v2225
      %v2685 = vpack.c.b16 %v2666, %v2665
      %v2686 = vpack.c.b16 %v2668, %v2667
      %v2687 = vpack.c.b16 %v2670, %v2669
      %v2688 = vpack.c.b16 %v2672, %v2671
      %v2689 = vpack.c.b16 %v2674, %v2673
      %v2690 = vpack.c.b16 %v2676, %v2675
      %v2691 = vpack.c.b16 %v2678, %v2677
      %v2692 = vpack.c.b16 %v2680, %v2679
      %v2693 = vpack.c.b16 %v2682, %v2681
      %v2694 = vpack.c.b16 %v2684, %v2683
      %v2706 = vsel %vm497, %v2642, 0
      %v2709 = vsel %vm497, %v2644, 0
      %2711 = vmatpush.bf16.msra.mxu0 %v2692
      %2712 = vmatpush.bf16.msra.mxu0 %v2691
      %2713 = vmatpush.bf16.msra.mxu0 %v2690
      %2714 = vmatpush.bf16.msra.mxu0 %v2689
      %2715 = vmatpush.bf16.msra.mxu0 %v2688
      %2716 = vmatpush.bf16.msra.mxu0 %v2687
      %2717 = vmatpush.bf16.msra.mxu0 %v2686
      %2718 = vmatpush.bf16.msra.mxu0 %v2685
      %2719 = vmatmul.bf16.gmra.mxu0 %v2641
      %v2720 = vpop.f32.mrf.mxu0
      %v2721 = vadd.f32 0.0, %v2720
      %v2722 = vpop.f32.mrf.mxu0
      %v2723 = vadd.f32 0.0, %v2722
      %2724 = vmatmul.bf16.gmra.mxu0 %v2643
      %v2725 = vpop.f32.mrf.mxu0
      %v2726 = vadd.f32 0.0, %v2725
      %v2727 = vpop.f32.mrf.mxu0
      %v2728 = vadd.f32 0.0, %v2727
      %2729 = vdwg.mxu0
      %2730 = vmatpush.bf16.msra.mxu0 0
      %2731 = vmatpush.bf16.msra.mxu0 0
      %2732 = vmatpush.bf16.msra.mxu0 0
      %2733 = vmatpush.bf16.msra.mxu0 0
      %2734 = vmatpush.bf16.msra.mxu0 0
      %2735 = vmatpush.bf16.msra.mxu0 0
      %2736 = vmatpush.bf16.msra.mxu0 %v2694
      %2737 = vmatpush.bf16.msra.mxu0 %v2693
      %2738 = vmatmul.bf16.gmra.mxu0 %v2706
      %v2739 = vpop.f32.mrf.mxu0
      %v2740 = vadd.f32 %v2721, %v2739
      %v2741 = vpop.f32.mrf.mxu0
      %v2742 = vadd.f32 %v2723, %v2741
      %2743 = vmatmul.bf16.gmra.mxu0 %v2709
      %v2744 = vpop.f32.mrf.mxu0
      %v2745 = vadd.f32 %v2726, %v2744
      %v2746 = vpop.f32.mrf.mxu0
      %v2747 = vadd.f32 %v2728, %v2746
      %2748 = vdwg.mxu0
      %2753 = vrot.lane.b32.xlu0 %v2284, 108
      %v2754 = vpop.permute.xlu0 %2753
      %2755 = vrot.lane.b32.xlu0 %v2287, 108
      %v2756 = vpop.permute.xlu0 %2755
      %2757 = vrot.lane.b32.xlu0 %v2290, 108
      %v2758 = vpop.permute.xlu0 %2757
      %2759 = vrot.lane.b32.xlu0 %v2293, 108
      %v2760 = vpop.permute.xlu0 %2759
      %2765 = vrot.lane.b32.xlu0 %v2342, 20
      %v2766 = vpop.permute.xlu0 %2765
      %2767 = vrot.lane.b32.xlu0 %v2345, 20
      %v2768 = vpop.permute.xlu0 %2767
      %2769 = vrot.lane.b32.xlu0 %v2348, 20
      %v2770 = vpop.permute.xlu0 %2769
      %2771 = vrot.lane.b32.xlu0 %v2351, 20
      %v2772 = vpop.permute.xlu0 %2771
      %2777 = vrot.lane.b32.xlu0 %v2371, 40
      %v2778 = vpop.permute.xlu0 %2777
      %2779 = vrot.lane.b32.xlu0 %v2374, 40
      %v2780 = vpop.permute.xlu0 %2779
      %2781 = vrot.lane.b32.xlu0 %v2377, 40
      %v2782 = vpop.permute.xlu0 %2781
      %2783 = vrot.lane.b32.xlu0 %v2380, 40
      %v2784 = vpop.permute.xlu0 %2783
      %2789 = vrot.lane.b32.xlu0 %v2400, 60
      %v2790 = vpop.permute.xlu0 %2789
      %2791 = vrot.lane.b32.xlu0 %v2403, 60
      %v2792 = vpop.permute.xlu0 %2791
      %2793 = vrot.lane.b32.xlu0 %v2406, 60
      %v2794 = vpop.permute.xlu0 %2793
      %2795 = vrot.lane.b32.xlu0 %v2409, 60
      %v2796 = vpop.permute.xlu0 %2795
      %2801 = vrot.lane.b32.xlu0 %v2429, 80
      %v2802 = vpop.permute.xlu0 %2801
      %2803 = vrot.lane.b32.xlu0 %v2432, 80
      %v2804 = vpop.permute.xlu0 %2803
      %2805 = vrot.lane.b32.xlu0 %v2435, 80
      %v2806 = vpop.permute.xlu0 %2805
      %2807 = vrot.lane.b32.xlu0 %v2438, 80
      %v2808 = vpop.permute.xlu0 %2807
      %2813 = vrot.lane.b32.xlu0 %v2458, 100
      %v2814 = vpop.permute.xlu0 %2813
      %2815 = vrot.lane.b32.xlu0 %v2461, 100
      %v2816 = vpop.permute.xlu0 %2815
      %2817 = vrot.lane.b32.xlu0 %v2464, 100
      %v2818 = vpop.permute.xlu0 %2817
      %2819 = vrot.lane.b32.xlu0 %v2467, 100
      %v2820 = vpop.permute.xlu0 %2819
      %2825 = vrot.lane.b32.xlu0 %v2487, 120
      %v2826 = vpop.permute.xlu0 %2825
      %2827 = vrot.lane.b32.xlu0 %v2490, 120
      %v2828 = vpop.permute.xlu0 %2827
      %2829 = vrot.lane.b32.xlu0 %v2493, 120
      %v2830 = vpop.permute.xlu0 %2829
      %2831 = vrot.lane.b32.xlu0 %v2496, 120
      %v2832 = vpop.permute.xlu0 %2831
      %v2837 = vsel %vm1408, %v2754, %v2313
      %v2838 = vsel %vm1408, %v2756, %v2316
      %v2839 = vsel %vm1408, %v2758, %v2319
      %v2840 = vsel %vm1408, %v2760, %v2322
      %v2841 = vsel %vm1770, %v2837, %v2766
      %v2842 = vsel %vm1770, %v2838, %v2768
      %v2843 = vsel %vm1770, %v2839, %v2770
      %v2844 = vsel %vm1770, %v2840, %v2772
      %v2845 = vsel %vm1780, %v2841, %v2778
      %v2846 = vsel %vm1780, %v2842, %v2780
      %v2847 = vsel %vm1780, %v2843, %v2782
      %v2848 = vsel %vm1780, %v2844, %v2784
      %v2849 = vsel %vm1822, %v2845, %v2790
      %v2850 = vsel %vm1822, %v2846, %v2792
      %v2851 = vsel %vm1822, %v2847, %v2794
      %v2852 = vsel %vm1822, %v2848, %v2796
      %v2853 = vsel %vm2626, %v2849, %v2802
      %v2854 = vsel %vm2626, %v2850, %v2804
      %v2855 = vsel %vm2626, %v2851, %v2806
      %v2856 = vsel %vm2626, %v2852, %v2808
      %v2857 = vsel %vm2631, %v2853, %v2814
      %v2858 = vsel %vm2631, %v2854, %v2816
      %v2859 = vsel %vm2631, %v2855, %v2818
      %v2860 = vsel %vm2631, %v2856, %v2820
      %v2861 = vsel %vm2636, %v2814, %v2826
      %v2862 = vsel %vm2636, %v2816, %v2828
      %v2863 = vsel %vm2636, %v2818, %v2830
      %v2864 = vsel %vm2636, %v2820, %v2832
      %v2865 = vpack.c.bf16 %v2858, %v2857
      %v2866 = vpack.c.bf16 %v2862, %v2861
      %v2867 = vpack.c.bf16 %v2860, %v2859
      %v2868 = vpack.c.bf16 %v2864, %v2863
      %v2870 = vsel %vm497, %v2866, 0
      %v2873 = vsel %vm497, %v2868, 0
      %2875 = vmatpush.bf16.msra.mxu0 %v2692
      %2876 = vmatpush.bf16.msra.mxu0 %v2691
      %2877 = vmatpush.bf16.msra.mxu0 %v2690
      %2878 = vmatpush.bf16.msra.mxu0 %v2689
      %2879 = vmatpush.bf16.msra.mxu0 %v2688
      %2880 = vmatpush.bf16.msra.mxu0 %v2687
      %2881 = vmatpush.bf16.msra.mxu0 %v2686
      %2882 = vmatpush.bf16.msra.mxu0 %v2685
      %2883 = vmatmul.bf16.gmra.mxu0 %v2865
      %v2884 = vpop.f32.mrf.mxu0
      %v2885 = vadd.f32 0.0, %v2884
      %v2886 = vpop.f32.mrf.mxu0
      %v2887 = vadd.f32 0.0, %v2886
      %2888 = vmatmul.bf16.gmra.mxu0 %v2867
      %v2889 = vpop.f32.mrf.mxu0
      %v2890 = vadd.f32 0.0, %v2889
      %v2891 = vpop.f32.mrf.mxu0
      %v2892 = vadd.f32 0.0, %v2891
      %2893 = vdwg.mxu0
      %2894 = vmatpush.bf16.msra.mxu0 0
      %2895 = vmatpush.bf16.msra.mxu0 0
      %2896 = vmatpush.bf16.msra.mxu0 0
      %2897 = vmatpush.bf16.msra.mxu0 0
      %2898 = vmatpush.bf16.msra.mxu0 0
      %2899 = vmatpush.bf16.msra.mxu0 0
      %2900 = vmatpush.bf16.msra.mxu0 %v2694
      %2901 = vmatpush.bf16.msra.mxu0 %v2693
      %2902 = vmatmul.bf16.gmra.mxu0 %v2870
      %v2903 = vpop.f32.mrf.mxu0
      %v2904 = vadd.f32 %v2885, %v2903
      %v2905 = vpop.f32.mrf.mxu0
      %v2906 = vadd.f32 %v2887, %v2905
      %2907 = vmatmul.bf16.gmra.mxu0 %v2873
      %v2908 = vpop.f32.mrf.mxu0
      %v2909 = vadd.f32 %v2890, %v2908
      %v2910 = vpop.f32.mrf.mxu0
      %v2911 = vadd.f32 %v2892, %v2910
      %2912 = vdwg.mxu0
      %2913 = vrot.lane.b32.xlu0 %v2284, 88
      %v2914 = vpop.permute.xlu0 %2913
      %2915 = vrot.lane.b32.xlu0 %v2287, 88
      %v2916 = vpop.permute.xlu0 %2915
      %2917 = vrot.lane.b32.xlu0 %v2290, 88
      %v2918 = vpop.permute.xlu0 %2917
      %2919 = vrot.lane.b32.xlu0 %v2293, 88
      %v2920 = vpop.permute.xlu0 %2919
      %2925 = vrot.lane.b32.xlu0 %v2313, 108
      %v2926 = vpop.permute.xlu0 %2925
      %2927 = vrot.lane.b32.xlu0 %v2316, 108
      %v2928 = vpop.permute.xlu0 %2927
      %2929 = vrot.lane.b32.xlu0 %v2319, 108
      %v2930 = vpop.permute.xlu0 %2929
      %2931 = vrot.lane.b32.xlu0 %v2322, 108
      %v2932 = vpop.permute.xlu0 %2931
      %2937 = vrot.lane.b32.xlu0 %v2371, 20
      %v2938 = vpop.permute.xlu0 %2937
      %2939 = vrot.lane.b32.xlu0 %v2374, 20
      %v2940 = vpop.permute.xlu0 %2939
      %2941 = vrot.lane.b32.xlu0 %v2377, 20
      %v2942 = vpop.permute.xlu0 %2941
      %2943 = vrot.lane.b32.xlu0 %v2380, 20
      %v2944 = vpop.permute.xlu0 %2943
      %2949 = vrot.lane.b32.xlu0 %v2400, 40
      %v2950 = vpop.permute.xlu0 %2949
      %2951 = vrot.lane.b32.xlu0 %v2403, 40
      %v2952 = vpop.permute.xlu0 %2951
      %2953 = vrot.lane.b32.xlu0 %v2406, 40
      %v2954 = vpop.permute.xlu0 %2953
      %2955 = vrot.lane.b32.xlu0 %v2409, 40
      %v2956 = vpop.permute.xlu0 %2955
      %2961 = vrot.lane.b32.xlu0 %v2429, 60
      %v2962 = vpop.permute.xlu0 %2961
      %2963 = vrot.lane.b32.xlu0 %v2432, 60
      %v2964 = vpop.permute.xlu0 %2963
      %2965 = vrot.lane.b32.xlu0 %v2435, 60
      %v2966 = vpop.permute.xlu0 %2965
      %2967 = vrot.lane.b32.xlu0 %v2438, 60
      %v2968 = vpop.permute.xlu0 %2967
      %2973 = vrot.lane.b32.xlu0 %v2458, 80
      %v2974 = vpop.permute.xlu0 %2973
      %2975 = vrot.lane.b32.xlu0 %v2461, 80
      %v2976 = vpop.permute.xlu0 %2975
      %2977 = vrot.lane.b32.xlu0 %v2464, 80
      %v2978 = vpop.permute.xlu0 %2977
      %2979 = vrot.lane.b32.xlu0 %v2467, 80
      %v2980 = vpop.permute.xlu0 %2979
      %2985 = vrot.lane.b32.xlu0 %v2487, 100
      %v2986 = vpop.permute.xlu0 %2985
      %2987 = vrot.lane.b32.xlu0 %v2490, 100
      %v2988 = vpop.permute.xlu0 %2987
      %2989 = vrot.lane.b32.xlu0 %v2493, 100
      %v2990 = vpop.permute.xlu0 %2989
      %2991 = vrot.lane.b32.xlu0 %v2496, 100
      %v2992 = vpop.permute.xlu0 %2991
      %v2997 = vsel %vm1408, %v2914, %v2926
      %v2998 = vsel %vm1408, %v2916, %v2928
      %v2999 = vsel %vm1408, %v2918, %v2930
      %v3000 = vsel %vm1408, %v2920, %v2932
      %v3001 = vsel %vm1770, %v2997, %v2342
      %v3002 = vsel %vm1770, %v2998, %v2345
      %v3003 = vsel %vm1770, %v2999, %v2348
      %v3004 = vsel %vm1770, %v3000, %v2351
      %v3005 = vsel %vm1780, %v3001, %v2938
      %v3006 = vsel %vm1780, %v3002, %v2940
      %v3007 = vsel %vm1780, %v3003, %v2942
      %v3008 = vsel %vm1780, %v3004, %v2944
      %v3009 = vsel %vm1822, %v3005, %v2950
      %v3010 = vsel %vm1822, %v3006, %v2952
      %v3011 = vsel %vm1822, %v3007, %v2954
      %v3012 = vsel %vm1822, %v3008, %v2956
      %v3013 = vsel %vm2626, %v3009, %v2962
      %v3014 = vsel %vm2626, %v3010, %v2964
      %v3015 = vsel %vm2626, %v3011, %v2966
      %v3016 = vsel %vm2626, %v3012, %v2968
      %v3017 = vsel %vm2631, %v3013, %v2974
      %v3018 = vsel %vm2631, %v3014, %v2976
      %v3019 = vsel %vm2631, %v3015, %v2978
      %v3020 = vsel %vm2631, %v3016, %v2980
      %v3021 = vsel %vm2636, %v2974, %v2986
      %v3022 = vsel %vm2636, %v2976, %v2988
      %v3023 = vsel %vm2636, %v2978, %v2990
      %v3024 = vsel %vm2636, %v2980, %v2992
      %v3025 = vpack.c.bf16 %v3018, %v3017
      %v3026 = vpack.c.bf16 %v3022, %v3021
      %v3027 = vpack.c.bf16 %v3020, %v3019
      %v3028 = vpack.c.bf16 %v3024, %v3023
      %v3030 = vsel %vm497, %v3026, 0
      %v3033 = vsel %vm497, %v3028, 0
      %3035 = vmatpush.bf16.msra.mxu0 %v2692
      %3036 = vmatpush.bf16.msra.mxu0 %v2691
      %3037 = vmatpush.bf16.msra.mxu0 %v2690
      %3038 = vmatpush.bf16.msra.mxu0 %v2689
      %3039 = vmatpush.bf16.msra.mxu0 %v2688
      %3040 = vmatpush.bf16.msra.mxu0 %v2687
      %3041 = vmatpush.bf16.msra.mxu0 %v2686
      %3042 = vmatpush.bf16.msra.mxu0 %v2685
      %3043 = vmatmul.bf16.gmra.mxu0 %v3025
      %v3044 = vpop.f32.mrf.mxu0
      %v3045 = vadd.f32 0.0, %v3044
      %v3046 = vpop.f32.mrf.mxu0
      %v3047 = vadd.f32 0.0, %v3046
      %3048 = vmatmul.bf16.gmra.mxu0 %v3027
      %v3049 = vpop.f32.mrf.mxu0
      %v3050 = vadd.f32 0.0, %v3049
      %v3051 = vpop.f32.mrf.mxu0
      %v3052 = vadd.f32 0.0, %v3051
      %3053 = vdwg.mxu0
      %3054 = vmatpush.bf16.msra.mxu0 0
      %3055 = vmatpush.bf16.msra.mxu0 0
      %3056 = vmatpush.bf16.msra.mxu0 0
      %3057 = vmatpush.bf16.msra.mxu0 0
      %3058 = vmatpush.bf16.msra.mxu0 0
      %3059 = vmatpush.bf16.msra.mxu0 0
      %3060 = vmatpush.bf16.msra.mxu0 %v2694
      %3061 = vmatpush.bf16.msra.mxu0 %v2693
      %3062 = vmatmul.bf16.gmra.mxu0 %v3030
      %v3063 = vpop.f32.mrf.mxu0
      %v3064 = vadd.f32 %v3045, %v3063
      %v3065 = vpop.f32.mrf.mxu0
      %v3066 = vadd.f32 %v3047, %v3065
      %3067 = vmatmul.bf16.gmra.mxu0 %v3033
      %v3068 = vpop.f32.mrf.mxu0
      %v3069 = vadd.f32 %v3050, %v3068
      %v3070 = vpop.f32.mrf.mxu0
      %v3071 = vadd.f32 %v3052, %v3070
      %3072 = vdwg.mxu0
      %v3073 = vmul.f32 %v2740, %v2740
      %v3074 = vmul.f32 %v2742, %v2742
      %v3075 = vmul.f32 %v2745, %v2745
      %v3076 = vmul.f32 %v2747, %v2747
      %v3077 = vmul.f32 %v2904, %v2904
      %v3078 = vmul.f32 %v2906, %v2906
      %v3079 = vmul.f32 %v2909, %v2909
      %v3080 = vmul.f32 %v2911, %v2911
      %v3081 = vadd.f32 %v3073, %v3077
      %v3082 = vadd.f32 %v3074, %v3078
      %v3083 = vadd.f32 %v3075, %v3079
      %v3084 = vadd.f32 %v3076, %v3080
      %v3085 = vmul.f32 %v3064, %v3064
      %v3086 = vmul.f32 %v3066, %v3066
      %v3087 = vmul.f32 %v3069, %v3069
      %v3088 = vmul.f32 %v3071, %v3071
      %v3089 = vadd.f32 %v3081, %v3085
      %v3090 = vadd.f32 %v3082, %v3086
      %v3091 = vadd.f32 %v3083, %v3087
      %v3092 = vadd.f32 %v3084, %v3088
      %v3093 = vadd.f32 %v3089, 1e-08
      %v3094 = vadd.f32 %v3090, 1e-08
      %v3095 = vadd.f32 %v3091, 1e-08
      %v3096 = vadd.f32 %v3092, 1e-08
      %v3097 = vrsqrt.pop %v3093
      %v3098 = vmul.f32 %v3097, %v3093
      %v3099 = vmul.f32 %v3098, %v3097
      %v3100 = vmul.f32 0.5, %v3099
      %v3101 = vsub.f32 1.5, %v3100
      %v3102 = vmul.f32 %v3097, %v3101
      %vm3103 = vweird.f32 %v3093
      %vm3104 = vweird.f32 %v3097
      %vm3105 = vmor %vm3103, %vm3104
      %v3106 = vsel %vm3105, %v3097, %v3102
      %v3107 = vrsqrt.pop %v3094
      %v3108 = vmul.f32 %v3107, %v3094
      %v3109 = vmul.f32 %v3108, %v3107
      %v3110 = vmul.f32 0.5, %v3109
      %v3111 = vsub.f32 1.5, %v3110
      %v3112 = vmul.f32 %v3107, %v3111
      %vm3113 = vweird.f32 %v3094
      %vm3114 = vweird.f32 %v3107
      %vm3115 = vmor %vm3113, %vm3114
      %v3116 = vsel %vm3115, %v3107, %v3112
      %v3117 = vrsqrt.pop %v3095
      %v3118 = vmul.f32 %v3117, %v3095
      %v3119 = vmul.f32 %v3118, %v3117
      %v3120 = vmul.f32 0.5, %v3119
      %v3121 = vsub.f32 1.5, %v3120
      %v3122 = vmul.f32 %v3117, %v3121
      %vm3123 = vweird.f32 %v3095
      %vm3124 = vweird.f32 %v3117
      %vm3125 = vmor %vm3123, %vm3124
      %v3126 = vsel %vm3125, %v3117, %v3122
      %v3127 = vrsqrt.pop %v3096
      %v3128 = vmul.f32 %v3127, %v3096
      %v3129 = vmul.f32 %v3128, %v3127
      %v3130 = vmul.f32 0.5, %v3129
      %v3131 = vsub.f32 1.5, %v3130
      %v3132 = vmul.f32 %v3127, %v3131
      %vm3133 = vweird.f32 %v3096
      %vm3134 = vweird.f32 %v3127
      %vm3135 = vmor %vm3133, %vm3134
      %v3136 = vsel %vm3135, %v3127, %v3132
      %v3137 = vmul.f32 %v2740, %v3106
      %v3138 = vmul.f32 %v2742, %v3116
      %v3139 = vmul.f32 %v2745, %v3126
      %v3140 = vmul.f32 %v2747, %v3136
      %v3141 = vmul.f32 %v2904, %v3106
      %v3142 = vmul.f32 %v2906, %v3116
      %v3143 = vmul.f32 %v2909, %v3126
      %v3144 = vmul.f32 %v2911, %v3136
      %v3145 = vmul.f32 %v3064, %v3106
      %v3146 = vmul.f32 %v3066, %v3116
      %v3147 = vmul.f32 %v3069, %v3126
      %v3148 = vmul.f32 %v3071, %v3136
      %v3149 = vsel %vm1765, %v3137, 0.0
      %v3150 = vsel %vm1765, %v3138, 0.0
      %v3151 = vadd.f32 %v3149, %v3150
      %v3152 = vsel %vm1765, %v3139, 0.0
      %v3153 = vadd.f32 %v3151, %v3152
      %v3154 = vsel %vm1765, %v3140, 0.0
      %v3155 = vadd.f32 %v3153, %v3154
      %v3156 = vrot.slane %v3155, 4
      %v3157 = vadd.f32 %v3155, %v3156
      %v3158 = vrot.slane %v3157, 2
      %v3159 = vadd.f32 %v3157, %v3158
      %v3160 = vrot.slane %v3159, 1
      %v3161 = vadd.f32 %v3159, %v3160
      %v3162 = vrcp.pop 32.0
      %v3163 = vmul.f32 32.0, %v3162
      %v3164 = vsub.f32 1.0, %v3163
      %v3165 = vmul.f32 %v3162, %v3164
      %v3166 = vadd.f32 %v3162, %v3165
      %vm3167 = vweird.f32 %v3162
      %v3168 = vsel %vm3167, %v3162, %v3166
      %v3169 = vmul.f32 %v3161, %v3168
      %v3170 = vsub.f32 %v3137, %v3169
      %v3171 = vsub.f32 %v3138, %v3169
      %v3172 = vsub.f32 %v3139, %v3169
      %v3173 = vsub.f32 %v3140, %v3169
      %v3174 = vmul.f32 %v3170, %v3170
      %v3175 = vmul.f32 %v3171, %v3171
      %v3176 = vmul.f32 %v3172, %v3172
      %v3177 = vmul.f32 %v3173, %v3173
      %v3178 = vsel %vm1765, %v3141, 0.0
      %v3179 = vsel %vm1765, %v3142, 0.0
      %v3180 = vadd.f32 %v3178, %v3179
      %v3181 = vsel %vm1765, %v3143, 0.0
      %v3182 = vadd.f32 %v3180, %v3181
      %v3183 = vsel %vm1765, %v3144, 0.0
      %v3184 = vadd.f32 %v3182, %v3183
      %v3185 = vrot.slane %v3184, 4
      %v3186 = vadd.f32 %v3184, %v3185
      %v3187 = vrot.slane %v3186, 2
      %v3188 = vadd.f32 %v3186, %v3187
      %v3189 = vrot.slane %v3188, 1
      %v3190 = vadd.f32 %v3188, %v3189
      %v3191 = vmul.f32 %v3190, %v3168
      %v3192 = vsub.f32 %v3141, %v3191
      %v3193 = vsub.f32 %v3142, %v3191
      %v3194 = vsub.f32 %v3143, %v3191
      %v3195 = vsub.f32 %v3144, %v3191
      %v3196 = vmul.f32 %v3192, %v3192
      %v3197 = vmul.f32 %v3193, %v3193
      %v3198 = vmul.f32 %v3194, %v3194
      %v3199 = vmul.f32 %v3195, %v3195
      %v3200 = vadd.f32 %v3174, %v3196
      %v3201 = vadd.f32 %v3175, %v3197
      %v3202 = vadd.f32 %v3176, %v3198
      %v3203 = vadd.f32 %v3177, %v3199
      %v3204 = vsel %vm1765, %v3145, 0.0
      %v3205 = vsel %vm1765, %v3146, 0.0
      %v3206 = vadd.f32 %v3204, %v3205
      %v3207 = vsel %vm1765, %v3147, 0.0
      %v3208 = vadd.f32 %v3206, %v3207
      %v3209 = vsel %vm1765, %v3148, 0.0
      %v3210 = vadd.f32 %v3208, %v3209
      %v3211 = vrot.slane %v3210, 4
      %v3212 = vadd.f32 %v3210, %v3211
      %v3213 = vrot.slane %v3212, 2
      %v3214 = vadd.f32 %v3212, %v3213
      %v3215 = vrot.slane %v3214, 1
      %v3216 = vadd.f32 %v3214, %v3215
      %v3217 = vmul.f32 %v3216, %v3168
      %v3218 = vsub.f32 %v3145, %v3217
      %v3219 = vsub.f32 %v3146, %v3217
      %v3220 = vsub.f32 %v3147, %v3217
      %v3221 = vsub.f32 %v3148, %v3217
      %v3222 = vmul.f32 %v3218, %v3218
      %v3223 = vmul.f32 %v3219, %v3219
      %v3224 = vmul.f32 %v3220, %v3220
      %v3225 = vmul.f32 %v3221, %v3221
      %v3226 = vadd.f32 %v3200, %v3222
      %v3227 = vadd.f32 %v3201, %v3223
      %v3228 = vadd.f32 %v3202, %v3224
      %v3229 = vadd.f32 %v3203, %v3225
      %v3230 = vadd.f32 %v3226, 1e-12
      %v3231 = vadd.f32 %v3227, 1e-12
      %v3232 = vadd.f32 %v3228, 1e-12
      %v3233 = vadd.f32 %v3229, 1e-12
      %v3234 = vrsqrt.pop %v3230
      %v3235 = vmul.f32 %v3234, %v3230
      %v3236 = vmul.f32 %v3235, %v3234
      %v3237 = vmul.f32 0.5, %v3236
      %v3238 = vsub.f32 1.5, %v3237
      %v3239 = vmul.f32 %v3234, %v3238
      %v3240 = vmul.f32 %v3230, %v3239
      %vm3241 = vcmp.eq.f32.partialorder %v3230, inf
      %v3242 = vsel %vm3241, %v3230, %v3240
      %vm3243 = vcmp.eq.f32.partialorder %v3230, 0.0
      %v3244 = vand.u32 %v3230, 2147483648
      %v3245 = vsel %vm3243, %v3244, %v3242
      %v3246 = vrsqrt.pop %v3231
      %v3247 = vmul.f32 %v3246, %v3231
      %v3248 = vmul.f32 %v3247, %v3246
      %v3249 = vmul.f32 0.5, %v3248
      %v3250 = vsub.f32 1.5, %v3249
      %v3251 = vmul.f32 %v3246, %v3250
      %v3252 = vmul.f32 %v3231, %v3251
      %vm3253 = vcmp.eq.f32.partialorder %v3231, inf
      %v3254 = vsel %vm3253, %v3231, %v3252
      %vm3255 = vcmp.eq.f32.partialorder %v3231, 0.0
      %v3256 = vand.u32 %v3231, 2147483648
      %v3257 = vsel %vm3255, %v3256, %v3254
      %v3258 = vrsqrt.pop %v3232
      %v3259 = vmul.f32 %v3258, %v3232
      %v3260 = vmul.f32 %v3259, %v3258
      %v3261 = vmul.f32 0.5, %v3260
      %v3262 = vsub.f32 1.5, %v3261
      %v3263 = vmul.f32 %v3258, %v3262
      %v3264 = vmul.f32 %v3232, %v3263
      %vm3265 = vcmp.eq.f32.partialorder %v3232, inf
      %v3266 = vsel %vm3265, %v3232, %v3264
      %vm3267 = vcmp.eq.f32.partialorder %v3232, 0.0
      %v3268 = vand.u32 %v3232, 2147483648
      %v3269 = vsel %vm3267, %v3268, %v3266
      %v3270 = vrsqrt.pop %v3233
      %v3271 = vmul.f32 %v3270, %v3233
      %v3272 = vmul.f32 %v3271, %v3270
      %v3273 = vmul.f32 0.5, %v3272
      %v3274 = vsub.f32 1.5, %v3273
      %v3275 = vmul.f32 %v3270, %v3274
      %v3276 = vmul.f32 %v3233, %v3275
      %vm3277 = vcmp.eq.f32.partialorder %v3233, inf
      %v3278 = vsel %vm3277, %v3233, %v3276
      %vm3279 = vcmp.eq.f32.partialorder %v3233, 0.0
      %v3280 = vand.u32 %v3233, 2147483648
      %v3281 = vsel %vm3279, %v3280, %v3278
      %v3282 = vsel %vm1765, %v3245, 0.0
      %v3283 = vsel %vm1765, %v3257, 0.0
      %v3284 = vadd.f32 %v3282, %v3283
      %v3285 = vsel %vm1765, %v3269, 0.0
      %v3286 = vadd.f32 %v3284, %v3285
      %v3287 = vsel %vm1765, %v3281, 0.0
      %v3288 = vadd.f32 %v3286, %v3287
      %v3289 = vrot.slane %v3288, 4
      %v3290 = vadd.f32 %v3288, %v3289
      %v3291 = vrot.slane %v3290, 2
      %v3292 = vadd.f32 %v3290, %v3291
      %v3293 = vrot.slane %v3292, 1
      %v3294 = vadd.f32 %v3292, %v3293
      %v3295 = vmul.f32 %v3294, %v3168
      %vm3296 = vcmask 237568
      %3297 = vst.msk [vmem:[%s240] sm:$0x1] %vm3296, %v3295
      %p3298 = scmp.lt.s32.totalorder %s16, 1
      %s3299 = scalar_select %p3298, %s16, 1
      %s3300 = scalar_lea.vmem %s5, %s3299
      // Predicated region
      $region41: #{manifold_net_forward.1} parent=39 // pred_check
        %p3301 = pneg %p149
      $region42: #{manifold_net_forward.1} parent=39 // pred_check_branch
        %3303 = sbr.rel (%p3301) target = $region44
      $region43: #{manifold_net_forward.1} parent=39 // pred_region
        _
      $region44: #{manifold_net_forward.1} parent=39 // pred_fallthru
        _
    $region40: #{manifold_net_forward.1} parent=5 // pred_fallthru
      _
    %p3304 = scmp.le.s32.totalorder 2, %s11
    // Predicated region
    $region45: #{manifold_net_forward.1} parent=5 // pred_check
      %p3305 = pneg %p3304
    $region46: #{manifold_net_forward.1} parent=5 // pred_check_branch
      %3307 = sbr.rel (%p3305) target = $region48
    $region47: #{manifold_net_forward.1} parent=5 // pred_region
      %s3308 = ssub.s32 %s11, 2
      // Predicated region
      $region49: #{manifold_net_forward.1} parent=47 // pred_check
        %p3309 = pneg %p155
      $region50: #{manifold_net_forward.1} parent=47 // pred_check_branch
        %3311 = sbr.rel (%p3309) target = $region52
      $region51: #{manifold_net_forward.1} parent=47 // pred_region
        %p3312 = scmp.lt.s32.totalorder %s17, 1
        %s3313 = scalar_select %p3312, %s17, 1
        %s3314 = scalar_lea.vmem %s5, %s3313
      $region52: #{manifold_net_forward.1} parent=47 // pred_fallthru
        _
    $region48: #{manifold_net_forward.1} parent=5 // pred_fallthru
      _
  $region6: #{manifold_net_forward.1} parent=0 // loop_footer
    %s15 = sadd.s32 1, %s11
  $region7: #{manifold_net_forward.1} parent=0 // loop_footer_branch
    %10 = sbr.rel target = $region3
  $region8: #{manifold_net_forward.1} parent=0 // loop_exit
    _

</llo_original>
